<compile_context>
chip_gen: v7x
topology: tpu7x:2x2x1
jax: 0.10.0
libtpu: 0.0.40
codegen_flags: <defaults>
</compile_context>

<pallas_src>
import numpy as np
import jax
import jax.numpy as jnp
from jax.experimental import pallas as pl
from jax.experimental.pallas import tpu as pltpu

# ----------------------------- static geometry ------------------------------
C_IN, HW, K = 1, 28, 5          # MNIST input, 5x5 convs
C1, C2 = 8, 16                  # conv channel counts
NPHASE, PHW = 16, 7             # mod-4 phase split: 16 phase maps of 7x7 (=49 flat)
L1 = 41                         # conv1-stage flat window length (covers u*7+v, u,v<=5)
L2 = 25                         # conv2-stage flat window length (covers p*7+q, p,q<=3)
FC1_OUT = 64
NCLASS, NCLASS_PAD = 10, 128    # classes padded to a full 128-lane store


def _tpu_compiler_params():
    cp = getattr(pltpu, "CompilerParams", None)
    if cp is None:                       # older jax fallback
        cp = getattr(pltpu, "TPUCompilerParams")
    return cp(dimension_semantics=("parallel",))


# ------------------------------- the kernel ---------------------------------
def _convnet_kernel(x_ref, w1_ref, b1_ref, w2_ref, b2_ref,
                    fc1_ref, fc1b_ref, fc2_ref, fc2b_ref, o_ref):
    # x_ref block: (1, 16, 49) f32 -- one image, mod-4 phase split:
    #   row t = 4*tr + tc holds x[4*u + tr, 4*v + tc] flattened as u*7 + v.
    xp = x_ref[0]                                              # (16, 49) f32

    # ---- conv1(1->8,k5) + maxpool2 + relu, emitted directly in 2x2-parity-split
    # ---- flat form (row stride 7; valid lanes u*7+v with u,v<6) ---------------
    # For output-parity (a,b), pool quadrant (qh,qw), tap (kh,kw) we need
    # x[4u + (2a+qh+kh), 4v + (2b+qw+kw)]; writing 2a+qh+kh = 4*sr+tr this is the
    # phase map (tr,tc) shifted by (sr,sc): a static unit-stride lane slice of xp.
    segs = []
    for a in range(2):
        for b in range(2):
            for qh in range(2):
                for qw in range(2):
                    taps = []
                    for kh in range(K):
                        for kw in range(K):
                            mr = 2 * a + qh + kh
                            mc = 2 * b + qw + kw
                            tr, sr = mr % 4, mr // 4
                            tc, sc = mc % 4, mc // 4
                            row = tr * 4 + tc
                            st = sr * 7 + sc
                            taps.append(xp[row:row + 1, st:st + L1])   # (1, 41)
                    segs.append(jnp.concatenate(taps, axis=0))          # (25, 41)
    # One merged matmul over all 4 output parities x 4 pool quadrants.
    p1 = jnp.concatenate(segs, axis=1).astype(jnp.bfloat16)             # (25, 656)
    y1 = jnp.dot(w1_ref[...], p1, preferred_element_type=jnp.float32)   # (8, 656) f32

    a1 = {}                     # 2x2-parity-split pooled conv1 output, each (8, 41)
    for a in range(2):
        for b in range(2):
            base = (a * 2 + b) * 4 * L1
            q = [y1[:, base + i * L1: base + (i + 1) * L1] for i in range(4)]
            m = jnp.maximum(jnp.maximum(q[0], q[1]), jnp.maximum(q[2], q[3]))
            a1[(a, b)] = jnp.maximum(m + b1_ref[...], 0.0)

    # ---- conv2(8->16,k5) + maxpool2 + relu  -> (16, 25) flat (valid at p*7+q) ---
    qsegs = []
    for qh in range(2):
        for qw in range(2):
            taps = []
            for kh in range(K):
                for kw in range(K):
                    mr, mc = qh + kh, qw + kw
                    ar, sr = mr % 2, mr // 2
                    ac, sc = mc % 2, mc // 2
                    st = sr * 7 + sc
                    taps.append(a1[(ar, ac)][:, st:st + L2])             # (8, 25)
            qsegs.append(jnp.concatenate(taps, axis=0))                  # (200, 25)
    p2 = jnp.concatenate(qsegs, axis=1).astype(jnp.bfloat16)             # (200, 100)
    y2 = jnp.dot(w2_ref[...], p2, preferred_element_type=jnp.float32)    # (16, 100)
    q = [y2[:, i * L2:(i + 1) * L2] for i in range(4)]
    a2 = jnp.maximum(
        jnp.maximum(jnp.maximum(q[0], q[1]), jnp.maximum(q[2], q[3])) + b2_ref[...],
        0.0)                                                             # (16, 25) f32

    # ---- flatten (lane concat) + fc1 + relu + fc2 + log_softmax ---------------
    # fc1 weight rows were pre-permuted on the host to this (channel*25 + p) layout,
    # with exact zeros at the garbage lane positions.
    flat = jnp.concatenate([a2[c:c + 1, :] for c in range(C2)], axis=1)  # (1, 400)
    h = jnp.dot(flat.astype(jnp.bfloat16), fc1_ref[...],
                preferred_element_type=jnp.float32) + fc1b_ref[...]
    h = jnp.maximum(h, 0.0)                                              # (1, 64)
    logits = jnp.dot(h.astype(jnp.bfloat16), fc2_ref[...],
                     preferred_element_type=jnp.float32) + fc2b_ref[...]  # (1, 128)
    z = logits - jnp.max(logits, axis=1, keepdims=True)                  # pad cols are
    out = z - jnp.log(jnp.sum(jnp.exp(z), axis=1, keepdims=True))        # at -1e9: inert
    o_ref[...] = out.reshape(1, 1, NCLASS_PAD)


# ------------------------------- host glue ----------------------------------
def prepare_params(params):
    """One-time weight layout prep (runs on host, outside the jitted forward)."""
    # conv1: (8,1,5,5) -> (8,25), taps flattened kh-major (matches kernel).
    w1 = jnp.asarray(params["conv1_w"]).reshape(C1, C_IN * K * K).astype(jnp.bfloat16)
    b1 = jnp.asarray(params["conv1_b"]).reshape(C1, 1).astype(jnp.float32)
    # conv2: (16,8,5,5) -> (16,200) with column order (kh,kw) major, channel minor,
    # matching the kernel's per-tap (8,25) channel blocks.
    w2 = (jnp.asarray(params["conv2_w"]).transpose(0, 2, 3, 1)
          .reshape(C2, C1 * K * K).astype(jnp.bfloat16))
    b2 = jnp.asarray(params["conv2_b"]).reshape(C2, 1).astype(jnp.float32)

    # fc1: fold the PyTorch .view(-1, 256) (C,H,W) flatten permutation AND the
    # kernel's flat (row-stride 7) activation layout into the weight.  Garbage
    # lane positions get exact-zero columns.
    fc1_w = np.asarray(params["fc1_w"], dtype=np.float32)         # (64, 256)
    fc1_adj = np.zeros((C2 * L2, FC1_OUT), np.float32)            # (400, 64)
    for co in range(C2):
        for ph in range(4):
            for pw in range(4):
                fc1_adj[co * L2 + ph * 7 + pw, :] = fc1_w[:, co * 16 + ph * 4 + pw]

    # fc2: transpose + pad classes to 128 lanes; pad bias -1e9 so padded logits
    # never influence max / logsumexp.
    fc2_w = np.asarray(params["fc2_w"], dtype=np.float32)         # (10, 64)
    fc2_pad = np.zeros((FC1_OUT, NCLASS_PAD), np.float32)
    fc2_pad[:, :NCLASS] = fc2_w.T
    fc2_b_pad = np.full((1, NCLASS_PAD), -1e9, np.float32)
    fc2_b_pad[0, :NCLASS] = np.asarray(params["fc2_b"], dtype=np.float32)

    return {
        "w1": w1, "b1": b1, "w2": w2, "b2": b2,
        "fc1t": jnp.asarray(fc1_adj, dtype=jnp.bfloat16),
        "fc1b": jnp.asarray(params["fc1_b"]).reshape(1, FC1_OUT).astype(jnp.float32),
        "fc2t": jnp.asarray(fc2_pad, dtype=jnp.bfloat16),
        "fc2b": jnp.asarray(fc2_b_pad),
    }


def convnet_forward(x, p):
    """x: (B, 1, 28, 28) f32 -> (B, 10) log-probs."""
    B = x.shape[0]
    # mod-4 phase split of the raw input (1x bytes; enables unit-stride in-kernel
    # window slicing).  Row t = 4*tr + tc of each (16,49) image block.
    phases = [x[:, 0, tr::4, tc::4].reshape(B, 1, PHW * PHW)
              for tr in range(4) for tc in range(4)]
    xp = jnp.concatenate(phases, axis=1)                          # (B, 16, 49)

    out = pl.pallas_call(
        _convnet_kernel,
        out_shape=jax.ShapeDtypeStruct((B, 1, NCLASS_PAD), jnp.float32),
        grid=(B,),
        in_specs=[
            pl.BlockSpec((1, NPHASE, PHW * PHW), lambda i: (i, 0, 0)),
            pl.BlockSpec((C1, C_IN * K * K), lambda i: (0, 0)),
            pl.BlockSpec((C1, 1), lambda i: (0, 0)),
            pl.BlockSpec((C2, C1 * K * K), lambda i: (0, 0)),
            pl.BlockSpec((C2, 1), lambda i: (0, 0)),
            pl.BlockSpec((C2 * L2, FC1_OUT), lambda i: (0, 0)),
            pl.BlockSpec((1, FC1_OUT), lambda i: (0, 0)),
            pl.BlockSpec((FC1_OUT, NCLASS_PAD), lambda i: (0, 0)),
            pl.BlockSpec((1, NCLASS_PAD), lambda i: (0, 0)),
        ],
        out_specs=pl.BlockSpec((1, 1, NCLASS_PAD), lambda i: (i, 0, 0)),
        compiler_params=_tpu_compiler_params(),
    )(xp, p["w1"], p["b1"], p["w2"], p["b2"],
      p["fc1t"], p["fc1b"], p["fc2t"], p["fc2b"])
    return out.reshape(B, NCLASS_PAD)[:, :NCLASS]


# --------------------------- pure-JAX reference -----------------------------
def convnet_reference(x, params):
    def conv(h, w, b):
        y = jax.lax.conv_general_dilated(
            h, w, (1, 1), "VALID", dimension_numbers=("NCHW", "OIHW", "NCHW"))
        return y + b.reshape(1, -1, 1, 1)

    def pool_relu(y):
        y = jax.lax.reduce_window(y, -jnp.inf, jax.lax.max,
                                  (1, 1, 2, 2), (1, 1, 2, 2), "VALID")
        return jnp.maximum(y, 0.0)

    h = pool_relu(conv(x, params["conv1_w"], params["conv1_b"]))
    h = pool_relu(conv(h, params["conv2_w"], params["conv2_b"]))
    h = h.reshape(h.shape[0], -1)
    h = jnp.maximum(h @ params["fc1_w"].T + params["fc1_b"], 0.0)
    logits = h @ params["fc2_w"].T + params["fc2_b"]
    return jax.nn.log_softmax(logits, axis=1)


# ----------------------------------- main ------------------------------------
if __name__ == "__main__":
    key = jax.random.PRNGKey(0)
    ks = jax.random.split(key, 9)

    # MNIST_8_16: conv1 Conv2d(1,8,5), conv2 Conv2d(8,16,5),
    # fc1 Linear(256,64), fc2 Linear(64,10).  drop_out/batch_norm are off (defaults).
    params = {
        "conv1_w": 0.1 * jax.random.normal(ks[0], (8, 1, 5, 5), jnp.float32),
        "conv1_b": 0.1 * jax.random.normal(ks[1], (8,), jnp.float32),
        "conv2_w": 0.1 * jax.random.normal(ks[2], (16, 8, 5, 5), jnp.float32),
        "conv2_b": 0.1 * jax.random.normal(ks[3], (16,), jnp.float32),
        "fc1_w": 0.1 * jax.random.normal(ks[4], (64, 256), jnp.float32),
        "fc1_b": 0.1 * jax.random.normal(ks[5], (64,), jnp.float32),
        "fc2_w": 0.1 * jax.random.normal(ks[6], (10, 64), jnp.float32),
        "fc2_b": 0.1 * jax.random.normal(ks[7], (10,), jnp.float32),
    }
    x = jax.random.normal(ks[8], (2, 1, 28, 28), jnp.float32)

    prepped = prepare_params(params)          # one-time, outside the jitted forward

    out = jax.block_until_ready(jax.jit(convnet_forward)(x, prepped))
    ref = jax.block_until_ready(convnet_reference(x, params))

    assert out.shape == (2, 10)
    # bf16 MXU operands -> compare at a bf16-appropriate tolerance.
    assert jnp.allclose(out, ref, rtol=5e-2, atol=5e-2), "mismatch vs pure-JAX reference"

    print("KERNEL_OK")
</pallas_src>

<mosaic_0001>
module attributes {stable_mosaic.version = 11 : i64} {
  func.func @_convnet_kernel(%arg0: i32, %arg1: memref<1x16x49xf32, #tpu.memory_space<vmem>>, %arg2: memref<8x25xbf16, #tpu.memory_space<vmem>>, %arg3: memref<8x1xf32, #tpu.memory_space<vmem>>, %arg4: memref<16x200xbf16, #tpu.memory_space<vmem>>, %arg5: memref<16x1xf32, #tpu.memory_space<vmem>>, %arg6: memref<400x64xbf16, #tpu.memory_space<vmem>>, %arg7: memref<1x64xf32, #tpu.memory_space<vmem>>, %arg8: memref<64x128xbf16, #tpu.memory_space<vmem>>, %arg9: memref<1x128xf32, #tpu.memory_space<vmem>>, %arg10: memref<1x1x128xf32, #tpu.memory_space<vmem>>) attributes {dimension_semantics = [#tpu.dimension_semantics<parallel>], iteration_bounds = array<i64: 2>, scalar_prefetch = 0 : i64, scratch_operands = 0 : i64, tpu.core_type = #tpu.core_type<tc>, window_params = [{transform_indices = @transform_0, window_bounds = array<i64: 1, 16, 49>}, {pipeline_mode = #tpu.pipeline_mode<synchronous>, transform_indices = @transform_1, window_bounds = array<i64: 8, 25>}, {pipeline_mode = #tpu.pipeline_mode<synchronous>, transform_indices = @transform_2, window_bounds = array<i64: 8, 1>}, {pipeline_mode = #tpu.pipeline_mode<synchronous>, transform_indices = @transform_3, window_bounds = array<i64: 16, 200>}, {pipeline_mode = #tpu.pipeline_mode<synchronous>, transform_indices = @transform_4, window_bounds = array<i64: 16, 1>}, {pipeline_mode = #tpu.pipeline_mode<synchronous>, transform_indices = @transform_5, window_bounds = array<i64: 400, 64>}, {pipeline_mode = #tpu.pipeline_mode<synchronous>, transform_indices = @transform_6, window_bounds = array<i64: 1, 64>}, {pipeline_mode = #tpu.pipeline_mode<synchronous>, transform_indices = @transform_7, window_bounds = array<i64: 64, 128>}, {pipeline_mode = #tpu.pipeline_mode<synchronous>, transform_indices = @transform_8, window_bounds = array<i64: 1, 128>}, {transform_indices = @transform_9, window_bounds = array<i64: 1, 1, 128>}]} {
    %c0 = arith.constant 0 : index
    %c0_0 = arith.constant 0 : index
    %c0_1 = arith.constant 0 : index
    %0 = vector.load %arg1[%c0, %c0_0, %c0_1] : memref<1x16x49xf32, #tpu.memory_space<vmem>>, vector<1x16x49xf32>
    %1 = vector.shape_cast %0 : vector<1x16x49xf32> to vector<16x49xf32>
    %2 = vector.extract_strided_slice %1 {offsets = [0, 0], sizes = [1, 41], strides = [1, 1]} : vector<16x49xf32> to vector<1x41xf32>
    %3 = vector.extract_strided_slice %1 {offsets = [1, 0], sizes = [1, 41], strides = [1, 1]} : vector<16x49xf32> to vector<1x41xf32>
    %4 = vector.extract_strided_slice %1 {offsets = [2, 0], sizes = [1, 41], strides = [1, 1]} : vector<16x49xf32> to vector<1x41xf32>
    %5 = vector.extract_strided_slice %1 {offsets = [3, 0], sizes = [1, 41], strides = [1, 1]} : vector<16x49xf32> to vector<1x41xf32>
    %6 = vector.extract_strided_slice %1 {offsets = [0, 1], sizes = [1, 41], strides = [1, 1]} : vector<16x49xf32> to vector<1x41xf32>
    %7 = vector.extract_strided_slice %1 {offsets = [4, 0], sizes = [1, 41], strides = [1, 1]} : vector<16x49xf32> to vector<1x41xf32>
    %8 = vector.extract_strided_slice %1 {offsets = [5, 0], sizes = [1, 41], strides = [1, 1]} : vector<16x49xf32> to vector<1x41xf32>
    %9 = vector.extract_strided_slice %1 {offsets = [6, 0], sizes = [1, 41], strides = [1, 1]} : vector<16x49xf32> to vector<1x41xf32>
    %10 = vector.extract_strided_slice %1 {offsets = [7, 0], sizes = [1, 41], strides = [1, 1]} : vector<16x49xf32> to vector<1x41xf32>
    %11 = vector.extract_strided_slice %1 {offsets = [4, 1], sizes = [1, 41], strides = [1, 1]} : vector<16x49xf32> to vector<1x41xf32>
    %12 = vector.extract_strided_slice %1 {offsets = [8, 0], sizes = [1, 41], strides = [1, 1]} : vector<16x49xf32> to vector<1x41xf32>
    %13 = vector.extract_strided_slice %1 {offsets = [9, 0], sizes = [1, 41], strides = [1, 1]} : vector<16x49xf32> to vector<1x41xf32>
    %14 = vector.extract_strided_slice %1 {offsets = [10, 0], sizes = [1, 41], strides = [1, 1]} : vector<16x49xf32> to vector<1x41xf32>
    %15 = vector.extract_strided_slice %1 {offsets = [11, 0], sizes = [1, 41], strides = [1, 1]} : vector<16x49xf32> to vector<1x41xf32>
    %16 = vector.extract_strided_slice %1 {offsets = [8, 1], sizes = [1, 41], strides = [1, 1]} : vector<16x49xf32> to vector<1x41xf32>
    %17 = vector.extract_strided_slice %1 {offsets = [12, 0], sizes = [1, 41], strides = [1, 1]} : vector<16x49xf32> to vector<1x41xf32>
    %18 = vector.extract_strided_slice %1 {offsets = [13, 0], sizes = [1, 41], strides = [1, 1]} : vector<16x49xf32> to vector<1x41xf32>
    %19 = vector.extract_strided_slice %1 {offsets = [14, 0], sizes = [1, 41], strides = [1, 1]} : vector<16x49xf32> to vector<1x41xf32>
    %20 = vector.extract_strided_slice %1 {offsets = [15, 0], sizes = [1, 41], strides = [1, 1]} : vector<16x49xf32> to vector<1x41xf32>
    %21 = vector.extract_strided_slice %1 {offsets = [12, 1], sizes = [1, 41], strides = [1, 1]} : vector<16x49xf32> to vector<1x41xf32>
    %22 = vector.extract_strided_slice %1 {offsets = [0, 7], sizes = [1, 41], strides = [1, 1]} : vector<16x49xf32> to vector<1x41xf32>
    %23 = vector.extract_strided_slice %1 {offsets = [1, 7], sizes = [1, 41], strides = [1, 1]} : vector<16x49xf32> to vector<1x41xf32>
    %24 = vector.extract_strided_slice %1 {offsets = [2, 7], sizes = [1, 41], strides = [1, 1]} : vector<16x49xf32> to vector<1x41xf32>
    %25 = vector.extract_strided_slice %1 {offsets = [3, 7], sizes = [1, 41], strides = [1, 1]} : vector<16x49xf32> to vector<1x41xf32>
    %26 = vector.extract_strided_slice %1 {offsets = [0, 8], sizes = [1, 41], strides = [1, 1]} : vector<16x49xf32> to vector<1x41xf32>
    %27 = tpu.concatenate %2, %3, %4, %5, %6, %7, %8, %9, %10, %11, %12, %13, %14, %15, %16, %17 in 0 : vector<1x41xf32>, vector<1x41xf32>, vector<1x41xf32>, vector<1x41xf32>, vector<1x41xf32>, vector<1x41xf32>, vector<1x41xf32>, vector<1x41xf32>, vector<1x41xf32>, vector<1x41xf32>, vector<1x41xf32>, vector<1x41xf32>, vector<1x41xf32>, vector<1x41xf32>, vector<1x41xf32>, vector<1x41xf32> -> vector<16x41xf32>
    %28 = tpu.concatenate %18, %19, %20, %21, %22, %23, %24, %25, %26 in 0 : vector<1x41xf32>, vector<1x41xf32>, vector<1x41xf32>, vector<1x41xf32>, vector<1x41xf32>, vector<1x41xf32>, vector<1x41xf32>, vector<1x41xf32>, vector<1x41xf32> -> vector<9x41xf32>
    %29 = tpu.concatenate %27, %28 in 0 : vector<16x41xf32>, vector<9x41xf32> -> vector<25x41xf32>
    %30 = vector.extract_strided_slice %1 {offsets = [1, 0], sizes = [1, 41], strides = [1, 1]} : vector<16x49xf32> to vector<1x41xf32>
    %31 = vector.extract_strided_slice %1 {offsets = [2, 0], sizes = [1, 41], strides = [1, 1]} : vector<16x49xf32> to vector<1x41xf32>
    %32 = vector.extract_strided_slice %1 {offsets = [3, 0], sizes = [1, 41], strides = [1, 1]} : vector<16x49xf32> to vector<1x41xf32>
    %33 = vector.extract_strided_slice %1 {offsets = [0, 1], sizes = [1, 41], strides = [1, 1]} : vector<16x49xf32> to vector<1x41xf32>
    %34 = vector.extract_strided_slice %1 {offsets = [1, 1], sizes = [1, 41], strides = [1, 1]} : vector<16x49xf32> to vector<1x41xf32>
    %35 = vector.extract_strided_slice %1 {offsets = [5, 0], sizes = [1, 41], strides = [1, 1]} : vector<16x49xf32> to vector<1x41xf32>
    %36 = vector.extract_strided_slice %1 {offsets = [6, 0], sizes = [1, 41], strides = [1, 1]} : vector<16x49xf32> to vector<1x41xf32>
    %37 = vector.extract_strided_slice %1 {offsets = [7, 0], sizes = [1, 41], strides = [1, 1]} : vector<16x49xf32> to vector<1x41xf32>
    %38 = vector.extract_strided_slice %1 {offsets = [4, 1], sizes = [1, 41], strides = [1, 1]} : vector<16x49xf32> to vector<1x41xf32>
    %39 = vector.extract_strided_slice %1 {offsets = [5, 1], sizes = [1, 41], strides = [1, 1]} : vector<16x49xf32> to vector<1x41xf32>
    %40 = vector.extract_strided_slice %1 {offsets = [9, 0], sizes = [1, 41], strides = [1, 1]} : vector<16x49xf32> to vector<1x41xf32>
    %41 = vector.extract_strided_slice %1 {offsets = [10, 0], sizes = [1, 41], strides = [1, 1]} : vector<16x49xf32> to vector<1x41xf32>
    %42 = vector.extract_strided_slice %1 {offsets = [11, 0], sizes = [1, 41], strides = [1, 1]} : vector<16x49xf32> to vector<1x41xf32>
    %43 = vector.extract_strided_slice %1 {offsets = [8, 1], sizes = [1, 41], strides = [1, 1]} : vector<16x49xf32> to vector<1x41xf32>
    %44 = vector.extract_strided_slice %1 {offsets = [9, 1], sizes = [1, 41], strides = [1, 1]} : vector<16x49xf32> to vector<1x41xf32>
    %45 = vector.extract_strided_slice %1 {offsets = [13, 0], sizes = [1, 41], strides = [1, 1]} : vector<16x49xf32> to vector<1x41xf32>
    %46 = vector.extract_strided_slice %1 {offsets = [14, 0], sizes = [1, 41], strides = [1, 1]} : vector<16x49xf32> to vector<1x41xf32>
    %47 = vector.extract_strided_slice %1 {offsets = [15, 0], sizes = [1, 41], strides = [1, 1]} : vector<16x49xf32> to vector<1x41xf32>
    %48 = vector.extract_strided_slice %1 {offsets = [12, 1], sizes = [1, 41], strides = [1, 1]} : vector<16x49xf32> to vector<1x41xf32>
    %49 = vector.extract_strided_slice %1 {offsets = [13, 1], sizes = [1, 41], strides = [1, 1]} : vector<16x49xf32> to vector<1x41xf32>
    %50 = vector.extract_strided_slice %1 {offsets = [1, 7], sizes = [1, 41], strides = [1, 1]} : vector<16x49xf32> to vector<1x41xf32>
    %51 = vector.extract_strided_slice %1 {offsets = [2, 7], sizes = [1, 41], strides = [1, 1]} : vector<16x49xf32> to vector<1x41xf32>
    %52 = vector.extract_strided_slice %1 {offsets = [3, 7], sizes = [1, 41], strides = [1, 1]} : vector<16x49xf32> to vector<1x41xf32>
    %53 = vector.extract_strided_slice %1 {offsets = [0, 8], sizes = [1, 41], strides = [1, 1]} : vector<16x49xf32> to vector<1x41xf32>
    %54 = vector.extract_strided_slice %1 {offsets = [1, 8], sizes = [1, 41], strides = [1, 1]} : vector<16x49xf32> to vector<1x41xf32>
    %55 = tpu.concatenate %30, %31, %32, %33, %34, %35, %36, %37, %38, %39, %40, %41, %42, %43, %44, %45 in 0 : vector<1x41xf32>, vector<1x41xf32>, vector<1x41xf32>, vector<1x41xf32>, vector<1x41xf32>, vector<1x41xf32>, vector<1x41xf32>, vector<1x41xf32>, vector<1x41xf32>, vector<1x41xf32>, vector<1x41xf32>, vector<1x41xf32>, vector<1x41xf32>, vector<1x41xf32>, vector<1x41xf32>, vector<1x41xf32> -> vector<16x41xf32>
    %56 = tpu.concatenate %46, %47, %48, %49, %50, %51, %52, %53, %54 in 0 : vector<1x41xf32>, vector<1x41xf32>, vector<1x41xf32>, vector<1x41xf32>, vector<1x41xf32>, vector<1x41xf32>, vector<1x41xf32>, vector<1x41xf32>, vector<1x41xf32> -> vector<9x41xf32>
    %57 = tpu.concatenate %55, %56 in 0 : vector<16x41xf32>, vector<9x41xf32> -> vector<25x41xf32>
    %58 = vector.extract_strided_slice %1 {offsets = [4, 0], sizes = [1, 41], strides = [1, 1]} : vector<16x49xf32> to vector<1x41xf32>
    %59 = vector.extract_strided_slice %1 {offsets = [5, 0], sizes = [1, 41], strides = [1, 1]} : vector<16x49xf32> to vector<1x41xf32>
    %60 = vector.extract_strided_slice %1 {offsets = [6, 0], sizes = [1, 41], strides = [1, 1]} : vector<16x49xf32> to vector<1x41xf32>
    %61 = vector.extract_strided_slice %1 {offsets = [7, 0], sizes = [1, 41], strides = [1, 1]} : vector<16x49xf32> to vector<1x41xf32>
    %62 = vector.extract_strided_slice %1 {offsets = [4, 1], sizes = [1, 41], strides = [1, 1]} : vector<16x49xf32> to vector<1x41xf32>
    %63 = vector.extract_strided_slice %1 {offsets = [8, 0], sizes = [1, 41], strides = [1, 1]} : vector<16x49xf32> to vector<1x41xf32>
    %64 = vector.extract_strided_slice %1 {offsets = [9, 0], sizes = [1, 41], strides = [1, 1]} : vector<16x49xf32> to vector<1x41xf32>
    %65 = vector.extract_strided_slice %1 {offsets = [10, 0], sizes = [1, 41], strides = [1, 1]} : vector<16x49xf32> to vector<1x41xf32>
    %66 = vector.extract_strided_slice %1 {offsets = [11, 0], sizes = [1, 41], strides = [1, 1]} : vector<16x49xf32> to vector<1x41xf32>
    %67 = vector.extract_strided_slice %1 {offsets = [8, 1], sizes = [1, 41], strides = [1, 1]} : vector<16x49xf32> to vector<1x41xf32>
    %68 = vector.extract_strided_slice %1 {offsets = [12, 0], sizes = [1, 41], strides = [1, 1]} : vector<16x49xf32> to vector<1x41xf32>
    %69 = vector.extract_strided_slice %1 {offsets = [13, 0], sizes = [1, 41], strides = [1, 1]} : vector<16x49xf32> to vector<1x41xf32>
    %70 = vector.extract_strided_slice %1 {offsets = [14, 0], sizes = [1, 41], strides = [1, 1]} : vector<16x49xf32> to vector<1x41xf32>
    %71 = vector.extract_strided_slice %1 {offsets = [15, 0], sizes = [1, 41], strides = [1, 1]} : vector<16x49xf32> to vector<1x41xf32>
    %72 = vector.extract_strided_slice %1 {offsets = [12, 1], sizes = [1, 41], strides = [1, 1]} : vector<16x49xf32> to vector<1x41xf32>
    %73 = vector.extract_strided_slice %1 {offsets = [0, 7], sizes = [1, 41], strides = [1, 1]} : vector<16x49xf32> to vector<1x41xf32>
    %74 = vector.extract_strided_slice %1 {offsets = [1, 7], sizes = [1, 41], strides = [1, 1]} : vector<16x49xf32> to vector<1x41xf32>
    %75 = vector.extract_strided_slice %1 {offsets = [2, 7], sizes = [1, 41], strides = [1, 1]} : vector<16x49xf32> to vector<1x41xf32>
    %76 = vector.extract_strided_slice %1 {offsets = [3, 7], sizes = [1, 41], strides = [1, 1]} : vector<16x49xf32> to vector<1x41xf32>
    %77 = vector.extract_strided_slice %1 {offsets = [0, 8], sizes = [1, 41], strides = [1, 1]} : vector<16x49xf32> to vector<1x41xf32>
    %78 = vector.extract_strided_slice %1 {offsets = [4, 7], sizes = [1, 41], strides = [1, 1]} : vector<16x49xf32> to vector<1x41xf32>
    %79 = vector.extract_strided_slice %1 {offsets = [5, 7], sizes = [1, 41], strides = [1, 1]} : vector<16x49xf32> to vector<1x41xf32>
    %80 = vector.extract_strided_slice %1 {offsets = [6, 7], sizes = [1, 41], strides = [1, 1]} : vector<16x49xf32> to vector<1x41xf32>
    %81 = vector.extract_strided_slice %1 {offsets = [7, 7], sizes = [1, 41], strides = [1, 1]} : vector<16x49xf32> to vector<1x41xf32>
    %82 = vector.extract_strided_slice %1 {offsets = [4, 8], sizes = [1, 41], strides = [1, 1]} : vector<16x49xf32> to vector<1x41xf32>
    %83 = tpu.concatenate %58, %59, %60, %61, %62, %63, %64, %65, %66, %67, %68, %69, %70, %71, %72, %73 in 0 : vector<1x41xf32>, vector<1x41xf32>, vector<1x41xf32>, vector<1x41xf32>, vector<1x41xf32>, vector<1x41xf32>, vector<1x41xf32>, vector<1x41xf32>, vector<1x41xf32>, vector<1x41xf32>, vector<1x41xf32>, vector<1x41xf32>, vector<1x41xf32>, vector<1x41xf32>, vector<1x41xf32>, vector<1x41xf32> -> vector<16x41xf32>
    %84 = tpu.concatenate %74, %75, %76, %77, %78, %79, %80, %81, %82 in 0 : vector<1x41xf32>, vector<1x41xf32>, vector<1x41xf32>, vector<1x41xf32>, vector<1x41xf32>, vector<1x41xf32>, vector<1x41xf32>, vector<1x41xf32>, vector<1x41xf32> -> vector<9x41xf32>
    %85 = tpu.concatenate %83, %84 in 0 : vector<16x41xf32>, vector<9x41xf32> -> vector<25x41xf32>
    %86 = vector.extract_strided_slice %1 {offsets = [5, 0], sizes = [1, 41], strides = [1, 1]} : vector<16x49xf32> to vector<1x41xf32>
    %87 = vector.extract_strided_slice %1 {offsets = [6, 0], sizes = [1, 41], strides = [1, 1]} : vector<16x49xf32> to vector<1x41xf32>
    %88 = vector.extract_strided_slice %1 {offsets = [7, 0], sizes = [1, 41], strides = [1, 1]} : vector<16x49xf32> to vector<1x41xf32>
    %89 = vector.extract_strided_slice %1 {offsets = [4, 1], sizes = [1, 41], strides = [1, 1]} : vector<16x49xf32> to vector<1x41xf32>
    %90 = vector.extract_strided_slice %1 {offsets = [5, 1], sizes = [1, 41], strides = [1, 1]} : vector<16x49xf32> to vector<1x41xf32>
    %91 = vector.extract_strided_slice %1 {offsets = [9, 0], sizes = [1, 41], strides = [1, 1]} : vector<16x49xf32> to vector<1x41xf32>
    %92 = vector.extract_strided_slice %1 {offsets = [10, 0], sizes = [1, 41], strides = [1, 1]} : vector<16x49xf32> to vector<1x41xf32>
    %93 = vector.extract_strided_slice %1 {offsets = [11, 0], sizes = [1, 41], strides = [1, 1]} : vector<16x49xf32> to vector<1x41xf32>
    %94 = vector.extract_strided_slice %1 {offsets = [8, 1], sizes = [1, 41], strides = [1, 1]} : vector<16x49xf32> to vector<1x41xf32>
    %95 = vector.extract_strided_slice %1 {offsets = [9, 1], sizes = [1, 41], strides = [1, 1]} : vector<16x49xf32> to vector<1x41xf32>
    %96 = vector.extract_strided_slice %1 {offsets = [13, 0], sizes = [1, 41], strides = [1, 1]} : vector<16x49xf32> to vector<1x41xf32>
    %97 = vector.extract_strided_slice %1 {offsets = [14, 0], sizes = [1, 41], strides = [1, 1]} : vector<16x49xf32> to vector<1x41xf32>
    %98 = vector.extract_strided_slice %1 {offsets = [15, 0], sizes = [1, 41], strides = [1, 1]} : vector<16x49xf32> to vector<1x41xf32>
    %99 = vector.extract_strided_slice %1 {offsets = [12, 1], sizes = [1, 41], strides = [1, 1]} : vector<16x49xf32> to vector<1x41xf32>
    %100 = vector.extract_strided_slice %1 {offsets = [13, 1], sizes = [1, 41], strides = [1, 1]} : vector<16x49xf32> to vector<1x41xf32>
    %101 = vector.extract_strided_slice %1 {offsets = [1, 7], sizes = [1, 41], strides = [1, 1]} : vector<16x49xf32> to vector<1x41xf32>
    %102 = vector.extract_strided_slice %1 {offsets = [2, 7], sizes = [1, 41], strides = [1, 1]} : vector<16x49xf32> to vector<1x41xf32>
    %103 = vector.extract_strided_slice %1 {offsets = [3, 7], sizes = [1, 41], strides = [1, 1]} : vector<16x49xf32> to vector<1x41xf32>
    %104 = vector.extract_strided_slice %1 {offsets = [0, 8], sizes = [1, 41], strides = [1, 1]} : vector<16x49xf32> to vector<1x41xf32>
    %105 = vector.extract_strided_slice %1 {offsets = [1, 8], sizes = [1, 41], strides = [1, 1]} : vector<16x49xf32> to vector<1x41xf32>
    %106 = vector.extract_strided_slice %1 {offsets = [5, 7], sizes = [1, 41], strides = [1, 1]} : vector<16x49xf32> to vector<1x41xf32>
    %107 = vector.extract_strided_slice %1 {offsets = [6, 7], sizes = [1, 41], strides = [1, 1]} : vector<16x49xf32> to vector<1x41xf32>
    %108 = vector.extract_strided_slice %1 {offsets = [7, 7], sizes = [1, 41], strides = [1, 1]} : vector<16x49xf32> to vector<1x41xf32>
    %109 = vector.extract_strided_slice %1 {offsets = [4, 8], sizes = [1, 41], strides = [1, 1]} : vector<16x49xf32> to vector<1x41xf32>
    %110 = vector.extract_strided_slice %1 {offsets = [5, 8], sizes = [1, 41], strides = [1, 1]} : vector<16x49xf32> to vector<1x41xf32>
    %111 = tpu.concatenate %86, %87, %88, %89, %90, %91, %92, %93, %94, %95, %96, %97, %98, %99, %100, %101 in 0 : vector<1x41xf32>, vector<1x41xf32>, vector<1x41xf32>, vector<1x41xf32>, vector<1x41xf32>, vector<1x41xf32>, vector<1x41xf32>, vector<1x41xf32>, vector<1x41xf32>, vector<1x41xf32>, vector<1x41xf32>, vector<1x41xf32>, vector<1x41xf32>, vector<1x41xf32>, vector<1x41xf32>, vector<1x41xf32> -> vector<16x41xf32>
    %112 = tpu.concatenate %102, %103, %104, %105, %106, %107, %108, %109, %110 in 0 : vector<1x41xf32>, vector<1x41xf32>, vector<1x41xf32>, vector<1x41xf32>, vector<1x41xf32>, vector<1x41xf32>, vector<1x41xf32>, vector<1x41xf32>, vector<1x41xf32> -> vector<9x41xf32>
    %113 = tpu.concatenate %111, %112 in 0 : vector<16x41xf32>, vector<9x41xf32> -> vector<25x41xf32>
    %114 = vector.extract_strided_slice %1 {offsets = [2, 0], sizes = [1, 41], strides = [1, 1]} : vector<16x49xf32> to vector<1x41xf32>
    %115 = vector.extract_strided_slice %1 {offsets = [3, 0], sizes = [1, 41], strides = [1, 1]} : vector<16x49xf32> to vector<1x41xf32>
    %116 = vector.extract_strided_slice %1 {offsets = [0, 1], sizes = [1, 41], strides = [1, 1]} : vector<16x49xf32> to vector<1x41xf32>
    %117 = vector.extract_strided_slice %1 {offsets = [1, 1], sizes = [1, 41], strides = [1, 1]} : vector<16x49xf32> to vector<1x41xf32>
    %118 = vector.extract_strided_slice %1 {offsets = [2, 1], sizes = [1, 41], strides = [1, 1]} : vector<16x49xf32> to vector<1x41xf32>
    %119 = vector.extract_strided_slice %1 {offsets = [6, 0], sizes = [1, 41], strides = [1, 1]} : vector<16x49xf32> to vector<1x41xf32>
    %120 = vector.extract_strided_slice %1 {offsets = [7, 0], sizes = [1, 41], strides = [1, 1]} : vector<16x49xf32> to vector<1x41xf32>
    %121 = vector.extract_strided_slice %1 {offsets = [4, 1], sizes = [1, 41], strides = [1, 1]} : vector<16x49xf32> to vector<1x41xf32>
    %122 = vector.extract_strided_slice %1 {offsets = [5, 1], sizes = [1, 41], strides = [1, 1]} : vector<16x49xf32> to vector<1x41xf32>
    %123 = vector.extract_strided_slice %1 {offsets = [6, 1], sizes = [1, 41], strides = [1, 1]} : vector<16x49xf32> to vector<1x41xf32>
    %124 = vector.extract_strided_slice %1 {offsets = [10, 0], sizes = [1, 41], strides = [1, 1]} : vector<16x49xf32> to vector<1x41xf32>
    %125 = vector.extract_strided_slice %1 {offsets = [11, 0], sizes = [1, 41], strides = [1, 1]} : vector<16x49xf32> to vector<1x41xf32>
    %126 = vector.extract_strided_slice %1 {offsets = [8, 1], sizes = [1, 41], strides = [1, 1]} : vector<16x49xf32> to vector<1x41xf32>
    %127 = vector.extract_strided_slice %1 {offsets = [9, 1], sizes = [1, 41], strides = [1, 1]} : vector<16x49xf32> to vector<1x41xf32>
    %128 = vector.extract_strided_slice %1 {offsets = [10, 1], sizes = [1, 41], strides = [1, 1]} : vector<16x49xf32> to vector<1x41xf32>
    %129 = vector.extract_strided_slice %1 {offsets = [14, 0], sizes = [1, 41], strides = [1, 1]} : vector<16x49xf32> to vector<1x41xf32>
    %130 = vector.extract_strided_slice %1 {offsets = [15, 0], sizes = [1, 41], strides = [1, 1]} : vector<16x49xf32> to vector<1x41xf32>
    %131 = vector.extract_strided_slice %1 {offsets = [12, 1], sizes = [1, 41], strides = [1, 1]} : vector<16x49xf32> to vector<1x41xf32>
    %132 = vector.extract_strided_slice %1 {offsets = [13, 1], sizes = [1, 41], strides = [1, 1]} : vector<16x49xf32> to vector<1x41xf32>
    %133 = vector.extract_strided_slice %1 {offsets = [14, 1], sizes = [1, 41], strides = [1, 1]} : vector<16x49xf32> to vector<1x41xf32>
    %134 = vector.extract_strided_slice %1 {offsets = [2, 7], sizes = [1, 41], strides = [1, 1]} : vector<16x49xf32> to vector<1x41xf32>
    %135 = vector.extract_strided_slice %1 {offsets = [3, 7], sizes = [1, 41], strides = [1, 1]} : vector<16x49xf32> to vector<1x41xf32>
    %136 = vector.extract_strided_slice %1 {offsets = [0, 8], sizes = [1, 41], strides = [1, 1]} : vector<16x49xf32> to vector<1x41xf32>
    %137 = vector.extract_strided_slice %1 {offsets = [1, 8], sizes = [1, 41], strides = [1, 1]} : vector<16x49xf32> to vector<1x41xf32>
    %138 = vector.extract_strided_slice %1 {offsets = [2, 8], sizes = [1, 41], strides = [1, 1]} : vector<16x49xf32> to vector<1x41xf32>
    %139 = tpu.concatenate %114, %115, %116, %117, %118, %119, %120, %121, %122, %123, %124, %125, %126, %127, %128, %129 in 0 : vector<1x41xf32>, vector<1x41xf32>, vector<1x41xf32>, vector<1x41xf32>, vector<1x41xf32>, vector<1x41xf32>, vector<1x41xf32>, vector<1x41xf32>, vector<1x41xf32>, vector<1x41xf32>, vector<1x41xf32>, vector<1x41xf32>, vector<1x41xf32>, vector<1x41xf32>, vector<1x41xf32>, vector<1x41xf32> -> vector<16x41xf32>
    %140 = tpu.concatenate %130, %131, %132, %133, %134, %135, %136, %137, %138 in 0 : vector<1x41xf32>, vector<1x41xf32>, vector<1x41xf32>, vector<1x41xf32>, vector<1x41xf32>, vector<1x41xf32>, vector<1x41xf32>, vector<1x41xf32>, vector<1x41xf32> -> vector<9x41xf32>
    %141 = tpu.concatenate %139, %140 in 0 : vector<16x41xf32>, vector<9x41xf32> -> vector<25x41xf32>
    %142 = vector.extract_strided_slice %1 {offsets = [3, 0], sizes = [1, 41], strides = [1, 1]} : vector<16x49xf32> to vector<1x41xf32>
    %143 = vector.extract_strided_slice %1 {offsets = [0, 1], sizes = [1, 41], strides = [1, 1]} : vector<16x49xf32> to vector<1x41xf32>
    %144 = vector.extract_strided_slice %1 {offsets = [1, 1], sizes = [1, 41], strides = [1, 1]} : vector<16x49xf32> to vector<1x41xf32>
    %145 = vector.extract_strided_slice %1 {offsets = [2, 1], sizes = [1, 41], strides = [1, 1]} : vector<16x49xf32> to vector<1x41xf32>
    %146 = vector.extract_strided_slice %1 {offsets = [3, 1], sizes = [1, 41], strides = [1, 1]} : vector<16x49xf32> to vector<1x41xf32>
    %147 = vector.extract_strided_slice %1 {offsets = [7, 0], sizes = [1, 41], strides = [1, 1]} : vector<16x49xf32> to vector<1x41xf32>
    %148 = vector.extract_strided_slice %1 {offsets = [4, 1], sizes = [1, 41], strides = [1, 1]} : vector<16x49xf32> to vector<1x41xf32>
    %149 = vector.extract_strided_slice %1 {offsets = [5, 1], sizes = [1, 41], strides = [1, 1]} : vector<16x49xf32> to vector<1x41xf32>
    %150 = vector.extract_strided_slice %1 {offsets = [6, 1], sizes = [1, 41], strides = [1, 1]} : vector<16x49xf32> to vector<1x41xf32>
    %151 = vector.extract_strided_slice %1 {offsets = [7, 1], sizes = [1, 41], strides = [1, 1]} : vector<16x49xf32> to vector<1x41xf32>
    %152 = vector.extract_strided_slice %1 {offsets = [11, 0], sizes = [1, 41], strides = [1, 1]} : vector<16x49xf32> to vector<1x41xf32>
    %153 = vector.extract_strided_slice %1 {offsets = [8, 1], sizes = [1, 41], strides = [1, 1]} : vector<16x49xf32> to vector<1x41xf32>
    %154 = vector.extract_strided_slice %1 {offsets = [9, 1], sizes = [1, 41], strides = [1, 1]} : vector<16x49xf32> to vector<1x41xf32>
    %155 = vector.extract_strided_slice %1 {offsets = [10, 1], sizes = [1, 41], strides = [1, 1]} : vector<16x49xf32> to vector<1x41xf32>
    %156 = vector.extract_strided_slice %1 {offsets = [11, 1], sizes = [1, 41], strides = [1, 1]} : vector<16x49xf32> to vector<1x41xf32>
    %157 = vector.extract_strided_slice %1 {offsets = [15, 0], sizes = [1, 41], strides = [1, 1]} : vector<16x49xf32> to vector<1x41xf32>
    %158 = vector.extract_strided_slice %1 {offsets = [12, 1], sizes = [1, 41], strides = [1, 1]} : vector<16x49xf32> to vector<1x41xf32>
    %159 = vector.extract_strided_slice %1 {offsets = [13, 1], sizes = [1, 41], strides = [1, 1]} : vector<16x49xf32> to vector<1x41xf32>
    %160 = vector.extract_strided_slice %1 {offsets = [14, 1], sizes = [1, 41], strides = [1, 1]} : vector<16x49xf32> to vector<1x41xf32>
    %161 = vector.extract_strided_slice %1 {offsets = [15, 1], sizes = [1, 41], strides = [1, 1]} : vector<16x49xf32> to vector<1x41xf32>
    %162 = vector.extract_strided_slice %1 {offsets = [3, 7], sizes = [1, 41], strides = [1, 1]} : vector<16x49xf32> to vector<1x41xf32>
    %163 = vector.extract_strided_slice %1 {offsets = [0, 8], sizes = [1, 41], strides = [1, 1]} : vector<16x49xf32> to vector<1x41xf32>
    %164 = vector.extract_strided_slice %1 {offsets = [1, 8], sizes = [1, 41], strides = [1, 1]} : vector<16x49xf32> to vector<1x41xf32>
    %165 = vector.extract_strided_slice %1 {offsets = [2, 8], sizes = [1, 41], strides = [1, 1]} : vector<16x49xf32> to vector<1x41xf32>
    %166 = vector.extract_strided_slice %1 {offsets = [3, 8], sizes = [1, 41], strides = [1, 1]} : vector<16x49xf32> to vector<1x41xf32>
    %167 = tpu.concatenate %142, %143, %144, %145, %146, %147, %148, %149, %150, %151, %152, %153, %154, %155, %156, %157 in 0 : vector<1x41xf32>, vector<1x41xf32>, vector<1x41xf32>, vector<1x41xf32>, vector<1x41xf32>, vector<1x41xf32>, vector<1x41xf32>, vector<1x41xf32>, vector<1x41xf32>, vector<1x41xf32>, vector<1x41xf32>, vector<1x41xf32>, vector<1x41xf32>, vector<1x41xf32>, vector<1x41xf32>, vector<1x41xf32> -> vector<16x41xf32>
    %168 = tpu.concatenate %158, %159, %160, %161, %162, %163, %164, %165, %166 in 0 : vector<1x41xf32>, vector<1x41xf32>, vector<1x41xf32>, vector<1x41xf32>, vector<1x41xf32>, vector<1x41xf32>, vector<1x41xf32>, vector<1x41xf32>, vector<1x41xf32> -> vector<9x41xf32>
    %169 = tpu.concatenate %167, %168 in 0 : vector<16x41xf32>, vector<9x41xf32> -> vector<25x41xf32>
    %170 = vector.extract_strided_slice %1 {offsets = [6, 0], sizes = [1, 41], strides = [1, 1]} : vector<16x49xf32> to vector<1x41xf32>
    %171 = vector.extract_strided_slice %1 {offsets = [7, 0], sizes = [1, 41], strides = [1, 1]} : vector<16x49xf32> to vector<1x41xf32>
    %172 = vector.extract_strided_slice %1 {offsets = [4, 1], sizes = [1, 41], strides = [1, 1]} : vector<16x49xf32> to vector<1x41xf32>
    %173 = vector.extract_strided_slice %1 {offsets = [5, 1], sizes = [1, 41], strides = [1, 1]} : vector<16x49xf32> to vector<1x41xf32>
    %174 = vector.extract_strided_slice %1 {offsets = [6, 1], sizes = [1, 41], strides = [1, 1]} : vector<16x49xf32> to vector<1x41xf32>
    %175 = vector.extract_strided_slice %1 {offsets = [10, 0], sizes = [1, 41], strides = [1, 1]} : vector<16x49xf32> to vector<1x41xf32>
    %176 = vector.extract_strided_slice %1 {offsets = [11, 0], sizes = [1, 41], strides = [1, 1]} : vector<16x49xf32> to vector<1x41xf32>
    %177 = vector.extract_strided_slice %1 {offsets = [8, 1], sizes = [1, 41], strides = [1, 1]} : vector<16x49xf32> to vector<1x41xf32>
    %178 = vector.extract_strided_slice %1 {offsets = [9, 1], sizes = [1, 41], strides = [1, 1]} : vector<16x49xf32> to vector<1x41xf32>
    %179 = vector.extract_strided_slice %1 {offsets = [10, 1], sizes = [1, 41], strides = [1, 1]} : vector<16x49xf32> to vector<1x41xf32>
    %180 = vector.extract_strided_slice %1 {offsets = [14, 0], sizes = [1, 41], strides = [1, 1]} : vector<16x49xf32> to vector<1x41xf32>
    %181 = vector.extract_strided_slice %1 {offsets = [15, 0], sizes = [1, 41], strides = [1, 1]} : vector<16x49xf32> to vector<1x41xf32>
    %182 = vector.extract_strided_slice %1 {offsets = [12, 1], sizes = [1, 41], strides = [1, 1]} : vector<16x49xf32> to vector<1x41xf32>
    %183 = vector.extract_strided_slice %1 {offsets = [13, 1], sizes = [1, 41], strides = [1, 1]} : vector<16x49xf32> to vector<1x41xf32>
    %184 = vector.extract_strided_slice %1 {offsets = [14, 1], sizes = [1, 41], strides = [1, 1]} : vector<16x49xf32> to vector<1x41xf32>
    %185 = vector.extract_strided_slice %1 {offsets = [2, 7], sizes = [1, 41], strides = [1, 1]} : vector<16x49xf32> to vector<1x41xf32>
    %186 = vector.extract_strided_slice %1 {offsets = [3, 7], sizes = [1, 41], strides = [1, 1]} : vector<16x49xf32> to vector<1x41xf32>
    %187 = vector.extract_strided_slice %1 {offsets = [0, 8], sizes = [1, 41], strides = [1, 1]} : vector<16x49xf32> to vector<1x41xf32>
    %188 = vector.extract_strided_slice %1 {offsets = [1, 8], sizes = [1, 41], strides = [1, 1]} : vector<16x49xf32> to vector<1x41xf32>
    %189 = vector.extract_strided_slice %1 {offsets = [2, 8], sizes = [1, 41], strides = [1, 1]} : vector<16x49xf32> to vector<1x41xf32>
    %190 = vector.extract_strided_slice %1 {offsets = [6, 7], sizes = [1, 41], strides = [1, 1]} : vector<16x49xf32> to vector<1x41xf32>
    %191 = vector.extract_strided_slice %1 {offsets = [7, 7], sizes = [1, 41], strides = [1, 1]} : vector<16x49xf32> to vector<1x41xf32>
    %192 = vector.extract_strided_slice %1 {offsets = [4, 8], sizes = [1, 41], strides = [1, 1]} : vector<16x49xf32> to vector<1x41xf32>
    %193 = vector.extract_strided_slice %1 {offsets = [5, 8], sizes = [1, 41], strides = [1, 1]} : vector<16x49xf32> to vector<1x41xf32>
    %194 = vector.extract_strided_slice %1 {offsets = [6, 8], sizes = [1, 41], strides = [1, 1]} : vector<16x49xf32> to vector<1x41xf32>
    %195 = tpu.concatenate %170, %171, %172, %173, %174, %175, %176, %177, %178, %179, %180, %181, %182, %183, %184, %185 in 0 : vector<1x41xf32>, vector<1x41xf32>, vector<1x41xf32>, vector<1x41xf32>, vector<1x41xf32>, vector<1x41xf32>, vector<1x41xf32>, vector<1x41xf32>, vector<1x41xf32>, vector<1x41xf32>, vector<1x41xf32>, vector<1x41xf32>, vector<1x41xf32>, vector<1x41xf32>, vector<1x41xf32>, vector<1x41xf32> -> vector<16x41xf32>
    %196 = tpu.concatenate %186, %187, %188, %189, %190, %191, %192, %193, %194 in 0 : vector<1x41xf32>, vector<1x41xf32>, vector<1x41xf32>, vector<1x41xf32>, vector<1x41xf32>, vector<1x41xf32>, vector<1x41xf32>, vector<1x41xf32>, vector<1x41xf32> -> vector<9x41xf32>
    %197 = tpu.concatenate %195, %196 in 0 : vector<16x41xf32>, vector<9x41xf32> -> vector<25x41xf32>
    %198 = vector.extract_strided_slice %1 {offsets = [7, 0], sizes = [1, 41], strides = [1, 1]} : vector<16x49xf32> to vector<1x41xf32>
    %199 = vector.extract_strided_slice %1 {offsets = [4, 1], sizes = [1, 41], strides = [1, 1]} : vector<16x49xf32> to vector<1x41xf32>
    %200 = vector.extract_strided_slice %1 {offsets = [5, 1], sizes = [1, 41], strides = [1, 1]} : vector<16x49xf32> to vector<1x41xf32>
    %201 = vector.extract_strided_slice %1 {offsets = [6, 1], sizes = [1, 41], strides = [1, 1]} : vector<16x49xf32> to vector<1x41xf32>
    %202 = vector.extract_strided_slice %1 {offsets = [7, 1], sizes = [1, 41], strides = [1, 1]} : vector<16x49xf32> to vector<1x41xf32>
    %203 = vector.extract_strided_slice %1 {offsets = [11, 0], sizes = [1, 41], strides = [1, 1]} : vector<16x49xf32> to vector<1x41xf32>
    %204 = vector.extract_strided_slice %1 {offsets = [8, 1], sizes = [1, 41], strides = [1, 1]} : vector<16x49xf32> to vector<1x41xf32>
    %205 = vector.extract_strided_slice %1 {offsets = [9, 1], sizes = [1, 41], strides = [1, 1]} : vector<16x49xf32> to vector<1x41xf32>
    %206 = vector.extract_strided_slice %1 {offsets = [10, 1], sizes = [1, 41], strides = [1, 1]} : vector<16x49xf32> to vector<1x41xf32>
    %207 = vector.extract_strided_slice %1 {offsets = [11, 1], sizes = [1, 41], strides = [1, 1]} : vector<16x49xf32> to vector<1x41xf32>
    %208 = vector.extract_strided_slice %1 {offsets = [15, 0], sizes = [1, 41], strides = [1, 1]} : vector<16x49xf32> to vector<1x41xf32>
    %209 = vector.extract_strided_slice %1 {offsets = [12, 1], sizes = [1, 41], strides = [1, 1]} : vector<16x49xf32> to vector<1x41xf32>
    %210 = vector.extract_strided_slice %1 {offsets = [13, 1], sizes = [1, 41], strides = [1, 1]} : vector<16x49xf32> to vector<1x41xf32>
    %211 = vector.extract_strided_slice %1 {offsets = [14, 1], sizes = [1, 41], strides = [1, 1]} : vector<16x49xf32> to vector<1x41xf32>
    %212 = vector.extract_strided_slice %1 {offsets = [15, 1], sizes = [1, 41], strides = [1, 1]} : vector<16x49xf32> to vector<1x41xf32>
    %213 = vector.extract_strided_slice %1 {offsets = [3, 7], sizes = [1, 41], strides = [1, 1]} : vector<16x49xf32> to vector<1x41xf32>
    %214 = vector.extract_strided_slice %1 {offsets = [0, 8], sizes = [1, 41], strides = [1, 1]} : vector<16x49xf32> to vector<1x41xf32>
    %215 = vector.extract_strided_slice %1 {offsets = [1, 8], sizes = [1, 41], strides = [1, 1]} : vector<16x49xf32> to vector<1x41xf32>
    %216 = vector.extract_strided_slice %1 {offsets = [2, 8], sizes = [1, 41], strides = [1, 1]} : vector<16x49xf32> to vector<1x41xf32>
    %217 = vector.extract_strided_slice %1 {offsets = [3, 8], sizes = [1, 41], strides = [1, 1]} : vector<16x49xf32> to vector<1x41xf32>
    %218 = vector.extract_strided_slice %1 {offsets = [7, 7], sizes = [1, 41], strides = [1, 1]} : vector<16x49xf32> to vector<1x41xf32>
    %219 = vector.extract_strided_slice %1 {offsets = [4, 8], sizes = [1, 41], strides = [1, 1]} : vector<16x49xf32> to vector<1x41xf32>
    %220 = vector.extract_strided_slice %1 {offsets = [5, 8], sizes = [1, 41], strides = [1, 1]} : vector<16x49xf32> to vector<1x41xf32>
    %221 = vector.extract_strided_slice %1 {offsets = [6, 8], sizes = [1, 41], strides = [1, 1]} : vector<16x49xf32> to vector<1x41xf32>
    %222 = vector.extract_strided_slice %1 {offsets = [7, 8], sizes = [1, 41], strides = [1, 1]} : vector<16x49xf32> to vector<1x41xf32>
    %223 = tpu.concatenate %198, %199, %200, %201, %202, %203, %204, %205, %206, %207, %208, %209, %210, %211, %212, %213 in 0 : vector<1x41xf32>, vector<1x41xf32>, vector<1x41xf32>, vector<1x41xf32>, vector<1x41xf32>, vector<1x41xf32>, vector<1x41xf32>, vector<1x41xf32>, vector<1x41xf32>, vector<1x41xf32>, vector<1x41xf32>, vector<1x41xf32>, vector<1x41xf32>, vector<1x41xf32>, vector<1x41xf32>, vector<1x41xf32> -> vector<16x41xf32>
    %224 = tpu.concatenate %214, %215, %216, %217, %218, %219, %220, %221, %222 in 0 : vector<1x41xf32>, vector<1x41xf32>, vector<1x41xf32>, vector<1x41xf32>, vector<1x41xf32>, vector<1x41xf32>, vector<1x41xf32>, vector<1x41xf32>, vector<1x41xf32> -> vector<9x41xf32>
    %225 = tpu.concatenate %223, %224 in 0 : vector<16x41xf32>, vector<9x41xf32> -> vector<25x41xf32>
    %226 = vector.extract_strided_slice %1 {offsets = [8, 0], sizes = [1, 41], strides = [1, 1]} : vector<16x49xf32> to vector<1x41xf32>
    %227 = vector.extract_strided_slice %1 {offsets = [9, 0], sizes = [1, 41], strides = [1, 1]} : vector<16x49xf32> to vector<1x41xf32>
    %228 = vector.extract_strided_slice %1 {offsets = [10, 0], sizes = [1, 41], strides = [1, 1]} : vector<16x49xf32> to vector<1x41xf32>
    %229 = vector.extract_strided_slice %1 {offsets = [11, 0], sizes = [1, 41], strides = [1, 1]} : vector<16x49xf32> to vector<1x41xf32>
    %230 = vector.extract_strided_slice %1 {offsets = [8, 1], sizes = [1, 41], strides = [1, 1]} : vector<16x49xf32> to vector<1x41xf32>
    %231 = vector.extract_strided_slice %1 {offsets = [12, 0], sizes = [1, 41], strides = [1, 1]} : vector<16x49xf32> to vector<1x41xf32>
    %232 = vector.extract_strided_slice %1 {offsets = [13, 0], sizes = [1, 41], strides = [1, 1]} : vector<16x49xf32> to vector<1x41xf32>
    %233 = vector.extract_strided_slice %1 {offsets = [14, 0], sizes = [1, 41], strides = [1, 1]} : vector<16x49xf32> to vector<1x41xf32>
    %234 = vector.extract_strided_slice %1 {offsets = [15, 0], sizes = [1, 41], strides = [1, 1]} : vector<16x49xf32> to vector<1x41xf32>
    %235 = vector.extract_strided_slice %1 {offsets = [12, 1], sizes = [1, 41], strides = [1, 1]} : vector<16x49xf32> to vector<1x41xf32>
    %236 = vector.extract_strided_slice %1 {offsets = [0, 7], sizes = [1, 41], strides = [1, 1]} : vector<16x49xf32> to vector<1x41xf32>
    %237 = vector.extract_strided_slice %1 {offsets = [1, 7], sizes = [1, 41], strides = [1, 1]} : vector<16x49xf32> to vector<1x41xf32>
    %238 = vector.extract_strided_slice %1 {offsets = [2, 7], sizes = [1, 41], strides = [1, 1]} : vector<16x49xf32> to vector<1x41xf32>
    %239 = vector.extract_strided_slice %1 {offsets = [3, 7], sizes = [1, 41], strides = [1, 1]} : vector<16x49xf32> to vector<1x41xf32>
    %240 = vector.extract_strided_slice %1 {offsets = [0, 8], sizes = [1, 41], strides = [1, 1]} : vector<16x49xf32> to vector<1x41xf32>
    %241 = vector.extract_strided_slice %1 {offsets = [4, 7], sizes = [1, 41], strides = [1, 1]} : vector<16x49xf32> to vector<1x41xf32>
    %242 = vector.extract_strided_slice %1 {offsets = [5, 7], sizes = [1, 41], strides = [1, 1]} : vector<16x49xf32> to vector<1x41xf32>
    %243 = vector.extract_strided_slice %1 {offsets = [6, 7], sizes = [1, 41], strides = [1, 1]} : vector<16x49xf32> to vector<1x41xf32>
    %244 = vector.extract_strided_slice %1 {offsets = [7, 7], sizes = [1, 41], strides = [1, 1]} : vector<16x49xf32> to vector<1x41xf32>
    %245 = vector.extract_strided_slice %1 {offsets = [4, 8], sizes = [1, 41], strides = [1, 1]} : vector<16x49xf32> to vector<1x41xf32>
    %246 = vector.extract_strided_slice %1 {offsets = [8, 7], sizes = [1, 41], strides = [1, 1]} : vector<16x49xf32> to vector<1x41xf32>
    %247 = vector.extract_strided_slice %1 {offsets = [9, 7], sizes = [1, 41], strides = [1, 1]} : vector<16x49xf32> to vector<1x41xf32>
    %248 = vector.extract_strided_slice %1 {offsets = [10, 7], sizes = [1, 41], strides = [1, 1]} : vector<16x49xf32> to vector<1x41xf32>
    %249 = vector.extract_strided_slice %1 {offsets = [11, 7], sizes = [1, 41], strides = [1, 1]} : vector<16x49xf32> to vector<1x41xf32>
    %250 = vector.extract_strided_slice %1 {offsets = [8, 8], sizes = [1, 41], strides = [1, 1]} : vector<16x49xf32> to vector<1x41xf32>
    %251 = tpu.concatenate %226, %227, %228, %229, %230, %231, %232, %233, %234, %235, %236, %237, %238, %239, %240, %241 in 0 : vector<1x41xf32>, vector<1x41xf32>, vector<1x41xf32>, vector<1x41xf32>, vector<1x41xf32>, vector<1x41xf32>, vector<1x41xf32>, vector<1x41xf32>, vector<1x41xf32>, vector<1x41xf32>, vector<1x41xf32>, vector<1x41xf32>, vector<1x41xf32>, vector<1x41xf32>, vector<1x41xf32>, vector<1x41xf32> -> vector<16x41xf32>
    %252 = tpu.concatenate %242, %243, %244, %245, %246, %247, %248, %249, %250 in 0 : vector<1x41xf32>, vector<1x41xf32>, vector<1x41xf32>, vector<1x41xf32>, vector<1x41xf32>, vector<1x41xf32>, vector<1x41xf32>, vector<1x41xf32>, vector<1x41xf32> -> vector<9x41xf32>
    %253 = tpu.concatenate %251, %252 in 0 : vector<16x41xf32>, vector<9x41xf32> -> vector<25x41xf32>
    %254 = vector.extract_strided_slice %1 {offsets = [9, 0], sizes = [1, 41], strides = [1, 1]} : vector<16x49xf32> to vector<1x41xf32>
    %255 = vector.extract_strided_slice %1 {offsets = [10, 0], sizes = [1, 41], strides = [1, 1]} : vector<16x49xf32> to vector<1x41xf32>
    %256 = vector.extract_strided_slice %1 {offsets = [11, 0], sizes = [1, 41], strides = [1, 1]} : vector<16x49xf32> to vector<1x41xf32>
    %257 = vector.extract_strided_slice %1 {offsets = [8, 1], sizes = [1, 41], strides = [1, 1]} : vector<16x49xf32> to vector<1x41xf32>
    %258 = vector.extract_strided_slice %1 {offsets = [9, 1], sizes = [1, 41], strides = [1, 1]} : vector<16x49xf32> to vector<1x41xf32>
    %259 = vector.extract_strided_slice %1 {offsets = [13, 0], sizes = [1, 41], strides = [1, 1]} : vector<16x49xf32> to vector<1x41xf32>
    %260 = vector.extract_strided_slice %1 {offsets = [14, 0], sizes = [1, 41], strides = [1, 1]} : vector<16x49xf32> to vector<1x41xf32>
    %261 = vector.extract_strided_slice %1 {offsets = [15, 0], sizes = [1, 41], strides = [1, 1]} : vector<16x49xf32> to vector<1x41xf32>
    %262 = vector.extract_strided_slice %1 {offsets = [12, 1], sizes = [1, 41], strides = [1, 1]} : vector<16x49xf32> to vector<1x41xf32>
    %263 = vector.extract_strided_slice %1 {offsets = [13, 1], sizes = [1, 41], strides = [1, 1]} : vector<16x49xf32> to vector<1x41xf32>
    %264 = vector.extract_strided_slice %1 {offsets = [1, 7], sizes = [1, 41], strides = [1, 1]} : vector<16x49xf32> to vector<1x41xf32>
    %265 = vector.extract_strided_slice %1 {offsets = [2, 7], sizes = [1, 41], strides = [1, 1]} : vector<16x49xf32> to vector<1x41xf32>
    %266 = vector.extract_strided_slice %1 {offsets = [3, 7], sizes = [1, 41], strides = [1, 1]} : vector<16x49xf32> to vector<1x41xf32>
    %267 = vector.extract_strided_slice %1 {offsets = [0, 8], sizes = [1, 41], strides = [1, 1]} : vector<16x49xf32> to vector<1x41xf32>
    %268 = vector.extract_strided_slice %1 {offsets = [1, 8], sizes = [1, 41], strides = [1, 1]} : vector<16x49xf32> to vector<1x41xf32>
    %269 = vector.extract_strided_slice %1 {offsets = [5, 7], sizes = [1, 41], strides = [1, 1]} : vector<16x49xf32> to vector<1x41xf32>
    %270 = vector.extract_strided_slice %1 {offsets = [6, 7], sizes = [1, 41], strides = [1, 1]} : vector<16x49xf32> to vector<1x41xf32>
    %271 = vector.extract_strided_slice %1 {offsets = [7, 7], sizes = [1, 41], strides = [1, 1]} : vector<16x49xf32> to vector<1x41xf32>
    %272 = vector.extract_strided_slice %1 {offsets = [4, 8], sizes = [1, 41], strides = [1, 1]} : vector<16x49xf32> to vector<1x41xf32>
    %273 = vector.extract_strided_slice %1 {offsets = [5, 8], sizes = [1, 41], strides = [1, 1]} : vector<16x49xf32> to vector<1x41xf32>
    %274 = vector.extract_strided_slice %1 {offsets = [9, 7], sizes = [1, 41], strides = [1, 1]} : vector<16x49xf32> to vector<1x41xf32>
    %275 = vector.extract_strided_slice %1 {offsets = [10, 7], sizes = [1, 41], strides = [1, 1]} : vector<16x49xf32> to vector<1x41xf32>
    %276 = vector.extract_strided_slice %1 {offsets = [11, 7], sizes = [1, 41], strides = [1, 1]} : vector<16x49xf32> to vector<1x41xf32>
    %277 = vector.extract_strided_slice %1 {offsets = [8, 8], sizes = [1, 41], strides = [1, 1]} : vector<16x49xf32> to vector<1x41xf32>
    %278 = vector.extract_strided_slice %1 {offsets = [9, 8], sizes = [1, 41], strides = [1, 1]} : vector<16x49xf32> to vector<1x41xf32>
    %279 = tpu.concatenate %254, %255, %256, %257, %258, %259, %260, %261, %262, %263, %264, %265, %266, %267, %268, %269 in 0 : vector<1x41xf32>, vector<1x41xf32>, vector<1x41xf32>, vector<1x41xf32>, vector<1x41xf32>, vector<1x41xf32>, vector<1x41xf32>, vector<1x41xf32>, vector<1x41xf32>, vector<1x41xf32>, vector<1x41xf32>, vector<1x41xf32>, vector<1x41xf32>, vector<1x41xf32>, vector<1x41xf32>, vector<1x41xf32> -> vector<16x41xf32>
    %280 = tpu.concatenate %270, %271, %272, %273, %274, %275, %276, %277, %278 in 0 : vector<1x41xf32>, vector<1x41xf32>, vector<1x41xf32>, vector<1x41xf32>, vector<1x41xf32>, vector<1x41xf32>, vector<1x41xf32>, vector<1x41xf32>, vector<1x41xf32> -> vector<9x41xf32>
    %281 = tpu.concatenate %279, %280 in 0 : vector<16x41xf32>, vector<9x41xf32> -> vector<25x41xf32>
    %282 = vector.extract_strided_slice %1 {offsets = [12, 0], sizes = [1, 41], strides = [1, 1]} : vector<16x49xf32> to vector<1x41xf32>
    %283 = vector.extract_strided_slice %1 {offsets = [13, 0], sizes = [1, 41], strides = [1, 1]} : vector<16x49xf32> to vector<1x41xf32>
    %284 = vector.extract_strided_slice %1 {offsets = [14, 0], sizes = [1, 41], strides = [1, 1]} : vector<16x49xf32> to vector<1x41xf32>
    %285 = vector.extract_strided_slice %1 {offsets = [15, 0], sizes = [1, 41], strides = [1, 1]} : vector<16x49xf32> to vector<1x41xf32>
    %286 = vector.extract_strided_slice %1 {offsets = [12, 1], sizes = [1, 41], strides = [1, 1]} : vector<16x49xf32> to vector<1x41xf32>
    %287 = vector.extract_strided_slice %1 {offsets = [0, 7], sizes = [1, 41], strides = [1, 1]} : vector<16x49xf32> to vector<1x41xf32>
    %288 = vector.extract_strided_slice %1 {offsets = [1, 7], sizes = [1, 41], strides = [1, 1]} : vector<16x49xf32> to vector<1x41xf32>
    %289 = vector.extract_strided_slice %1 {offsets = [2, 7], sizes = [1, 41], strides = [1, 1]} : vector<16x49xf32> to vector<1x41xf32>
    %290 = vector.extract_strided_slice %1 {offsets = [3, 7], sizes = [1, 41], strides = [1, 1]} : vector<16x49xf32> to vector<1x41xf32>
    %291 = vector.extract_strided_slice %1 {offsets = [0, 8], sizes = [1, 41], strides = [1, 1]} : vector<16x49xf32> to vector<1x41xf32>
    %292 = vector.extract_strided_slice %1 {offsets = [4, 7], sizes = [1, 41], strides = [1, 1]} : vector<16x49xf32> to vector<1x41xf32>
    %293 = vector.extract_strided_slice %1 {offsets = [5, 7], sizes = [1, 41], strides = [1, 1]} : vector<16x49xf32> to vector<1x41xf32>
    %294 = vector.extract_strided_slice %1 {offsets = [6, 7], sizes = [1, 41], strides = [1, 1]} : vector<16x49xf32> to vector<1x41xf32>
    %295 = vector.extract_strided_slice %1 {offsets = [7, 7], sizes = [1, 41], strides = [1, 1]} : vector<16x49xf32> to vector<1x41xf32>
    %296 = vector.extract_strided_slice %1 {offsets = [4, 8], sizes = [1, 41], strides = [1, 1]} : vector<16x49xf32> to vector<1x41xf32>
    %297 = vector.extract_strided_slice %1 {offsets = [8, 7], sizes = [1, 41], strides = [1, 1]} : vector<16x49xf32> to vector<1x41xf32>
    %298 = vector.extract_strided_slice %1 {offsets = [9, 7], sizes = [1, 41], strides = [1, 1]} : vector<16x49xf32> to vector<1x41xf32>
    %299 = vector.extract_strided_slice %1 {offsets = [10, 7], sizes = [1, 41], strides = [1, 1]} : vector<16x49xf32> to vector<1x41xf32>
    %300 = vector.extract_strided_slice %1 {offsets = [11, 7], sizes = [1, 41], strides = [1, 1]} : vector<16x49xf32> to vector<1x41xf32>
    %301 = vector.extract_strided_slice %1 {offsets = [8, 8], sizes = [1, 41], strides = [1, 1]} : vector<16x49xf32> to vector<1x41xf32>
    %302 = vector.extract_strided_slice %1 {offsets = [12, 7], sizes = [1, 41], strides = [1, 1]} : vector<16x49xf32> to vector<1x41xf32>
    %303 = vector.extract_strided_slice %1 {offsets = [13, 7], sizes = [1, 41], strides = [1, 1]} : vector<16x49xf32> to vector<1x41xf32>
    %304 = vector.extract_strided_slice %1 {offsets = [14, 7], sizes = [1, 41], strides = [1, 1]} : vector<16x49xf32> to vector<1x41xf32>
    %305 = vector.extract_strided_slice %1 {offsets = [15, 7], sizes = [1, 41], strides = [1, 1]} : vector<16x49xf32> to vector<1x41xf32>
    %306 = vector.extract_strided_slice %1 {offsets = [12, 8], sizes = [1, 41], strides = [1, 1]} : vector<16x49xf32> to vector<1x41xf32>
    %307 = tpu.concatenate %282, %283, %284, %285, %286, %287, %288, %289, %290, %291, %292, %293, %294, %295, %296, %297 in 0 : vector<1x41xf32>, vector<1x41xf32>, vector<1x41xf32>, vector<1x41xf32>, vector<1x41xf32>, vector<1x41xf32>, vector<1x41xf32>, vector<1x41xf32>, vector<1x41xf32>, vector<1x41xf32>, vector<1x41xf32>, vector<1x41xf32>, vector<1x41xf32>, vector<1x41xf32>, vector<1x41xf32>, vector<1x41xf32> -> vector<16x41xf32>
    %308 = tpu.concatenate %298, %299, %300, %301, %302, %303, %304, %305, %306 in 0 : vector<1x41xf32>, vector<1x41xf32>, vector<1x41xf32>, vector<1x41xf32>, vector<1x41xf32>, vector<1x41xf32>, vector<1x41xf32>, vector<1x41xf32>, vector<1x41xf32> -> vector<9x41xf32>
    %309 = tpu.concatenate %307, %308 in 0 : vector<16x41xf32>, vector<9x41xf32> -> vector<25x41xf32>
    %310 = vector.extract_strided_slice %1 {offsets = [13, 0], sizes = [1, 41], strides = [1, 1]} : vector<16x49xf32> to vector<1x41xf32>
    %311 = vector.extract_strided_slice %1 {offsets = [14, 0], sizes = [1, 41], strides = [1, 1]} : vector<16x49xf32> to vector<1x41xf32>
    %312 = vector.extract_strided_slice %1 {offsets = [15, 0], sizes = [1, 41], strides = [1, 1]} : vector<16x49xf32> to vector<1x41xf32>
    %313 = vector.extract_strided_slice %1 {offsets = [12, 1], sizes = [1, 41], strides = [1, 1]} : vector<16x49xf32> to vector<1x41xf32>
    %314 = vector.extract_strided_slice %1 {offsets = [13, 1], sizes = [1, 41], strides = [1, 1]} : vector<16x49xf32> to vector<1x41xf32>
    %315 = vector.extract_strided_slice %1 {offsets = [1, 7], sizes = [1, 41], strides = [1, 1]} : vector<16x49xf32> to vector<1x41xf32>
    %316 = vector.extract_strided_slice %1 {offsets = [2, 7], sizes = [1, 41], strides = [1, 1]} : vector<16x49xf32> to vector<1x41xf32>
    %317 = vector.extract_strided_slice %1 {offsets = [3, 7], sizes = [1, 41], strides = [1, 1]} : vector<16x49xf32> to vector<1x41xf32>
    %318 = vector.extract_strided_slice %1 {offsets = [0, 8], sizes = [1, 41], strides = [1, 1]} : vector<16x49xf32> to vector<1x41xf32>
    %319 = vector.extract_strided_slice %1 {offsets = [1, 8], sizes = [1, 41], strides = [1, 1]} : vector<16x49xf32> to vector<1x41xf32>
    %320 = vector.extract_strided_slice %1 {offsets = [5, 7], sizes = [1, 41], strides = [1, 1]} : vector<16x49xf32> to vector<1x41xf32>
    %321 = vector.extract_strided_slice %1 {offsets = [6, 7], sizes = [1, 41], strides = [1, 1]} : vector<16x49xf32> to vector<1x41xf32>
    %322 = vector.extract_strided_slice %1 {offsets = [7, 7], sizes = [1, 41], strides = [1, 1]} : vector<16x49xf32> to vector<1x41xf32>
    %323 = vector.extract_strided_slice %1 {offsets = [4, 8], sizes = [1, 41], strides = [1, 1]} : vector<16x49xf32> to vector<1x41xf32>
    %324 = vector.extract_strided_slice %1 {offsets = [5, 8], sizes = [1, 41], strides = [1, 1]} : vector<16x49xf32> to vector<1x41xf32>
    %325 = vector.extract_strided_slice %1 {offsets = [9, 7], sizes = [1, 41], strides = [1, 1]} : vector<16x49xf32> to vector<1x41xf32>
    %326 = vector.extract_strided_slice %1 {offsets = [10, 7], sizes = [1, 41], strides = [1, 1]} : vector<16x49xf32> to vector<1x41xf32>
    %327 = vector.extract_strided_slice %1 {offsets = [11, 7], sizes = [1, 41], strides = [1, 1]} : vector<16x49xf32> to vector<1x41xf32>
    %328 = vector.extract_strided_slice %1 {offsets = [8, 8], sizes = [1, 41], strides = [1, 1]} : vector<16x49xf32> to vector<1x41xf32>
    %329 = vector.extract_strided_slice %1 {offsets = [9, 8], sizes = [1, 41], strides = [1, 1]} : vector<16x49xf32> to vector<1x41xf32>
    %330 = vector.extract_strided_slice %1 {offsets = [13, 7], sizes = [1, 41], strides = [1, 1]} : vector<16x49xf32> to vector<1x41xf32>
    %331 = vector.extract_strided_slice %1 {offsets = [14, 7], sizes = [1, 41], strides = [1, 1]} : vector<16x49xf32> to vector<1x41xf32>
    %332 = vector.extract_strided_slice %1 {offsets = [15, 7], sizes = [1, 41], strides = [1, 1]} : vector<16x49xf32> to vector<1x41xf32>
    %333 = vector.extract_strided_slice %1 {offsets = [12, 8], sizes = [1, 41], strides = [1, 1]} : vector<16x49xf32> to vector<1x41xf32>
    %334 = vector.extract_strided_slice %1 {offsets = [13, 8], sizes = [1, 41], strides = [1, 1]} : vector<16x49xf32> to vector<1x41xf32>
    %335 = tpu.concatenate %310, %311, %312, %313, %314, %315, %316, %317, %318, %319, %320, %321, %322, %323, %324, %325 in 0 : vector<1x41xf32>, vector<1x41xf32>, vector<1x41xf32>, vector<1x41xf32>, vector<1x41xf32>, vector<1x41xf32>, vector<1x41xf32>, vector<1x41xf32>, vector<1x41xf32>, vector<1x41xf32>, vector<1x41xf32>, vector<1x41xf32>, vector<1x41xf32>, vector<1x41xf32>, vector<1x41xf32>, vector<1x41xf32> -> vector<16x41xf32>
    %336 = tpu.concatenate %326, %327, %328, %329, %330, %331, %332, %333, %334 in 0 : vector<1x41xf32>, vector<1x41xf32>, vector<1x41xf32>, vector<1x41xf32>, vector<1x41xf32>, vector<1x41xf32>, vector<1x41xf32>, vector<1x41xf32>, vector<1x41xf32> -> vector<9x41xf32>
    %337 = tpu.concatenate %335, %336 in 0 : vector<16x41xf32>, vector<9x41xf32> -> vector<25x41xf32>
    %338 = vector.extract_strided_slice %1 {offsets = [10, 0], sizes = [1, 41], strides = [1, 1]} : vector<16x49xf32> to vector<1x41xf32>
    %339 = vector.extract_strided_slice %1 {offsets = [11, 0], sizes = [1, 41], strides = [1, 1]} : vector<16x49xf32> to vector<1x41xf32>
    %340 = vector.extract_strided_slice %1 {offsets = [8, 1], sizes = [1, 41], strides = [1, 1]} : vector<16x49xf32> to vector<1x41xf32>
    %341 = vector.extract_strided_slice %1 {offsets = [9, 1], sizes = [1, 41], strides = [1, 1]} : vector<16x49xf32> to vector<1x41xf32>
    %342 = vector.extract_strided_slice %1 {offsets = [10, 1], sizes = [1, 41], strides = [1, 1]} : vector<16x49xf32> to vector<1x41xf32>
    %343 = vector.extract_strided_slice %1 {offsets = [14, 0], sizes = [1, 41], strides = [1, 1]} : vector<16x49xf32> to vector<1x41xf32>
    %344 = vector.extract_strided_slice %1 {offsets = [15, 0], sizes = [1, 41], strides = [1, 1]} : vector<16x49xf32> to vector<1x41xf32>
    %345 = vector.extract_strided_slice %1 {offsets = [12, 1], sizes = [1, 41], strides = [1, 1]} : vector<16x49xf32> to vector<1x41xf32>
    %346 = vector.extract_strided_slice %1 {offsets = [13, 1], sizes = [1, 41], strides = [1, 1]} : vector<16x49xf32> to vector<1x41xf32>
    %347 = vector.extract_strided_slice %1 {offsets = [14, 1], sizes = [1, 41], strides = [1, 1]} : vector<16x49xf32> to vector<1x41xf32>
    %348 = vector.extract_strided_slice %1 {offsets = [2, 7], sizes = [1, 41], strides = [1, 1]} : vector<16x49xf32> to vector<1x41xf32>
    %349 = vector.extract_strided_slice %1 {offsets = [3, 7], sizes = [1, 41], strides = [1, 1]} : vector<16x49xf32> to vector<1x41xf32>
    %350 = vector.extract_strided_slice %1 {offsets = [0, 8], sizes = [1, 41], strides = [1, 1]} : vector<16x49xf32> to vector<1x41xf32>
    %351 = vector.extract_strided_slice %1 {offsets = [1, 8], sizes = [1, 41], strides = [1, 1]} : vector<16x49xf32> to vector<1x41xf32>
    %352 = vector.extract_strided_slice %1 {offsets = [2, 8], sizes = [1, 41], strides = [1, 1]} : vector<16x49xf32> to vector<1x41xf32>
    %353 = vector.extract_strided_slice %1 {offsets = [6, 7], sizes = [1, 41], strides = [1, 1]} : vector<16x49xf32> to vector<1x41xf32>
    %354 = vector.extract_strided_slice %1 {offsets = [7, 7], sizes = [1, 41], strides = [1, 1]} : vector<16x49xf32> to vector<1x41xf32>
    %355 = vector.extract_strided_slice %1 {offsets = [4, 8], sizes = [1, 41], strides = [1, 1]} : vector<16x49xf32> to vector<1x41xf32>
    %356 = vector.extract_strided_slice %1 {offsets = [5, 8], sizes = [1, 41], strides = [1, 1]} : vector<16x49xf32> to vector<1x41xf32>
    %357 = vector.extract_strided_slice %1 {offsets = [6, 8], sizes = [1, 41], strides = [1, 1]} : vector<16x49xf32> to vector<1x41xf32>
    %358 = vector.extract_strided_slice %1 {offsets = [10, 7], sizes = [1, 41], strides = [1, 1]} : vector<16x49xf32> to vector<1x41xf32>
    %359 = vector.extract_strided_slice %1 {offsets = [11, 7], sizes = [1, 41], strides = [1, 1]} : vector<16x49xf32> to vector<1x41xf32>
    %360 = vector.extract_strided_slice %1 {offsets = [8, 8], sizes = [1, 41], strides = [1, 1]} : vector<16x49xf32> to vector<1x41xf32>
    %361 = vector.extract_strided_slice %1 {offsets = [9, 8], sizes = [1, 41], strides = [1, 1]} : vector<16x49xf32> to vector<1x41xf32>
    %362 = vector.extract_strided_slice %1 {offsets = [10, 8], sizes = [1, 41], strides = [1, 1]} : vector<16x49xf32> to vector<1x41xf32>
    %363 = tpu.concatenate %338, %339, %340, %341, %342, %343, %344, %345, %346, %347, %348, %349, %350, %351, %352, %353 in 0 : vector<1x41xf32>, vector<1x41xf32>, vector<1x41xf32>, vector<1x41xf32>, vector<1x41xf32>, vector<1x41xf32>, vector<1x41xf32>, vector<1x41xf32>, vector<1x41xf32>, vector<1x41xf32>, vector<1x41xf32>, vector<1x41xf32>, vector<1x41xf32>, vector<1x41xf32>, vector<1x41xf32>, vector<1x41xf32> -> vector<16x41xf32>
    %364 = tpu.concatenate %354, %355, %356, %357, %358, %359, %360, %361, %362 in 0 : vector<1x41xf32>, vector<1x41xf32>, vector<1x41xf32>, vector<1x41xf32>, vector<1x41xf32>, vector<1x41xf32>, vector<1x41xf32>, vector<1x41xf32>, vector<1x41xf32> -> vector<9x41xf32>
    %365 = tpu.concatenate %363, %364 in 0 : vector<16x41xf32>, vector<9x41xf32> -> vector<25x41xf32>
    %366 = vector.extract_strided_slice %1 {offsets = [11, 0], sizes = [1, 41], strides = [1, 1]} : vector<16x49xf32> to vector<1x41xf32>
    %367 = vector.extract_strided_slice %1 {offsets = [8, 1], sizes = [1, 41], strides = [1, 1]} : vector<16x49xf32> to vector<1x41xf32>
    %368 = vector.extract_strided_slice %1 {offsets = [9, 1], sizes = [1, 41], strides = [1, 1]} : vector<16x49xf32> to vector<1x41xf32>
    %369 = vector.extract_strided_slice %1 {offsets = [10, 1], sizes = [1, 41], strides = [1, 1]} : vector<16x49xf32> to vector<1x41xf32>
    %370 = vector.extract_strided_slice %1 {offsets = [11, 1], sizes = [1, 41], strides = [1, 1]} : vector<16x49xf32> to vector<1x41xf32>
    %371 = vector.extract_strided_slice %1 {offsets = [15, 0], sizes = [1, 41], strides = [1, 1]} : vector<16x49xf32> to vector<1x41xf32>
    %372 = vector.extract_strided_slice %1 {offsets = [12, 1], sizes = [1, 41], strides = [1, 1]} : vector<16x49xf32> to vector<1x41xf32>
    %373 = vector.extract_strided_slice %1 {offsets = [13, 1], sizes = [1, 41], strides = [1, 1]} : vector<16x49xf32> to vector<1x41xf32>
    %374 = vector.extract_strided_slice %1 {offsets = [14, 1], sizes = [1, 41], strides = [1, 1]} : vector<16x49xf32> to vector<1x41xf32>
    %375 = vector.extract_strided_slice %1 {offsets = [15, 1], sizes = [1, 41], strides = [1, 1]} : vector<16x49xf32> to vector<1x41xf32>
    %376 = vector.extract_strided_slice %1 {offsets = [3, 7], sizes = [1, 41], strides = [1, 1]} : vector<16x49xf32> to vector<1x41xf32>
    %377 = vector.extract_strided_slice %1 {offsets = [0, 8], sizes = [1, 41], strides = [1, 1]} : vector<16x49xf32> to vector<1x41xf32>
    %378 = vector.extract_strided_slice %1 {offsets = [1, 8], sizes = [1, 41], strides = [1, 1]} : vector<16x49xf32> to vector<1x41xf32>
    %379 = vector.extract_strided_slice %1 {offsets = [2, 8], sizes = [1, 41], strides = [1, 1]} : vector<16x49xf32> to vector<1x41xf32>
    %380 = vector.extract_strided_slice %1 {offsets = [3, 8], sizes = [1, 41], strides = [1, 1]} : vector<16x49xf32> to vector<1x41xf32>
    %381 = vector.extract_strided_slice %1 {offsets = [7, 7], sizes = [1, 41], strides = [1, 1]} : vector<16x49xf32> to vector<1x41xf32>
    %382 = vector.extract_strided_slice %1 {offsets = [4, 8], sizes = [1, 41], strides = [1, 1]} : vector<16x49xf32> to vector<1x41xf32>
    %383 = vector.extract_strided_slice %1 {offsets = [5, 8], sizes = [1, 41], strides = [1, 1]} : vector<16x49xf32> to vector<1x41xf32>
    %384 = vector.extract_strided_slice %1 {offsets = [6, 8], sizes = [1, 41], strides = [1, 1]} : vector<16x49xf32> to vector<1x41xf32>
    %385 = vector.extract_strided_slice %1 {offsets = [7, 8], sizes = [1, 41], strides = [1, 1]} : vector<16x49xf32> to vector<1x41xf32>
    %386 = vector.extract_strided_slice %1 {offsets = [11, 7], sizes = [1, 41], strides = [1, 1]} : vector<16x49xf32> to vector<1x41xf32>
    %387 = vector.extract_strided_slice %1 {offsets = [8, 8], sizes = [1, 41], strides = [1, 1]} : vector<16x49xf32> to vector<1x41xf32>
    %388 = vector.extract_strided_slice %1 {offsets = [9, 8], sizes = [1, 41], strides = [1, 1]} : vector<16x49xf32> to vector<1x41xf32>
    %389 = vector.extract_strided_slice %1 {offsets = [10, 8], sizes = [1, 41], strides = [1, 1]} : vector<16x49xf32> to vector<1x41xf32>
    %390 = vector.extract_strided_slice %1 {offsets = [11, 8], sizes = [1, 41], strides = [1, 1]} : vector<16x49xf32> to vector<1x41xf32>
    %391 = tpu.concatenate %366, %367, %368, %369, %370, %371, %372, %373, %374, %375, %376, %377, %378, %379, %380, %381 in 0 : vector<1x41xf32>, vector<1x41xf32>, vector<1x41xf32>, vector<1x41xf32>, vector<1x41xf32>, vector<1x41xf32>, vector<1x41xf32>, vector<1x41xf32>, vector<1x41xf32>, vector<1x41xf32>, vector<1x41xf32>, vector<1x41xf32>, vector<1x41xf32>, vector<1x41xf32>, vector<1x41xf32>, vector<1x41xf32> -> vector<16x41xf32>
    %392 = tpu.concatenate %382, %383, %384, %385, %386, %387, %388, %389, %390 in 0 : vector<1x41xf32>, vector<1x41xf32>, vector<1x41xf32>, vector<1x41xf32>, vector<1x41xf32>, vector<1x41xf32>, vector<1x41xf32>, vector<1x41xf32>, vector<1x41xf32> -> vector<9x41xf32>
    %393 = tpu.concatenate %391, %392 in 0 : vector<16x41xf32>, vector<9x41xf32> -> vector<25x41xf32>
    %394 = vector.extract_strided_slice %1 {offsets = [14, 0], sizes = [1, 41], strides = [1, 1]} : vector<16x49xf32> to vector<1x41xf32>
    %395 = vector.extract_strided_slice %1 {offsets = [15, 0], sizes = [1, 41], strides = [1, 1]} : vector<16x49xf32> to vector<1x41xf32>
    %396 = vector.extract_strided_slice %1 {offsets = [12, 1], sizes = [1, 41], strides = [1, 1]} : vector<16x49xf32> to vector<1x41xf32>
    %397 = vector.extract_strided_slice %1 {offsets = [13, 1], sizes = [1, 41], strides = [1, 1]} : vector<16x49xf32> to vector<1x41xf32>
    %398 = vector.extract_strided_slice %1 {offsets = [14, 1], sizes = [1, 41], strides = [1, 1]} : vector<16x49xf32> to vector<1x41xf32>
    %399 = vector.extract_strided_slice %1 {offsets = [2, 7], sizes = [1, 41], strides = [1, 1]} : vector<16x49xf32> to vector<1x41xf32>
    %400 = vector.extract_strided_slice %1 {offsets = [3, 7], sizes = [1, 41], strides = [1, 1]} : vector<16x49xf32> to vector<1x41xf32>
    %401 = vector.extract_strided_slice %1 {offsets = [0, 8], sizes = [1, 41], strides = [1, 1]} : vector<16x49xf32> to vector<1x41xf32>
    %402 = vector.extract_strided_slice %1 {offsets = [1, 8], sizes = [1, 41], strides = [1, 1]} : vector<16x49xf32> to vector<1x41xf32>
    %403 = vector.extract_strided_slice %1 {offsets = [2, 8], sizes = [1, 41], strides = [1, 1]} : vector<16x49xf32> to vector<1x41xf32>
    %404 = vector.extract_strided_slice %1 {offsets = [6, 7], sizes = [1, 41], strides = [1, 1]} : vector<16x49xf32> to vector<1x41xf32>
    %405 = vector.extract_strided_slice %1 {offsets = [7, 7], sizes = [1, 41], strides = [1, 1]} : vector<16x49xf32> to vector<1x41xf32>
    %406 = vector.extract_strided_slice %1 {offsets = [4, 8], sizes = [1, 41], strides = [1, 1]} : vector<16x49xf32> to vector<1x41xf32>
    %407 = vector.extract_strided_slice %1 {offsets = [5, 8], sizes = [1, 41], strides = [1, 1]} : vector<16x49xf32> to vector<1x41xf32>
    %408 = vector.extract_strided_slice %1 {offsets = [6, 8], sizes = [1, 41], strides = [1, 1]} : vector<16x49xf32> to vector<1x41xf32>
    %409 = vector.extract_strided_slice %1 {offsets = [10, 7], sizes = [1, 41], strides = [1, 1]} : vector<16x49xf32> to vector<1x41xf32>
    %410 = vector.extract_strided_slice %1 {offsets = [11, 7], sizes = [1, 41], strides = [1, 1]} : vector<16x49xf32> to vector<1x41xf32>
    %411 = vector.extract_strided_slice %1 {offsets = [8, 8], sizes = [1, 41], strides = [1, 1]} : vector<16x49xf32> to vector<1x41xf32>
    %412 = vector.extract_strided_slice %1 {offsets = [9, 8], sizes = [1, 41], strides = [1, 1]} : vector<16x49xf32> to vector<1x41xf32>
    %413 = vector.extract_strided_slice %1 {offsets = [10, 8], sizes = [1, 41], strides = [1, 1]} : vector<16x49xf32> to vector<1x41xf32>
    %414 = vector.extract_strided_slice %1 {offsets = [14, 7], sizes = [1, 41], strides = [1, 1]} : vector<16x49xf32> to vector<1x41xf32>
    %415 = vector.extract_strided_slice %1 {offsets = [15, 7], sizes = [1, 41], strides = [1, 1]} : vector<16x49xf32> to vector<1x41xf32>
    %416 = vector.extract_strided_slice %1 {offsets = [12, 8], sizes = [1, 41], strides = [1, 1]} : vector<16x49xf32> to vector<1x41xf32>
    %417 = vector.extract_strided_slice %1 {offsets = [13, 8], sizes = [1, 41], strides = [1, 1]} : vector<16x49xf32> to vector<1x41xf32>
    %418 = vector.extract_strided_slice %1 {offsets = [14, 8], sizes = [1, 41], strides = [1, 1]} : vector<16x49xf32> to vector<1x41xf32>
    %419 = tpu.concatenate %394, %395, %396, %397, %398, %399, %400, %401, %402, %403, %404, %405, %406, %407, %408, %409 in 0 : vector<1x41xf32>, vector<1x41xf32>, vector<1x41xf32>, vector<1x41xf32>, vector<1x41xf32>, vector<1x41xf32>, vector<1x41xf32>, vector<1x41xf32>, vector<1x41xf32>, vector<1x41xf32>, vector<1x41xf32>, vector<1x41xf32>, vector<1x41xf32>, vector<1x41xf32>, vector<1x41xf32>, vector<1x41xf32> -> vector<16x41xf32>
    %420 = tpu.concatenate %410, %411, %412, %413, %414, %415, %416, %417, %418 in 0 : vector<1x41xf32>, vector<1x41xf32>, vector<1x41xf32>, vector<1x41xf32>, vector<1x41xf32>, vector<1x41xf32>, vector<1x41xf32>, vector<1x41xf32>, vector<1x41xf32> -> vector<9x41xf32>
    %421 = tpu.concatenate %419, %420 in 0 : vector<16x41xf32>, vector<9x41xf32> -> vector<25x41xf32>
    %422 = vector.extract_strided_slice %1 {offsets = [15, 0], sizes = [1, 41], strides = [1, 1]} : vector<16x49xf32> to vector<1x41xf32>
    %423 = vector.extract_strided_slice %1 {offsets = [12, 1], sizes = [1, 41], strides = [1, 1]} : vector<16x49xf32> to vector<1x41xf32>
    %424 = vector.extract_strided_slice %1 {offsets = [13, 1], sizes = [1, 41], strides = [1, 1]} : vector<16x49xf32> to vector<1x41xf32>
    %425 = vector.extract_strided_slice %1 {offsets = [14, 1], sizes = [1, 41], strides = [1, 1]} : vector<16x49xf32> to vector<1x41xf32>
    %426 = vector.extract_strided_slice %1 {offsets = [15, 1], sizes = [1, 41], strides = [1, 1]} : vector<16x49xf32> to vector<1x41xf32>
    %427 = vector.extract_strided_slice %1 {offsets = [3, 7], sizes = [1, 41], strides = [1, 1]} : vector<16x49xf32> to vector<1x41xf32>
    %428 = vector.extract_strided_slice %1 {offsets = [0, 8], sizes = [1, 41], strides = [1, 1]} : vector<16x49xf32> to vector<1x41xf32>
    %429 = vector.extract_strided_slice %1 {offsets = [1, 8], sizes = [1, 41], strides = [1, 1]} : vector<16x49xf32> to vector<1x41xf32>
    %430 = vector.extract_strided_slice %1 {offsets = [2, 8], sizes = [1, 41], strides = [1, 1]} : vector<16x49xf32> to vector<1x41xf32>
    %431 = vector.extract_strided_slice %1 {offsets = [3, 8], sizes = [1, 41], strides = [1, 1]} : vector<16x49xf32> to vector<1x41xf32>
    %432 = vector.extract_strided_slice %1 {offsets = [7, 7], sizes = [1, 41], strides = [1, 1]} : vector<16x49xf32> to vector<1x41xf32>
    %433 = vector.extract_strided_slice %1 {offsets = [4, 8], sizes = [1, 41], strides = [1, 1]} : vector<16x49xf32> to vector<1x41xf32>
    %434 = vector.extract_strided_slice %1 {offsets = [5, 8], sizes = [1, 41], strides = [1, 1]} : vector<16x49xf32> to vector<1x41xf32>
    %435 = vector.extract_strided_slice %1 {offsets = [6, 8], sizes = [1, 41], strides = [1, 1]} : vector<16x49xf32> to vector<1x41xf32>
    %436 = vector.extract_strided_slice %1 {offsets = [7, 8], sizes = [1, 41], strides = [1, 1]} : vector<16x49xf32> to vector<1x41xf32>
    %437 = vector.extract_strided_slice %1 {offsets = [11, 7], sizes = [1, 41], strides = [1, 1]} : vector<16x49xf32> to vector<1x41xf32>
    %438 = vector.extract_strided_slice %1 {offsets = [8, 8], sizes = [1, 41], strides = [1, 1]} : vector<16x49xf32> to vector<1x41xf32>
    %439 = vector.extract_strided_slice %1 {offsets = [9, 8], sizes = [1, 41], strides = [1, 1]} : vector<16x49xf32> to vector<1x41xf32>
    %440 = vector.extract_strided_slice %1 {offsets = [10, 8], sizes = [1, 41], strides = [1, 1]} : vector<16x49xf32> to vector<1x41xf32>
    %441 = vector.extract_strided_slice %1 {offsets = [11, 8], sizes = [1, 41], strides = [1, 1]} : vector<16x49xf32> to vector<1x41xf32>
    %442 = vector.extract_strided_slice %1 {offsets = [15, 7], sizes = [1, 41], strides = [1, 1]} : vector<16x49xf32> to vector<1x41xf32>
    %443 = vector.extract_strided_slice %1 {offsets = [12, 8], sizes = [1, 41], strides = [1, 1]} : vector<16x49xf32> to vector<1x41xf32>
    %444 = vector.extract_strided_slice %1 {offsets = [13, 8], sizes = [1, 41], strides = [1, 1]} : vector<16x49xf32> to vector<1x41xf32>
    %445 = vector.extract_strided_slice %1 {offsets = [14, 8], sizes = [1, 41], strides = [1, 1]} : vector<16x49xf32> to vector<1x41xf32>
    %446 = vector.extract_strided_slice %1 {offsets = [15, 8], sizes = [1, 41], strides = [1, 1]} : vector<16x49xf32> to vector<1x41xf32>
    %447 = tpu.concatenate %422, %423, %424, %425, %426, %427, %428, %429, %430, %431, %432, %433, %434, %435, %436, %437 in 0 : vector<1x41xf32>, vector<1x41xf32>, vector<1x41xf32>, vector<1x41xf32>, vector<1x41xf32>, vector<1x41xf32>, vector<1x41xf32>, vector<1x41xf32>, vector<1x41xf32>, vector<1x41xf32>, vector<1x41xf32>, vector<1x41xf32>, vector<1x41xf32>, vector<1x41xf32>, vector<1x41xf32>, vector<1x41xf32> -> vector<16x41xf32>
    %448 = tpu.concatenate %438, %439, %440, %441, %442, %443, %444, %445, %446 in 0 : vector<1x41xf32>, vector<1x41xf32>, vector<1x41xf32>, vector<1x41xf32>, vector<1x41xf32>, vector<1x41xf32>, vector<1x41xf32>, vector<1x41xf32>, vector<1x41xf32> -> vector<9x41xf32>
    %449 = tpu.concatenate %447, %448 in 0 : vector<16x41xf32>, vector<9x41xf32> -> vector<25x41xf32>
    %450 = tpu.concatenate %29, %57, %85, %113, %141, %169, %197, %225, %253, %281, %309, %337, %365, %393, %421, %449 in 1 : vector<25x41xf32>, vector<25x41xf32>, vector<25x41xf32>, vector<25x41xf32>, vector<25x41xf32>, vector<25x41xf32>, vector<25x41xf32>, vector<25x41xf32>, vector<25x41xf32>, vector<25x41xf32>, vector<25x41xf32>, vector<25x41xf32>, vector<25x41xf32>, vector<25x41xf32>, vector<25x41xf32>, vector<25x41xf32> -> vector<25x656xf32>
    %451 = arith.truncf %450 : vector<25x656xf32> to vector<25x656xbf16>
    %c0_2 = arith.constant 0 : index
    %c0_3 = arith.constant 0 : index
    %452 = vector.load %arg2[%c0_2, %c0_3] : memref<8x25xbf16, #tpu.memory_space<vmem>>, vector<8x25xbf16>
    %cst = arith.constant dense<0.000000e+00> : vector<8x656xf32>
    %453 = tpu.matmul %452, %451, %cst {dimension_numbers = #tpu.dot_dimension_numbers<[1], [0], [0], [1], [0, 0, 1, 1], [], []>} : vector<8x25xbf16>, vector<25x656xbf16>, vector<8x656xf32> -> vector<8x656xf32>
    %454 = vector.extract_strided_slice %453 {offsets = [0, 0], sizes = [8, 41], strides = [1, 1]} : vector<8x656xf32> to vector<8x41xf32>
    %455 = vector.extract_strided_slice %453 {offsets = [0, 41], sizes = [8, 41], strides = [1, 1]} : vector<8x656xf32> to vector<8x41xf32>
    %456 = vector.extract_strided_slice %453 {offsets = [0, 82], sizes = [8, 41], strides = [1, 1]} : vector<8x656xf32> to vector<8x41xf32>
    %457 = vector.extract_strided_slice %453 {offsets = [0, 123], sizes = [8, 41], strides = [1, 1]} : vector<8x656xf32> to vector<8x41xf32>
    %458 = arith.maximumf %454, %455 : vector<8x41xf32>
    %459 = arith.maximumf %456, %457 : vector<8x41xf32>
    %460 = arith.maximumf %458, %459 : vector<8x41xf32>
    %c0_4 = arith.constant 0 : index
    %c0_5 = arith.constant 0 : index
    %461 = vector.load %arg3[%c0_4, %c0_5] : memref<8x1xf32, #tpu.memory_space<vmem>>, vector<8x1xf32>
    %462 = vector.broadcast %461 : vector<8x1xf32> to vector<8x41xf32>
    %463 = arith.addf %460, %462 : vector<8x41xf32>
    %cst_6 = arith.constant 0.000000e+00 : f32
    %464 = vector.broadcast %cst_6 : f32 to vector<8x41xf32>
    %465 = arith.maximumf %463, %464 : vector<8x41xf32>
    %466 = vector.extract_strided_slice %453 {offsets = [0, 164], sizes = [8, 41], strides = [1, 1]} : vector<8x656xf32> to vector<8x41xf32>
    %467 = vector.extract_strided_slice %453 {offsets = [0, 205], sizes = [8, 41], strides = [1, 1]} : vector<8x656xf32> to vector<8x41xf32>
    %468 = vector.extract_strided_slice %453 {offsets = [0, 246], sizes = [8, 41], strides = [1, 1]} : vector<8x656xf32> to vector<8x41xf32>
    %469 = vector.extract_strided_slice %453 {offsets = [0, 287], sizes = [8, 41], strides = [1, 1]} : vector<8x656xf32> to vector<8x41xf32>
    %470 = arith.maximumf %466, %467 : vector<8x41xf32>
    %471 = arith.maximumf %468, %469 : vector<8x41xf32>
    %472 = arith.maximumf %470, %471 : vector<8x41xf32>
    %c0_7 = arith.constant 0 : index
    %c0_8 = arith.constant 0 : index
    %473 = vector.load %arg3[%c0_7, %c0_8] : memref<8x1xf32, #tpu.memory_space<vmem>>, vector<8x1xf32>
    %474 = vector.broadcast %473 : vector<8x1xf32> to vector<8x41xf32>
    %475 = arith.addf %472, %474 : vector<8x41xf32>
    %cst_9 = arith.constant 0.000000e+00 : f32
    %476 = vector.broadcast %cst_9 : f32 to vector<8x41xf32>
    %477 = arith.maximumf %475, %476 : vector<8x41xf32>
    %478 = vector.extract_strided_slice %453 {offsets = [0, 328], sizes = [8, 41], strides = [1, 1]} : vector<8x656xf32> to vector<8x41xf32>
    %479 = vector.extract_strided_slice %453 {offsets = [0, 369], sizes = [8, 41], strides = [1, 1]} : vector<8x656xf32> to vector<8x41xf32>
    %480 = vector.extract_strided_slice %453 {offsets = [0, 410], sizes = [8, 41], strides = [1, 1]} : vector<8x656xf32> to vector<8x41xf32>
    %481 = vector.extract_strided_slice %453 {offsets = [0, 451], sizes = [8, 41], strides = [1, 1]} : vector<8x656xf32> to vector<8x41xf32>
    %482 = arith.maximumf %478, %479 : vector<8x41xf32>
    %483 = arith.maximumf %480, %481 : vector<8x41xf32>
    %484 = arith.maximumf %482, %483 : vector<8x41xf32>
    %c0_10 = arith.constant 0 : index
    %c0_11 = arith.constant 0 : index
    %485 = vector.load %arg3[%c0_10, %c0_11] : memref<8x1xf32, #tpu.memory_space<vmem>>, vector<8x1xf32>
    %486 = vector.broadcast %485 : vector<8x1xf32> to vector<8x41xf32>
    %487 = arith.addf %484, %486 : vector<8x41xf32>
    %cst_12 = arith.constant 0.000000e+00 : f32
    %488 = vector.broadcast %cst_12 : f32 to vector<8x41xf32>
    %489 = arith.maximumf %487, %488 : vector<8x41xf32>
    %490 = vector.extract_strided_slice %453 {offsets = [0, 492], sizes = [8, 41], strides = [1, 1]} : vector<8x656xf32> to vector<8x41xf32>
    %491 = vector.extract_strided_slice %453 {offsets = [0, 533], sizes = [8, 41], strides = [1, 1]} : vector<8x656xf32> to vector<8x41xf32>
    %492 = vector.extract_strided_slice %453 {offsets = [0, 574], sizes = [8, 41], strides = [1, 1]} : vector<8x656xf32> to vector<8x41xf32>
    %493 = vector.extract_strided_slice %453 {offsets = [0, 615], sizes = [8, 41], strides = [1, 1]} : vector<8x656xf32> to vector<8x41xf32>
    %494 = arith.maximumf %490, %491 : vector<8x41xf32>
    %495 = arith.maximumf %492, %493 : vector<8x41xf32>
    %496 = arith.maximumf %494, %495 : vector<8x41xf32>
    %c0_13 = arith.constant 0 : index
    %c0_14 = arith.constant 0 : index
    %497 = vector.load %arg3[%c0_13, %c0_14] : memref<8x1xf32, #tpu.memory_space<vmem>>, vector<8x1xf32>
    %498 = vector.broadcast %497 : vector<8x1xf32> to vector<8x41xf32>
    %499 = arith.addf %496, %498 : vector<8x41xf32>
    %cst_15 = arith.constant 0.000000e+00 : f32
    %500 = vector.broadcast %cst_15 : f32 to vector<8x41xf32>
    %501 = arith.maximumf %499, %500 : vector<8x41xf32>
    %502 = vector.extract_strided_slice %465 {offsets = [0, 0], sizes = [8, 25], strides = [1, 1]} : vector<8x41xf32> to vector<8x25xf32>
    %503 = vector.extract_strided_slice %477 {offsets = [0, 0], sizes = [8, 25], strides = [1, 1]} : vector<8x41xf32> to vector<8x25xf32>
    %504 = vector.extract_strided_slice %465 {offsets = [0, 1], sizes = [8, 25], strides = [1, 1]} : vector<8x41xf32> to vector<8x25xf32>
    %505 = vector.extract_strided_slice %477 {offsets = [0, 1], sizes = [8, 25], strides = [1, 1]} : vector<8x41xf32> to vector<8x25xf32>
    %506 = vector.extract_strided_slice %465 {offsets = [0, 2], sizes = [8, 25], strides = [1, 1]} : vector<8x41xf32> to vector<8x25xf32>
    %507 = vector.extract_strided_slice %489 {offsets = [0, 0], sizes = [8, 25], strides = [1, 1]} : vector<8x41xf32> to vector<8x25xf32>
    %508 = vector.extract_strided_slice %501 {offsets = [0, 0], sizes = [8, 25], strides = [1, 1]} : vector<8x41xf32> to vector<8x25xf32>
    %509 = vector.extract_strided_slice %489 {offsets = [0, 1], sizes = [8, 25], strides = [1, 1]} : vector<8x41xf32> to vector<8x25xf32>
    %510 = vector.extract_strided_slice %501 {offsets = [0, 1], sizes = [8, 25], strides = [1, 1]} : vector<8x41xf32> to vector<8x25xf32>
    %511 = vector.extract_strided_slice %489 {offsets = [0, 2], sizes = [8, 25], strides = [1, 1]} : vector<8x41xf32> to vector<8x25xf32>
    %512 = vector.extract_strided_slice %465 {offsets = [0, 7], sizes = [8, 25], strides = [1, 1]} : vector<8x41xf32> to vector<8x25xf32>
    %513 = vector.extract_strided_slice %477 {offsets = [0, 7], sizes = [8, 25], strides = [1, 1]} : vector<8x41xf32> to vector<8x25xf32>
    %514 = vector.extract_strided_slice %465 {offsets = [0, 8], sizes = [8, 25], strides = [1, 1]} : vector<8x41xf32> to vector<8x25xf32>
    %515 = vector.extract_strided_slice %477 {offsets = [0, 8], sizes = [8, 25], strides = [1, 1]} : vector<8x41xf32> to vector<8x25xf32>
    %516 = vector.extract_strided_slice %465 {offsets = [0, 9], sizes = [8, 25], strides = [1, 1]} : vector<8x41xf32> to vector<8x25xf32>
    %517 = vector.extract_strided_slice %489 {offsets = [0, 7], sizes = [8, 25], strides = [1, 1]} : vector<8x41xf32> to vector<8x25xf32>
    %518 = vector.extract_strided_slice %501 {offsets = [0, 7], sizes = [8, 25], strides = [1, 1]} : vector<8x41xf32> to vector<8x25xf32>
    %519 = vector.extract_strided_slice %489 {offsets = [0, 8], sizes = [8, 25], strides = [1, 1]} : vector<8x41xf32> to vector<8x25xf32>
    %520 = vector.extract_strided_slice %501 {offsets = [0, 8], sizes = [8, 25], strides = [1, 1]} : vector<8x41xf32> to vector<8x25xf32>
    %521 = vector.extract_strided_slice %489 {offsets = [0, 9], sizes = [8, 25], strides = [1, 1]} : vector<8x41xf32> to vector<8x25xf32>
    %522 = vector.extract_strided_slice %465 {offsets = [0, 14], sizes = [8, 25], strides = [1, 1]} : vector<8x41xf32> to vector<8x25xf32>
    %523 = vector.extract_strided_slice %477 {offsets = [0, 14], sizes = [8, 25], strides = [1, 1]} : vector<8x41xf32> to vector<8x25xf32>
    %524 = vector.extract_strided_slice %465 {offsets = [0, 15], sizes = [8, 25], strides = [1, 1]} : vector<8x41xf32> to vector<8x25xf32>
    %525 = vector.extract_strided_slice %477 {offsets = [0, 15], sizes = [8, 25], strides = [1, 1]} : vector<8x41xf32> to vector<8x25xf32>
    %526 = vector.extract_strided_slice %465 {offsets = [0, 16], sizes = [8, 25], strides = [1, 1]} : vector<8x41xf32> to vector<8x25xf32>
    %527 = tpu.concatenate %502, %503, %504, %505, %506, %507, %508, %509, %510, %511, %512, %513, %514, %515, %516, %517 in 0 : vector<8x25xf32>, vector<8x25xf32>, vector<8x25xf32>, vector<8x25xf32>, vector<8x25xf32>, vector<8x25xf32>, vector<8x25xf32>, vector<8x25xf32>, vector<8x25xf32>, vector<8x25xf32>, vector<8x25xf32>, vector<8x25xf32>, vector<8x25xf32>, vector<8x25xf32>, vector<8x25xf32>, vector<8x25xf32> -> vector<128x25xf32>
    %528 = tpu.concatenate %518, %519, %520, %521, %522, %523, %524, %525, %526 in 0 : vector<8x25xf32>, vector<8x25xf32>, vector<8x25xf32>, vector<8x25xf32>, vector<8x25xf32>, vector<8x25xf32>, vector<8x25xf32>, vector<8x25xf32>, vector<8x25xf32> -> vector<72x25xf32>
    %529 = tpu.concatenate %527, %528 in 0 : vector<128x25xf32>, vector<72x25xf32> -> vector<200x25xf32>
    %530 = vector.extract_strided_slice %477 {offsets = [0, 0], sizes = [8, 25], strides = [1, 1]} : vector<8x41xf32> to vector<8x25xf32>
    %531 = vector.extract_strided_slice %465 {offsets = [0, 1], sizes = [8, 25], strides = [1, 1]} : vector<8x41xf32> to vector<8x25xf32>
    %532 = vector.extract_strided_slice %477 {offsets = [0, 1], sizes = [8, 25], strides = [1, 1]} : vector<8x41xf32> to vector<8x25xf32>
    %533 = vector.extract_strided_slice %465 {offsets = [0, 2], sizes = [8, 25], strides = [1, 1]} : vector<8x41xf32> to vector<8x25xf32>
    %534 = vector.extract_strided_slice %477 {offsets = [0, 2], sizes = [8, 25], strides = [1, 1]} : vector<8x41xf32> to vector<8x25xf32>
    %535 = vector.extract_strided_slice %501 {offsets = [0, 0], sizes = [8, 25], strides = [1, 1]} : vector<8x41xf32> to vector<8x25xf32>
    %536 = vector.extract_strided_slice %489 {offsets = [0, 1], sizes = [8, 25], strides = [1, 1]} : vector<8x41xf32> to vector<8x25xf32>
    %537 = vector.extract_strided_slice %501 {offsets = [0, 1], sizes = [8, 25], strides = [1, 1]} : vector<8x41xf32> to vector<8x25xf32>
    %538 = vector.extract_strided_slice %489 {offsets = [0, 2], sizes = [8, 25], strides = [1, 1]} : vector<8x41xf32> to vector<8x25xf32>
    %539 = vector.extract_strided_slice %501 {offsets = [0, 2], sizes = [8, 25], strides = [1, 1]} : vector<8x41xf32> to vector<8x25xf32>
    %540 = vector.extract_strided_slice %477 {offsets = [0, 7], sizes = [8, 25], strides = [1, 1]} : vector<8x41xf32> to vector<8x25xf32>
    %541 = vector.extract_strided_slice %465 {offsets = [0, 8], sizes = [8, 25], strides = [1, 1]} : vector<8x41xf32> to vector<8x25xf32>
    %542 = vector.extract_strided_slice %477 {offsets = [0, 8], sizes = [8, 25], strides = [1, 1]} : vector<8x41xf32> to vector<8x25xf32>
    %543 = vector.extract_strided_slice %465 {offsets = [0, 9], sizes = [8, 25], strides = [1, 1]} : vector<8x41xf32> to vector<8x25xf32>
    %544 = vector.extract_strided_slice %477 {offsets = [0, 9], sizes = [8, 25], strides = [1, 1]} : vector<8x41xf32> to vector<8x25xf32>
    %545 = vector.extract_strided_slice %501 {offsets = [0, 7], sizes = [8, 25], strides = [1, 1]} : vector<8x41xf32> to vector<8x25xf32>
    %546 = vector.extract_strided_slice %489 {offsets = [0, 8], sizes = [8, 25], strides = [1, 1]} : vector<8x41xf32> to vector<8x25xf32>
    %547 = vector.extract_strided_slice %501 {offsets = [0, 8], sizes = [8, 25], strides = [1, 1]} : vector<8x41xf32> to vector<8x25xf32>
    %548 = vector.extract_strided_slice %489 {offsets = [0, 9], sizes = [8, 25], strides = [1, 1]} : vector<8x41xf32> to vector<8x25xf32>
    %549 = vector.extract_strided_slice %501 {offsets = [0, 9], sizes = [8, 25], strides = [1, 1]} : vector<8x41xf32> to vector<8x25xf32>
    %550 = vector.extract_strided_slice %477 {offsets = [0, 14], sizes = [8, 25], strides = [1, 1]} : vector<8x41xf32> to vector<8x25xf32>
    %551 = vector.extract_strided_slice %465 {offsets = [0, 15], sizes = [8, 25], strides = [1, 1]} : vector<8x41xf32> to vector<8x25xf32>
    %552 = vector.extract_strided_slice %477 {offsets = [0, 15], sizes = [8, 25], strides = [1, 1]} : vector<8x41xf32> to vector<8x25xf32>
    %553 = vector.extract_strided_slice %465 {offsets = [0, 16], sizes = [8, 25], strides = [1, 1]} : vector<8x41xf32> to vector<8x25xf32>
    %554 = vector.extract_strided_slice %477 {offsets = [0, 16], sizes = [8, 25], strides = [1, 1]} : vector<8x41xf32> to vector<8x25xf32>
    %555 = tpu.concatenate %530, %531, %532, %533, %534, %535, %536, %537, %538, %539, %540, %541, %542, %543, %544, %545 in 0 : vector<8x25xf32>, vector<8x25xf32>, vector<8x25xf32>, vector<8x25xf32>, vector<8x25xf32>, vector<8x25xf32>, vector<8x25xf32>, vector<8x25xf32>, vector<8x25xf32>, vector<8x25xf32>, vector<8x25xf32>, vector<8x25xf32>, vector<8x25xf32>, vector<8x25xf32>, vector<8x25xf32>, vector<8x25xf32> -> vector<128x25xf32>
    %556 = tpu.concatenate %546, %547, %548, %549, %550, %551, %552, %553, %554 in 0 : vector<8x25xf32>, vector<8x25xf32>, vector<8x25xf32>, vector<8x25xf32>, vector<8x25xf32>, vector<8x25xf32>, vector<8x25xf32>, vector<8x25xf32>, vector<8x25xf32> -> vector<72x25xf32>
    %557 = tpu.concatenate %555, %556 in 0 : vector<128x25xf32>, vector<72x25xf32> -> vector<200x25xf32>
    %558 = vector.extract_strided_slice %489 {offsets = [0, 0], sizes = [8, 25], strides = [1, 1]} : vector<8x41xf32> to vector<8x25xf32>
    %559 = vector.extract_strided_slice %501 {offsets = [0, 0], sizes = [8, 25], strides = [1, 1]} : vector<8x41xf32> to vector<8x25xf32>
    %560 = vector.extract_strided_slice %489 {offsets = [0, 1], sizes = [8, 25], strides = [1, 1]} : vector<8x41xf32> to vector<8x25xf32>
    %561 = vector.extract_strided_slice %501 {offsets = [0, 1], sizes = [8, 25], strides = [1, 1]} : vector<8x41xf32> to vector<8x25xf32>
    %562 = vector.extract_strided_slice %489 {offsets = [0, 2], sizes = [8, 25], strides = [1, 1]} : vector<8x41xf32> to vector<8x25xf32>
    %563 = vector.extract_strided_slice %465 {offsets = [0, 7], sizes = [8, 25], strides = [1, 1]} : vector<8x41xf32> to vector<8x25xf32>
    %564 = vector.extract_strided_slice %477 {offsets = [0, 7], sizes = [8, 25], strides = [1, 1]} : vector<8x41xf32> to vector<8x25xf32>
    %565 = vector.extract_strided_slice %465 {offsets = [0, 8], sizes = [8, 25], strides = [1, 1]} : vector<8x41xf32> to vector<8x25xf32>
    %566 = vector.extract_strided_slice %477 {offsets = [0, 8], sizes = [8, 25], strides = [1, 1]} : vector<8x41xf32> to vector<8x25xf32>
    %567 = vector.extract_strided_slice %465 {offsets = [0, 9], sizes = [8, 25], strides = [1, 1]} : vector<8x41xf32> to vector<8x25xf32>
    %568 = vector.extract_strided_slice %489 {offsets = [0, 7], sizes = [8, 25], strides = [1, 1]} : vector<8x41xf32> to vector<8x25xf32>
    %569 = vector.extract_strided_slice %501 {offsets = [0, 7], sizes = [8, 25], strides = [1, 1]} : vector<8x41xf32> to vector<8x25xf32>
    %570 = vector.extract_strided_slice %489 {offsets = [0, 8], sizes = [8, 25], strides = [1, 1]} : vector<8x41xf32> to vector<8x25xf32>
    %571 = vector.extract_strided_slice %501 {offsets = [0, 8], sizes = [8, 25], strides = [1, 1]} : vector<8x41xf32> to vector<8x25xf32>
    %572 = vector.extract_strided_slice %489 {offsets = [0, 9], sizes = [8, 25], strides = [1, 1]} : vector<8x41xf32> to vector<8x25xf32>
    %573 = vector.extract_strided_slice %465 {offsets = [0, 14], sizes = [8, 25], strides = [1, 1]} : vector<8x41xf32> to vector<8x25xf32>
    %574 = vector.extract_strided_slice %477 {offsets = [0, 14], sizes = [8, 25], strides = [1, 1]} : vector<8x41xf32> to vector<8x25xf32>
    %575 = vector.extract_strided_slice %465 {offsets = [0, 15], sizes = [8, 25], strides = [1, 1]} : vector<8x41xf32> to vector<8x25xf32>
    %576 = vector.extract_strided_slice %477 {offsets = [0, 15], sizes = [8, 25], strides = [1, 1]} : vector<8x41xf32> to vector<8x25xf32>
    %577 = vector.extract_strided_slice %465 {offsets = [0, 16], sizes = [8, 25], strides = [1, 1]} : vector<8x41xf32> to vector<8x25xf32>
    %578 = vector.extract_strided_slice %489 {offsets = [0, 14], sizes = [8, 25], strides = [1, 1]} : vector<8x41xf32> to vector<8x25xf32>
    %579 = vector.extract_strided_slice %501 {offsets = [0, 14], sizes = [8, 25], strides = [1, 1]} : vector<8x41xf32> to vector<8x25xf32>
    %580 = vector.extract_strided_slice %489 {offsets = [0, 15], sizes = [8, 25], strides = [1, 1]} : vector<8x41xf32> to vector<8x25xf32>
    %581 = vector.extract_strided_slice %501 {offsets = [0, 15], sizes = [8, 25], strides = [1, 1]} : vector<8x41xf32> to vector<8x25xf32>
    %582 = vector.extract_strided_slice %489 {offsets = [0, 16], sizes = [8, 25], strides = [1, 1]} : vector<8x41xf32> to vector<8x25xf32>
    %583 = tpu.concatenate %558, %559, %560, %561, %562, %563, %564, %565, %566, %567, %568, %569, %570, %571, %572, %573 in 0 : vector<8x25xf32>, vector<8x25xf32>, vector<8x25xf32>, vector<8x25xf32>, vector<8x25xf32>, vector<8x25xf32>, vector<8x25xf32>, vector<8x25xf32>, vector<8x25xf32>, vector<8x25xf32>, vector<8x25xf32>, vector<8x25xf32>, vector<8x25xf32>, vector<8x25xf32>, vector<8x25xf32>, vector<8x25xf32> -> vector<128x25xf32>
    %584 = tpu.concatenate %574, %575, %576, %577, %578, %579, %580, %581, %582 in 0 : vector<8x25xf32>, vector<8x25xf32>, vector<8x25xf32>, vector<8x25xf32>, vector<8x25xf32>, vector<8x25xf32>, vector<8x25xf32>, vector<8x25xf32>, vector<8x25xf32> -> vector<72x25xf32>
    %585 = tpu.concatenate %583, %584 in 0 : vector<128x25xf32>, vector<72x25xf32> -> vector<200x25xf32>
    %586 = vector.extract_strided_slice %501 {offsets = [0, 0], sizes = [8, 25], strides = [1, 1]} : vector<8x41xf32> to vector<8x25xf32>
    %587 = vector.extract_strided_slice %489 {offsets = [0, 1], sizes = [8, 25], strides = [1, 1]} : vector<8x41xf32> to vector<8x25xf32>
    %588 = vector.extract_strided_slice %501 {offsets = [0, 1], sizes = [8, 25], strides = [1, 1]} : vector<8x41xf32> to vector<8x25xf32>
    %589 = vector.extract_strided_slice %489 {offsets = [0, 2], sizes = [8, 25], strides = [1, 1]} : vector<8x41xf32> to vector<8x25xf32>
    %590 = vector.extract_strided_slice %501 {offsets = [0, 2], sizes = [8, 25], strides = [1, 1]} : vector<8x41xf32> to vector<8x25xf32>
    %591 = vector.extract_strided_slice %477 {offsets = [0, 7], sizes = [8, 25], strides = [1, 1]} : vector<8x41xf32> to vector<8x25xf32>
    %592 = vector.extract_strided_slice %465 {offsets = [0, 8], sizes = [8, 25], strides = [1, 1]} : vector<8x41xf32> to vector<8x25xf32>
    %593 = vector.extract_strided_slice %477 {offsets = [0, 8], sizes = [8, 25], strides = [1, 1]} : vector<8x41xf32> to vector<8x25xf32>
    %594 = vector.extract_strided_slice %465 {offsets = [0, 9], sizes = [8, 25], strides = [1, 1]} : vector<8x41xf32> to vector<8x25xf32>
    %595 = vector.extract_strided_slice %477 {offsets = [0, 9], sizes = [8, 25], strides = [1, 1]} : vector<8x41xf32> to vector<8x25xf32>
    %596 = vector.extract_strided_slice %501 {offsets = [0, 7], sizes = [8, 25], strides = [1, 1]} : vector<8x41xf32> to vector<8x25xf32>
    %597 = vector.extract_strided_slice %489 {offsets = [0, 8], sizes = [8, 25], strides = [1, 1]} : vector<8x41xf32> to vector<8x25xf32>
    %598 = vector.extract_strided_slice %501 {offsets = [0, 8], sizes = [8, 25], strides = [1, 1]} : vector<8x41xf32> to vector<8x25xf32>
    %599 = vector.extract_strided_slice %489 {offsets = [0, 9], sizes = [8, 25], strides = [1, 1]} : vector<8x41xf32> to vector<8x25xf32>
    %600 = vector.extract_strided_slice %501 {offsets = [0, 9], sizes = [8, 25], strides = [1, 1]} : vector<8x41xf32> to vector<8x25xf32>
    %601 = vector.extract_strided_slice %477 {offsets = [0, 14], sizes = [8, 25], strides = [1, 1]} : vector<8x41xf32> to vector<8x25xf32>
    %602 = vector.extract_strided_slice %465 {offsets = [0, 15], sizes = [8, 25], strides = [1, 1]} : vector<8x41xf32> to vector<8x25xf32>
    %603 = vector.extract_strided_slice %477 {offsets = [0, 15], sizes = [8, 25], strides = [1, 1]} : vector<8x41xf32> to vector<8x25xf32>
    %604 = vector.extract_strided_slice %465 {offsets = [0, 16], sizes = [8, 25], strides = [1, 1]} : vector<8x41xf32> to vector<8x25xf32>
    %605 = vector.extract_strided_slice %477 {offsets = [0, 16], sizes = [8, 25], strides = [1, 1]} : vector<8x41xf32> to vector<8x25xf32>
    %606 = vector.extract_strided_slice %501 {offsets = [0, 14], sizes = [8, 25], strides = [1, 1]} : vector<8x41xf32> to vector<8x25xf32>
    %607 = vector.extract_strided_slice %489 {offsets = [0, 15], sizes = [8, 25], strides = [1, 1]} : vector<8x41xf32> to vector<8x25xf32>
    %608 = vector.extract_strided_slice %501 {offsets = [0, 15], sizes = [8, 25], strides = [1, 1]} : vector<8x41xf32> to vector<8x25xf32>
    %609 = vector.extract_strided_slice %489 {offsets = [0, 16], sizes = [8, 25], strides = [1, 1]} : vector<8x41xf32> to vector<8x25xf32>
    %610 = vector.extract_strided_slice %501 {offsets = [0, 16], sizes = [8, 25], strides = [1, 1]} : vector<8x41xf32> to vector<8x25xf32>
    %611 = tpu.concatenate %586, %587, %588, %589, %590, %591, %592, %593, %594, %595, %596, %597, %598, %599, %600, %601 in 0 : vector<8x25xf32>, vector<8x25xf32>, vector<8x25xf32>, vector<8x25xf32>, vector<8x25xf32>, vector<8x25xf32>, vector<8x25xf32>, vector<8x25xf32>, vector<8x25xf32>, vector<8x25xf32>, vector<8x25xf32>, vector<8x25xf32>, vector<8x25xf32>, vector<8x25xf32>, vector<8x25xf32>, vector<8x25xf32> -> vector<128x25xf32>
    %612 = tpu.concatenate %602, %603, %604, %605, %606, %607, %608, %609, %610 in 0 : vector<8x25xf32>, vector<8x25xf32>, vector<8x25xf32>, vector<8x25xf32>, vector<8x25xf32>, vector<8x25xf32>, vector<8x25xf32>, vector<8x25xf32>, vector<8x25xf32> -> vector<72x25xf32>
    %613 = tpu.concatenate %611, %612 in 0 : vector<128x25xf32>, vector<72x25xf32> -> vector<200x25xf32>
    %614 = tpu.concatenate %529, %557, %585, %613 in 1 : vector<200x25xf32>, vector<200x25xf32>, vector<200x25xf32>, vector<200x25xf32> -> vector<200x100xf32>
    %615 = arith.truncf %614 : vector<200x100xf32> to vector<200x100xbf16>
    %c0_16 = arith.constant 0 : index
    %c0_17 = arith.constant 0 : index
    %616 = vector.load %arg4[%c0_16, %c0_17] : memref<16x200xbf16, #tpu.memory_space<vmem>>, vector<16x200xbf16>
    %cst_18 = arith.constant dense<0.000000e+00> : vector<16x100xf32>
    %617 = tpu.matmul %616, %615, %cst_18 {dimension_numbers = #tpu.dot_dimension_numbers<[1], [0], [0], [1], [0, 0, 1, 1], [], []>} : vector<16x200xbf16>, vector<200x100xbf16>, vector<16x100xf32> -> vector<16x100xf32>
    %618 = vector.extract_strided_slice %617 {offsets = [0, 0], sizes = [16, 25], strides = [1, 1]} : vector<16x100xf32> to vector<16x25xf32>
    %619 = vector.extract_strided_slice %617 {offsets = [0, 25], sizes = [16, 25], strides = [1, 1]} : vector<16x100xf32> to vector<16x25xf32>
    %620 = vector.extract_strided_slice %617 {offsets = [0, 50], sizes = [16, 25], strides = [1, 1]} : vector<16x100xf32> to vector<16x25xf32>
    %621 = vector.extract_strided_slice %617 {offsets = [0, 75], sizes = [16, 25], strides = [1, 1]} : vector<16x100xf32> to vector<16x25xf32>
    %622 = arith.maximumf %618, %619 : vector<16x25xf32>
    %623 = arith.maximumf %620, %621 : vector<16x25xf32>
    %624 = arith.maximumf %622, %623 : vector<16x25xf32>
    %c0_19 = arith.constant 0 : index
    %c0_20 = arith.constant 0 : index
    %625 = vector.load %arg5[%c0_19, %c0_20] : memref<16x1xf32, #tpu.memory_space<vmem>>, vector<16x1xf32>
    %626 = vector.broadcast %625 : vector<16x1xf32> to vector<16x25xf32>
    %627 = arith.addf %624, %626 : vector<16x25xf32>
    %cst_21 = arith.constant 0.000000e+00 : f32
    %628 = vector.broadcast %cst_21 : f32 to vector<16x25xf32>
    %629 = arith.maximumf %627, %628 : vector<16x25xf32>
    %630 = vector.extract_strided_slice %629 {offsets = [0, 0], sizes = [1, 25], strides = [1, 1]} : vector<16x25xf32> to vector<1x25xf32>
    %631 = vector.extract_strided_slice %629 {offsets = [1, 0], sizes = [1, 25], strides = [1, 1]} : vector<16x25xf32> to vector<1x25xf32>
    %632 = vector.extract_strided_slice %629 {offsets = [2, 0], sizes = [1, 25], strides = [1, 1]} : vector<16x25xf32> to vector<1x25xf32>
    %633 = vector.extract_strided_slice %629 {offsets = [3, 0], sizes = [1, 25], strides = [1, 1]} : vector<16x25xf32> to vector<1x25xf32>
    %634 = vector.extract_strided_slice %629 {offsets = [4, 0], sizes = [1, 25], strides = [1, 1]} : vector<16x25xf32> to vector<1x25xf32>
    %635 = vector.extract_strided_slice %629 {offsets = [5, 0], sizes = [1, 25], strides = [1, 1]} : vector<16x25xf32> to vector<1x25xf32>
    %636 = vector.extract_strided_slice %629 {offsets = [6, 0], sizes = [1, 25], strides = [1, 1]} : vector<16x25xf32> to vector<1x25xf32>
    %637 = vector.extract_strided_slice %629 {offsets = [7, 0], sizes = [1, 25], strides = [1, 1]} : vector<16x25xf32> to vector<1x25xf32>
    %638 = vector.extract_strided_slice %629 {offsets = [8, 0], sizes = [1, 25], strides = [1, 1]} : vector<16x25xf32> to vector<1x25xf32>
    %639 = vector.extract_strided_slice %629 {offsets = [9, 0], sizes = [1, 25], strides = [1, 1]} : vector<16x25xf32> to vector<1x25xf32>
    %640 = vector.extract_strided_slice %629 {offsets = [10, 0], sizes = [1, 25], strides = [1, 1]} : vector<16x25xf32> to vector<1x25xf32>
    %641 = vector.extract_strided_slice %629 {offsets = [11, 0], sizes = [1, 25], strides = [1, 1]} : vector<16x25xf32> to vector<1x25xf32>
    %642 = vector.extract_strided_slice %629 {offsets = [12, 0], sizes = [1, 25], strides = [1, 1]} : vector<16x25xf32> to vector<1x25xf32>
    %643 = vector.extract_strided_slice %629 {offsets = [13, 0], sizes = [1, 25], strides = [1, 1]} : vector<16x25xf32> to vector<1x25xf32>
    %644 = vector.extract_strided_slice %629 {offsets = [14, 0], sizes = [1, 25], strides = [1, 1]} : vector<16x25xf32> to vector<1x25xf32>
    %645 = vector.extract_strided_slice %629 {offsets = [15, 0], sizes = [1, 25], strides = [1, 1]} : vector<16x25xf32> to vector<1x25xf32>
    %646 = tpu.concatenate %630, %631, %632, %633, %634, %635, %636, %637, %638, %639, %640, %641, %642, %643, %644, %645 in 1 : vector<1x25xf32>, vector<1x25xf32>, vector<1x25xf32>, vector<1x25xf32>, vector<1x25xf32>, vector<1x25xf32>, vector<1x25xf32>, vector<1x25xf32>, vector<1x25xf32>, vector<1x25xf32>, vector<1x25xf32>, vector<1x25xf32>, vector<1x25xf32>, vector<1x25xf32>, vector<1x25xf32>, vector<1x25xf32> -> vector<1x400xf32>
    %647 = arith.truncf %646 : vector<1x400xf32> to vector<1x400xbf16>
    %c0_22 = arith.constant 0 : index
    %c0_23 = arith.constant 0 : index
    %648 = vector.load %arg6[%c0_22, %c0_23] : memref<400x64xbf16, #tpu.memory_space<vmem>>, vector<400x64xbf16>
    %cst_24 = arith.constant dense<0.000000e+00> : vector<1x64xf32>
    %649 = tpu.matmul %647, %648, %cst_24 {dimension_numbers = #tpu.dot_dimension_numbers<[1], [0], [0], [1], [0, 0, 1, 1], [], []>} : vector<1x400xbf16>, vector<400x64xbf16>, vector<1x64xf32> -> vector<1x64xf32>
    %c0_25 = arith.constant 0 : index
    %c0_26 = arith.constant 0 : index
    %650 = vector.load %arg7[%c0_25, %c0_26] : memref<1x64xf32, #tpu.memory_space<vmem>>, vector<1x64xf32>
    %651 = arith.addf %649, %650 : vector<1x64xf32>
    %cst_27 = arith.constant 0.000000e+00 : f32
    %652 = vector.broadcast %cst_27 : f32 to vector<1x64xf32>
    %653 = arith.maximumf %651, %652 : vector<1x64xf32>
    %654 = arith.truncf %653 : vector<1x64xf32> to vector<1x64xbf16>
    %c0_28 = arith.constant 0 : index
    %c0_29 = arith.constant 0 : index
    %655 = vector.load %arg8[%c0_28, %c0_29] : memref<64x128xbf16, #tpu.memory_space<vmem>>, vector<64x128xbf16>
    %cst_30 = arith.constant dense<0.000000e+00> : vector<1x128xf32>
    %656 = tpu.matmul %654, %655, %cst_30 {dimension_numbers = #tpu.dot_dimension_numbers<[1], [0], [0], [1], [0, 0, 1, 1], [], []>} : vector<1x64xbf16>, vector<64x128xbf16>, vector<1x128xf32> -> vector<1x128xf32>
    %c0_31 = arith.constant 0 : index
    %c0_32 = arith.constant 0 : index
    %657 = vector.load %arg9[%c0_31, %c0_32] : memref<1x128xf32, #tpu.memory_space<vmem>>, vector<1x128xf32>
    %658 = arith.addf %656, %657 : vector<1x128xf32>
    %cst_33 = arith.constant dense<0xFF800000> : vector<1xf32>
    %659 = vector.multi_reduction <maximumf>, %658, %cst_33 [1] : vector<1x128xf32> to vector<1xf32>
    %660 = vector.shape_cast %659 : vector<1xf32> to vector<1x1xf32>
    %661 = vector.broadcast %660 : vector<1x1xf32> to vector<1x128xf32>
    %662 = arith.subf %658, %661 : vector<1x128xf32>
    %663 = math.exp %662 : vector<1x128xf32>
    %cst_34 = arith.constant dense<0.000000e+00> : vector<1xf32>
    %664 = vector.multi_reduction <add>, %663, %cst_34 [1] : vector<1x128xf32> to vector<1xf32>
    %665 = vector.shape_cast %664 : vector<1xf32> to vector<1x1xf32>
    %666 = math.log %665 : vector<1x1xf32>
    %667 = vector.broadcast %666 : vector<1x1xf32> to vector<1x128xf32>
    %668 = arith.subf %662, %667 : vector<1x128xf32>
    %669 = vector.shape_cast %668 : vector<1x128xf32> to vector<1x1x128xf32>
    %c0_35 = arith.constant 0 : index
    %c0_36 = arith.constant 0 : index
    %c0_37 = arith.constant 0 : index
    %670 = vector.load %arg10[%c0_35, %c0_36, %c0_37] : memref<1x1x128xf32, #tpu.memory_space<vmem>>, vector<1x1x128xf32>
    tpu.vector_store %arg10[%c0_35, %c0_36, %c0_37], %669 {strides = array<i32>} : memref<1x1x128xf32, #tpu.memory_space<vmem>>, vector<1x1x128xf32>,
    return
  }
  func.func @transform_0(%arg0: i32) -> (i32, i32, i32) {
    %c0_i32 = arith.constant 0 : i32
    %c0_i32_0 = arith.constant 0 : i32
    %c0_i32_1 = arith.constant 0 : i32
    return %arg0, %c0_i32, %c0_i32_0 : i32, i32, i32
  }
  func.func @transform_1(%arg0: i32) -> (i32, i32) {
    %c0_i32 = arith.constant 0 : i32
    %c0_i32_0 = arith.constant 0 : i32
    %c0_i32_1 = arith.constant 0 : i32
    return %c0_i32, %c0_i32_0 : i32, i32
  }
  func.func @transform_2(%arg0: i32) -> (i32, i32) {
    %c0_i32 = arith.constant 0 : i32
    %c0_i32_0 = arith.constant 0 : i32
    %c0_i32_1 = arith.constant 0 : i32
    return %c0_i32, %c0_i32_0 : i32, i32
  }
  func.func @transform_3(%arg0: i32) -> (i32, i32) {
    %c0_i32 = arith.constant 0 : i32
    %c0_i32_0 = arith.constant 0 : i32
    %c0_i32_1 = arith.constant 0 : i32
    return %c0_i32, %c0_i32_0 : i32, i32
  }
  func.func @transform_4(%arg0: i32) -> (i32, i32) {
    %c0_i32 = arith.constant 0 : i32
    %c0_i32_0 = arith.constant 0 : i32
    %c0_i32_1 = arith.constant 0 : i32
    return %c0_i32, %c0_i32_0 : i32, i32
  }
  func.func @transform_5(%arg0: i32) -> (i32, i32) {
    %c0_i32 = arith.constant 0 : i32
    %c0_i32_0 = arith.constant 0 : i32
    %c0_i32_1 = arith.constant 0 : i32
    return %c0_i32, %c0_i32_0 : i32, i32
  }
  func.func @transform_6(%arg0: i32) -> (i32, i32) {
    %c0_i32 = arith.constant 0 : i32
    %c0_i32_0 = arith.constant 0 : i32
    %c0_i32_1 = arith.constant 0 : i32
    return %c0_i32, %c0_i32_0 : i32, i32
  }
  func.func @transform_7(%arg0: i32) -> (i32, i32) {
    %c0_i32 = arith.constant 0 : i32
    %c0_i32_0 = arith.constant 0 : i32
    %c0_i32_1 = arith.constant 0 : i32
    return %c0_i32, %c0_i32_0 : i32, i32
  }
  func.func @transform_8(%arg0: i32) -> (i32, i32) {
    %c0_i32 = arith.constant 0 : i32
    %c0_i32_0 = arith.constant 0 : i32
    %c0_i32_1 = arith.constant 0 : i32
    return %c0_i32, %c0_i32_0 : i32, i32
  }
  func.func @transform_9(%arg0: i32) -> (i32, i32, i32) {
    %c0_i32 = arith.constant 0 : i32
    %c0_i32_0 = arith.constant 0 : i32
    %c0_i32_1 = arith.constant 0 : i32
    return %arg0, %c0_i32, %c0_i32_0 : i32, i32, i32
  }
}

</mosaic_0001>

<llo_original>
// kernel: squeeze.31
$region0: #{squeeze.31}
  %s0 = inlined_call_operand.vmem [shape: f32[2,7,7], index: 0, kind: input, shape index: {}]
  %s1 = inlined_call_operand.vmem [shape: f32[2,1,49], index: 1, kind: output, shape index: {}]
  $region1: #{squeeze.31} parent=0
    #allocation0 [shape = 'u8[4096]{0}', space=vmem, size = 0x1000, scoped, tag = 'scoped mem for output reshape']
    %s2 = smov 3
    %v3 = vld [vmem:[%s0] ss:$8 sm:%s2]
    %vm4 = vcmask 56320
    %5 = vst.msk [vmem:[#allocation0] sm:$0x3] %vm4, %v3
    %s6 = scalar_lea.vmem %s0, 6
    %s7 = smov 3
    %v8 = vld [vmem:[%s6] ss:$8 sm:%s7]
    %9 = vrot.lane.b32.xlu0 %v8, 42
    %v10 = vpop.permute.xlu0 %9
    %vm11 = vcmask 400720
    %12 = vst.msk [vmem:[#allocation0] sm:$0x3] %vm11, %v10
    %s13 = scalar_lea.vmem %s0, 5
    %s14 = smov 3
    %v15 = vld [vmem:[%s13] ss:$8 sm:%s14]
    %16 = vrot.lane.b32.xlu0 %v15, 35
    %v17 = vpop.permute.xlu0 %16
    %vm18 = vcmask 343320
    %19 = vst.msk [vmem:[#allocation0] sm:$0x3] %vm18, %v17
    %s20 = scalar_lea.vmem %s0, 4
    %s21 = smov 3
    %v22 = vld [vmem:[%s20] ss:$8 sm:%s21]
    %23 = vrot.lane.b32.xlu0 %v22, 28
    %v24 = vpop.permute.xlu0 %23
    %vm25 = vcmask 285920
    %26 = vst.msk [vmem:[#allocation0] sm:$0x3] %vm25, %v24
    %s27 = scalar_lea.vmem %s0, 3
    %s28 = smov 3
    %v29 = vld [vmem:[%s27] ss:$8 sm:%s28]
    %30 = vrot.lane.b32.xlu0 %v29, 21
    %v31 = vpop.permute.xlu0 %30
    %vm32 = vcmask 228520
    %33 = vst.msk [vmem:[#allocation0] sm:$0x3] %vm32, %v31
    %s34 = scalar_lea.vmem %s0, 2
    %s35 = smov 3
    %v36 = vld [vmem:[%s34] ss:$8 sm:%s35]
    %37 = vrot.lane.b32.xlu0 %v36, 14
    %v38 = vpop.permute.xlu0 %37
    %vm39 = vcmask 171120
    %40 = vst.msk [vmem:[#allocation0] sm:$0x3] %vm39, %v38
    %s41 = scalar_lea.vmem %s0, 1
    %s42 = smov 3
    %v43 = vld [vmem:[%s41] ss:$8 sm:%s42]
    %44 = vrot.lane.b32.xlu0 %v43, 7
    %v45 = vpop.permute.xlu0 %44
    %vm46 = vcmask 113720
    %47 = vst.msk [vmem:[#allocation0] sm:$0x3] %vm46, %v45
    %s49 = sshllo.u32 0, 2
    %v51 = vld [vmem:[#allocation0] sm:%s49]
    %s52 = sshllo.u32 0, 2
    %53 = vst [vmem:[%s1] sm:%s52] %v51

// kernel: convnet_forward.1
$region0: #{convnet_forward.1}
  #allocation0 [shape = 'u32[]', space=smem, size = 0x4, offset = 0x4, fixed_abs, tag = 'smem constant byte address 0x4 - core index']
  #allocation1 [shape = 'u32[144,128]{1,0:T(1,128)}', space=vmem, size = 0x12000, scoped, tag = 'internal scratch']
  %s0 = inlined_call_operand.vmem [shape: f32[2,16,49], index: 0, kind: input, shape index: {}]
  %s1 = inlined_call_operand.vmem [shape: bf16[8,25], index: 1, kind: input, shape index: {}]
  %s2 = inlined_call_operand.vmem [shape: f32[8,1], index: 2, kind: input, shape index: {}]
  %s3 = inlined_call_operand.vmem [shape: bf16[16,200], index: 3, kind: input, shape index: {}]
  %s4 = inlined_call_operand.vmem [shape: f32[16,1], index: 4, kind: input, shape index: {}]
  %s5 = inlined_call_operand.vmem [shape: bf16[400,64], index: 5, kind: input, shape index: {}]
  %s6 = inlined_call_operand.vmem [shape: f32[1,64], index: 6, kind: input, shape index: {}]
  %s7 = inlined_call_operand.vmem [shape: bf16[64,128], index: 7, kind: input, shape index: {}]
  %s8 = inlined_call_operand.vmem [shape: f32[1,128], index: 8, kind: input, shape index: {}]
  %s9 = inlined_call_operand.hbm [shape: f32[2,1,128], index: 9, kind: output, shape index: {}]
  %s10 = sld [smem:[#allocation0]]
  $region69: #{convnet_forward.1} parent=0
    _
  %s12 = ssub.s32 1, %s10
  %s13 = scalar_select 0, %s12, %s10
  $region1: #{convnet_forward.1} parent=0
    #allocation2 [shape = 'u8[1024]{0}', space=vmem, size = 0x400, scoped, tag = 'output window, operand 0']
    #allocation3 [shape = 's32[2]{0}', space=sflag, size = 0x8, scoped, tag = 'scoped memory for convnet_forward.1']
    %14 = vsyncpa [#allocation3], 0
    %s15 = scalar_lea.sflag [#allocation3], 1
    %16 = vsyncpa %s15, 0
    loop: start=0, step=1, limit=4
    $region2: #{convnet_forward.1} parent=1 // loop_pre_header
      _
    $region3: #{convnet_forward.1} parent=1 // loop_header
      %s18 = sphi 0, %s22
      %p19 = scmp.ge.s32.totalorder %s18, 4
      %s28 = sphi 0, %s30
      %s31 = sphi 0, %s28
      %s32 = sphi 0, %s31
      %s48 = sphi 0, %s32
      %s52 = sphi 0, %s52
      %s54 = sphi 0, %s52
      %s55 = sphi 0, %s54
      %s69 = sphi 0, %s55
      %s73 = sphi 0, %s73
      %s75 = sphi 0, %s73
      %s76 = sphi 0, %s75
      %s90 = sphi 0, %s76
      %s94 = sphi 0, %s94
      %s96 = sphi 0, %s94
      %s97 = sphi 0, %s96
      %s111 = sphi 0, %s97
      %s115 = sphi 0, %s115
      %s117 = sphi 0, %s115
      %s118 = sphi 0, %s117
      %s132 = sphi 0, %s118
      %s136 = sphi 0, %s136
      %s138 = sphi 0, %s136
      %s139 = sphi 0, %s138
      %s153 = sphi 0, %s139
      %s157 = sphi 0, %s157
      %s159 = sphi 0, %s157
      %s160 = sphi 0, %s159
      %s174 = sphi 0, %s160
      %s178 = sphi 0, %s178
      %s180 = sphi 0, %s178
      %s181 = sphi 0, %s180
      %s195 = sphi 0, %s181
      %s199 = sphi 0, %s199
      %s201 = sphi 0, %s199
      %s202 = sphi 0, %s201
      %s216 = sphi 0, %s202
      %s222 = sphi 0, %s224
      %s225 = sphi 0, %s222
      %s226 = sphi 0, %s225
      %s242 = sphi 0, %s226
    $region4: #{convnet_forward.1} parent=1 // loop_header_branch
      %21 = sbr.rel (%p19) target = $region8
    $region5: #{convnet_forward.1} parent=1 // loop_body
      %s23 = ssub.s32 %s18, 1
      %s24 = ssub.s32 %s18, 2
      %s25 = sadd.s32 %s18, 1
      %s26 = ssub.s32 %s18, %s25
      %p27 = scmp.eq.s32.totalorder %s26, 0
      %s29 = sadd.s32 %s28, 1
      %s30 = scalar_select %p27, %s28, %s29
      %p33 = pneg %p27
      %p34 = scmp.eq.s32.totalorder %s18, 1
      %p35 = por %p33, %p34
      %p36 = scmp.ne.s32.totalorder %s28, %s31
      %p37 = scmp.eq.s32.totalorder %s18, 0
      %p38 = por %p36, %p37
      %p39 = scmp.ne.s32.totalorder %s28, %s31
      %p40 = scmp.eq.s32.totalorder %s23, 1
      %p41 = por %p39, %p40
      %p42 = scmp.ne.s32.totalorder %s31, %s32
      %p43 = scmp.eq.s32.totalorder %s23, 0
      %p44 = por %p42, %p43
      %p45 = scmp.ne.s32.totalorder %s31, %s32
      %p46 = scmp.eq.s32.totalorder %s24, 1
      %p47 = por %p45, %p46
      %p49 = scmp.ne.s32.totalorder %s32, %s48
      %p50 = scmp.eq.s32.totalorder %s24, 0
      %p51 = por %p49, %p50
      %s53 = sadd.s32 %s52, 1
      %p56 = scmp.eq.s32.totalorder %s18, 1
      %p57 = scmp.ne.s32.totalorder %s52, %s54
      %p58 = scmp.eq.s32.totalorder %s18, 0
      %p59 = por %p57, %p58
      %p60 = scmp.ne.s32.totalorder %s52, %s54
      %p61 = scmp.eq.s32.totalorder %s23, 1
      %p62 = por %p60, %p61
      %p63 = scmp.ne.s32.totalorder %s54, %s55
      %p64 = scmp.eq.s32.totalorder %s23, 0
      %p65 = por %p63, %p64
      %p66 = scmp.ne.s32.totalorder %s54, %s55
      %p67 = scmp.eq.s32.totalorder %s24, 1
      %p68 = por %p66, %p67
      %p70 = scmp.ne.s32.totalorder %s55, %s69
      %p71 = scmp.eq.s32.totalorder %s24, 0
      %p72 = por %p70, %p71
      %s74 = sadd.s32 %s73, 1
      %p77 = scmp.eq.s32.totalorder %s18, 1
      %p78 = scmp.ne.s32.totalorder %s73, %s75
      %p79 = scmp.eq.s32.totalorder %s18, 0
      %p80 = por %p78, %p79
      %p81 = scmp.ne.s32.totalorder %s73, %s75
      %p82 = scmp.eq.s32.totalorder %s23, 1
      %p83 = por %p81, %p82
      %p84 = scmp.ne.s32.totalorder %s75, %s76
      %p85 = scmp.eq.s32.totalorder %s23, 0
      %p86 = por %p84, %p85
      %p87 = scmp.ne.s32.totalorder %s75, %s76
      %p88 = scmp.eq.s32.totalorder %s24, 1
      %p89 = por %p87, %p88
      %p91 = scmp.ne.s32.totalorder %s76, %s90
      %p92 = scmp.eq.s32.totalorder %s24, 0
      %p93 = por %p91, %p92
      %s95 = sadd.s32 %s94, 1
      %p98 = scmp.eq.s32.totalorder %s18, 1
      %p99 = scmp.ne.s32.totalorder %s94, %s96
      %p100 = scmp.eq.s32.totalorder %s18, 0
      %p101 = por %p99, %p100
      %p102 = scmp.ne.s32.totalorder %s94, %s96
      %p103 = scmp.eq.s32.totalorder %s23, 1
      %p104 = por %p102, %p103
      %p105 = scmp.ne.s32.totalorder %s96, %s97
      %p106 = scmp.eq.s32.totalorder %s23, 0
      %p107 = por %p105, %p106
      %p108 = scmp.ne.s32.totalorder %s96, %s97
      %p109 = scmp.eq.s32.totalorder %s24, 1
      %p110 = por %p108, %p109
      %p112 = scmp.ne.s32.totalorder %s97, %s111
      %p113 = scmp.eq.s32.totalorder %s24, 0
      %p114 = por %p112, %p113
      %s116 = sadd.s32 %s115, 1
      %p119 = scmp.eq.s32.totalorder %s18, 1
      %p120 = scmp.ne.s32.totalorder %s115, %s117
      %p121 = scmp.eq.s32.totalorder %s18, 0
      %p122 = por %p120, %p121
      %p123 = scmp.ne.s32.totalorder %s115, %s117
      %p124 = scmp.eq.s32.totalorder %s23, 1
      %p125 = por %p123, %p124
      %p126 = scmp.ne.s32.totalorder %s117, %s118
      %p127 = scmp.eq.s32.totalorder %s23, 0
      %p128 = por %p126, %p127
      %p129 = scmp.ne.s32.totalorder %s117, %s118
      %p130 = scmp.eq.s32.totalorder %s24, 1
      %p131 = por %p129, %p130
      %p133 = scmp.ne.s32.totalorder %s118, %s132
      %p134 = scmp.eq.s32.totalorder %s24, 0
      %p135 = por %p133, %p134
      %s137 = sadd.s32 %s136, 1
      %p140 = scmp.eq.s32.totalorder %s18, 1
      %p141 = scmp.ne.s32.totalorder %s136, %s138
      %p142 = scmp.eq.s32.totalorder %s18, 0
      %p143 = por %p141, %p142
      %p144 = scmp.ne.s32.totalorder %s136, %s138
      %p145 = scmp.eq.s32.totalorder %s23, 1
      %p146 = por %p144, %p145
      %p147 = scmp.ne.s32.totalorder %s138, %s139
      %p148 = scmp.eq.s32.totalorder %s23, 0
      %p149 = por %p147, %p148
      %p150 = scmp.ne.s32.totalorder %s138, %s139
      %p151 = scmp.eq.s32.totalorder %s24, 1
      %p152 = por %p150, %p151
      %p154 = scmp.ne.s32.totalorder %s139, %s153
      %p155 = scmp.eq.s32.totalorder %s24, 0
      %p156 = por %p154, %p155
      %s158 = sadd.s32 %s157, 1
      %p161 = scmp.eq.s32.totalorder %s18, 1
      %p162 = scmp.ne.s32.totalorder %s157, %s159
      %p163 = scmp.eq.s32.totalorder %s18, 0
      %p164 = por %p162, %p163
      %p165 = scmp.ne.s32.totalorder %s157, %s159
      %p166 = scmp.eq.s32.totalorder %s23, 1
      %p167 = por %p165, %p166
      %p168 = scmp.ne.s32.totalorder %s159, %s160
      %p169 = scmp.eq.s32.totalorder %s23, 0
      %p170 = por %p168, %p169
      %p171 = scmp.ne.s32.totalorder %s159, %s160
      %p172 = scmp.eq.s32.totalorder %s24, 1
      %p173 = por %p171, %p172
      %p175 = scmp.ne.s32.totalorder %s160, %s174
      %p176 = scmp.eq.s32.totalorder %s24, 0
      %p177 = por %p175, %p176
      %s179 = sadd.s32 %s178, 1
      %p182 = scmp.eq.s32.totalorder %s18, 1
      %p183 = scmp.ne.s32.totalorder %s178, %s180
      %p184 = scmp.eq.s32.totalorder %s18, 0
      %p185 = por %p183, %p184
      %p186 = scmp.ne.s32.totalorder %s178, %s180
      %p187 = scmp.eq.s32.totalorder %s23, 1
      %p188 = por %p186, %p187
      %p189 = scmp.ne.s32.totalorder %s180, %s181
      %p190 = scmp.eq.s32.totalorder %s23, 0
      %p191 = por %p189, %p190
      %p192 = scmp.ne.s32.totalorder %s180, %s181
      %p193 = scmp.eq.s32.totalorder %s24, 1
      %p194 = por %p192, %p193
      %p196 = scmp.ne.s32.totalorder %s181, %s195
      %p197 = scmp.eq.s32.totalorder %s24, 0
      %p198 = por %p196, %p197
      %s200 = sadd.s32 %s199, 1
      %p203 = scmp.eq.s32.totalorder %s18, 1
      %p204 = scmp.ne.s32.totalorder %s199, %s201
      %p205 = scmp.eq.s32.totalorder %s18, 0
      %p206 = por %p204, %p205
      %p207 = scmp.ne.s32.totalorder %s199, %s201
      %p208 = scmp.eq.s32.totalorder %s23, 1
      %p209 = por %p207, %p208
      %p210 = scmp.ne.s32.totalorder %s201, %s202
      %p211 = scmp.eq.s32.totalorder %s23, 0
      %p212 = por %p210, %p211
      %p213 = scmp.ne.s32.totalorder %s201, %s202
      %p214 = scmp.eq.s32.totalorder %s24, 1
      %p215 = por %p213, %p214
      %p217 = scmp.ne.s32.totalorder %s202, %s216
      %p218 = scmp.eq.s32.totalorder %s24, 0
      %p219 = por %p217, %p218
      %s220 = ssub.s32 %s18, %s25
      %p221 = scmp.eq.s32.totalorder %s220, 0
      %s223 = sadd.s32 %s222, 1
      %s224 = scalar_select %p221, %s222, %s223
      %p227 = pneg %p221
      %p228 = scmp.eq.s32.totalorder %s18, 1
      %p229 = por %p227, %p228
      %p230 = scmp.ne.s32.totalorder %s222, %s225
      %p231 = scmp.eq.s32.totalorder %s18, 0
      %p232 = por %p230, %p231
      %p233 = scmp.ne.s32.totalorder %s222, %s225
      %p234 = scmp.eq.s32.totalorder %s23, 1
      %p235 = por %p233, %p234
      %p236 = scmp.ne.s32.totalorder %s225, %s226
      %p237 = scmp.eq.s32.totalorder %s23, 0
      %p238 = por %p236, %p237
      %p239 = scmp.ne.s32.totalorder %s225, %s226
      %p240 = scmp.eq.s32.totalorder %s24, 1
      %p241 = por %p239, %p240
      %p243 = scmp.ne.s32.totalorder %s226, %s242
      %p244 = scmp.eq.s32.totalorder %s24, 0
      %p245 = por %p243, %p244
      %p246 = scmp.le.s32.totalorder 1, %s18
      %p247 = scmp.lt.s32.totalorder %s18, 3
      %p248 = pnand %p246, %p247
      %p249 = pneg %p248
      // Predicated region
      $region9: #{convnet_forward.1} parent=5 // pred_check
        _
      $region10: #{convnet_forward.1} parent=5 // pred_check_branch
        %251 = sbr.rel (%p248) target = $region12
      $region11: #{convnet_forward.1} parent=5 // pred_region
        %s252 = ssub.s32 %s18, 1
        // Predicated region
        $region13: #{convnet_forward.1} parent=11 // pred_check
          %p253 = pneg %p65
        $region14: #{convnet_forward.1} parent=11 // pred_check_branch
          %255 = sbr.rel (%p253) target = $region16
        $region15: #{convnet_forward.1} parent=11 // pred_region
          _
        $region16: #{convnet_forward.1} parent=11 // pred_fallthru
          _
        // Predicated region
        $region17: #{convnet_forward.1} parent=11 // pred_check
          %p256 = pneg %p86
        $region18: #{convnet_forward.1} parent=11 // pred_check_branch
          %258 = sbr.rel (%p256) target = $region20
        $region19: #{convnet_forward.1} parent=11 // pred_region
          _
        $region20: #{convnet_forward.1} parent=11 // pred_fallthru
          _
        // Predicated region
        $region21: #{convnet_forward.1} parent=11 // pred_check
          %p259 = pneg %p107
        $region22: #{convnet_forward.1} parent=11 // pred_check_branch
          %261 = sbr.rel (%p259) target = $region24
        $region23: #{convnet_forward.1} parent=11 // pred_region
          _
        $region24: #{convnet_forward.1} parent=11 // pred_fallthru
          _
        // Predicated region
        $region25: #{convnet_forward.1} parent=11 // pred_check
          %p262 = pneg %p128
        $region26: #{convnet_forward.1} parent=11 // pred_check_branch
          %264 = sbr.rel (%p262) target = $region28
        $region27: #{convnet_forward.1} parent=11 // pred_region
          _
        $region28: #{convnet_forward.1} parent=11 // pred_fallthru
          _
        // Predicated region
        $region29: #{convnet_forward.1} parent=11 // pred_check
          %p265 = pneg %p149
        $region30: #{convnet_forward.1} parent=11 // pred_check_branch
          %267 = sbr.rel (%p265) target = $region32
        $region31: #{convnet_forward.1} parent=11 // pred_region
          _
        $region32: #{convnet_forward.1} parent=11 // pred_fallthru
          _
        // Predicated region
        $region33: #{convnet_forward.1} parent=11 // pred_check
          %p268 = pneg %p170
        $region34: #{convnet_forward.1} parent=11 // pred_check_branch
          %270 = sbr.rel (%p268) target = $region36
        $region35: #{convnet_forward.1} parent=11 // pred_region
          _
        $region36: #{convnet_forward.1} parent=11 // pred_fallthru
          _
        // Predicated region
        $region37: #{convnet_forward.1} parent=11 // pred_check
          %p271 = pneg %p191
        $region38: #{convnet_forward.1} parent=11 // pred_check_branch
          %273 = sbr.rel (%p271) target = $region40
        $region39: #{convnet_forward.1} parent=11 // pred_region
          _
        $region40: #{convnet_forward.1} parent=11 // pred_fallthru
          _
        // Predicated region
        $region41: #{convnet_forward.1} parent=11 // pred_check
          %p274 = pneg %p212
        $region42: #{convnet_forward.1} parent=11 // pred_check_branch
          %276 = sbr.rel (%p274) target = $region44
        $region43: #{convnet_forward.1} parent=11 // pred_region
          _
        $region44: #{convnet_forward.1} parent=11 // pred_fallthru
          _
      $region12: #{convnet_forward.1} parent=5 // pred_fallthru
        _
      %p277 = scmp.lt.s32.totalorder %s18, 2
      // Predicated region
      $region45: #{convnet_forward.1} parent=5 // pred_check
        %p278 = pneg %p277
      $region46: #{convnet_forward.1} parent=5 // pred_check_branch
        %280 = sbr.rel (%p278) target = $region48
      $region47: #{convnet_forward.1} parent=5 // pred_region
        // Predicated region
        $region49: #{convnet_forward.1} parent=47 // pred_check
          %p281 = pneg %p38
        $region50: #{convnet_forward.1} parent=47 // pred_check_branch
          %283 = sbr.rel (%p281) target = $region52
        $region51: #{convnet_forward.1} parent=47 // pred_region
          %p284 = scmp.lt.s32.totalorder %s18, 1
          %s285 = scalar_select %p284, %s18, 1
          %s286 = smul.addr %s285, 2
          %s287 = smul.addr %s286, 8
          %s288 = scalar_lea.vmem %s0, %s287
        $region52: #{convnet_forward.1} parent=47 // pred_fallthru
          _
      $region48: #{convnet_forward.1} parent=5 // pred_fallthru
        _
      %p289 = scmp.le.s32.totalorder 1, %s18
      %p290 = scmp.lt.s32.totalorder %s18, 3
      %p291 = pnand %p289, %p290
      %p292 = pneg %p291
      // Predicated region
      $region53: #{convnet_forward.1} parent=5 // pred_check
        _
      $region54: #{convnet_forward.1} parent=5 // pred_check_branch
        %294 = sbr.rel (%p291) target = $region56
      $region55: #{convnet_forward.1} parent=5 // pred_region
        %s295 = ssub.s32 %s18, 1
        %p296 = scmp.lt.s32.totalorder %s23, 1
        %s297 = scalar_select %p296, %s23, 1
        %s298 = smul.addr %s297, 2
        %s299 = smul.addr %s298, 8
        %s300 = scalar_lea.vmem %s0, %s299
        %p301 = pneg %p44
        %p302 = pneg %p41
        %p303 = pneg %p65
        %p304 = pneg %p62
        %p305 = pneg %p86
        %p306 = pneg %p83
        %p307 = pneg %p107
        %p308 = pneg %p104
        %p309 = pneg %p128
        %p310 = pneg %p125
        %p311 = pneg %p149
        %p312 = pneg %p146
        %p313 = pneg %p170
        %p314 = pneg %p167
        %p315 = pneg %p191
        %p316 = pneg %p188
        %p317 = pneg %p212
        %p318 = pneg %p209
        %p319 = pneg %p238
        %p320 = pneg %p235
        %s321 = sand.u32 %s225, 1
        %s322 = scalar_lea.sflag [#allocation3], %s321
        %s323 = sand.u32 %s225, 1
        %s324 = scalar_lea.vmem [#allocation2], %s323
        %p325 = scmp.lt.s32.totalorder %s23, 1
        %s326 = scalar_select %p325, %s23, 1
        %s327 = smul.addr %s326, 2
        %s328 = smul.addr %s327, 8
        %s329 = scalar_lea.vmem %s0, %s328
        %v331 = vld [vmem:[%s329] sm:$0xff]
        %v332 = vld [vmem:[%s329 + $0x8] sm:$0xff]
        %v334 = vrot.slane %v331, 4
        %335 = vrot.lane.b32.xlu0 %v334, 127
        %v336 = vpop.permute.xlu0 %335
        %v338 = vrot.slane %v331, 7
        %v340 = vrot.slane %v331, 3
        %341 = vrot.lane.b32.xlu0 %v340, 127
        %v342 = vpop.permute.xlu0 %341
        %v345 = vrot.slane %v332, 6
        %v347 = vrot.slane %v332, 2
        %348 = vrot.lane.b32.xlu0 %v347, 127
        %v349 = vpop.permute.xlu0 %348
        %v351 = vrot.slane %v332, 5
        %vm353 = vcmask 1043456
        %v354 = vsel %vm353, %v331, %v336
        %vm355 = vcmask 1044480
        %v356 = vsel %vm355, %v354, %v338
        %vm357 = vcmask 1045504
        %v358 = vsel %vm357, %v356, %v338
        %vm359 = vcmask 1046528
        %v360 = vsel %vm359, %v358, %v338
        %vm361 = vcmask 1040384
        %v362 = vsel %vm361, %v338, %v342
        %vm363 = vcmask 1041408
        %v364 = vsel %vm363, %v362, %v345
        %vm365 = vcmask 1042432
        %v366 = vsel %vm365, %v364, %v345
        %v367 = vsel %vm353, %v366, %v345
        %v368 = vsel %vm355, %v367, %v345
        %v369 = vsel %vm357, %v368, %v349
        %v370 = vsel %vm359, %v369, %v351
        %v371 = vrot.slane %v332, 1
        %372 = vrot.lane.b32.xlu0 %v371, 127
        %v373 = vpop.permute.xlu0 %372
        %375 = vrot.lane.b32.xlu0 %v334, 121
        %v376 = vpop.permute.xlu0 %375
        %378 = vrot.lane.b32.xlu0 %v331, 120
        %v379 = vpop.permute.xlu0 %378
        %v381 = vsel %vm363, %v351, %v351
        %v382 = vsel %vm365, %v381, %v373
        %v383 = vsel %vm353, %v382, %v376
        %v384 = vsel %vm355, %v383, %v376
        %v385 = vsel %vm357, %v384, %v376
        %v386 = vsel %vm359, %v385, %v376
        %v387 = vrot.slane %v331, 1
        %v389 = vrot.slane %v331, 5
        %390 = vrot.lane.b32.xlu0 %v389, 127
        %v391 = vpop.permute.xlu0 %390
        %v393 = vrot.slane %v332, 7
        %v395 = vrot.slane %v332, 3
        %396 = vrot.lane.b32.xlu0 %v395, 127
        %v397 = vpop.permute.xlu0 %396
        %v399 = vsel %vm363, %v387, %v387
        %v400 = vsel %vm365, %v399, %v391
        %v401 = vsel %vm353, %v400, %v391
        %v402 = vsel %vm355, %v401, %v331
        %v403 = vsel %vm357, %v402, %v331
        %v404 = vsel %vm359, %v403, %v331
        %v405 = vsel %vm363, %v336, %v393
        %v406 = vsel %vm365, %v405, %v393
        %v407 = vsel %vm353, %v406, %v393
        %v408 = vsel %vm355, %v407, %v397
        %v409 = vsel %vm357, %v408, %v397
        %v410 = vsel %vm359, %v409, %v345
        %411 = vrot.lane.b32.xlu0 %v389, 121
        %v412 = vpop.permute.xlu0 %411
        %414 = vrot.lane.b32.xlu0 %v387, 120
        %v415 = vpop.permute.xlu0 %414
        %v417 = vsel %vm363, %v345, %v349
        %v418 = vsel %vm365, %v417, %v349
        %v419 = vsel %vm353, %v418, %v412
        %v420 = vsel %vm355, %v419, %v412
        %v421 = vsel %vm357, %v420, %v412
        %v422 = vsel %vm359, %v421, %v415
        %424 = vrot.lane.b32.xlu0 %v331, 127
        %v425 = vpop.permute.xlu0 %424
        %428 = vrot.lane.b32.xlu0 %v393, 127
        %v429 = vpop.permute.xlu0 %428
        %432 = vrot.lane.b32.xlu0 %v345, 127
        %v433 = vpop.permute.xlu0 %432
        %435 = vrot.lane.b32.xlu0 %v387, 121
        %v436 = vpop.permute.xlu0 %435
        %v438 = vsel %vm363, %v334, %v334
        %v439 = vsel %vm365, %v438, %v334
        %v440 = vsel %vm353, %v439, %v425
        %v441 = vsel %vm355, %v440, %v395
        %v442 = vsel %vm357, %v441, %v395
        %v443 = vsel %vm359, %v442, %v395
        %v444 = vsel %vm361, %v395, %v429
        %v445 = vsel %vm363, %v444, %v347
        %v446 = vsel %vm365, %v445, %v347
        %v447 = vsel %vm353, %v446, %v347
        %v448 = vsel %vm355, %v447, %v347
        %v449 = vsel %vm357, %v448, %v433
        %v450 = vsel %vm359, %v449, %v436
        %v451 = vsel %vm353, %v400, %v331
        %v452 = vsel %vm355, %v451, %v331
        %v453 = vsel %vm357, %v452, %v331
        %v454 = vsel %vm359, %v453, %v331
        %456 = vrot.lane.b32.xlu0 %v454, 121
        %v457 = vpop.permute.xlu0 %456
        %458 = vrot.lane.b32.xlu0 %v336, 121
        %v459 = vpop.permute.xlu0 %458
        %461 = vrot.lane.b32.xlu0 %v387, 127
        %v462 = vpop.permute.xlu0 %461
        %v464 = vrot.slane %v332, 4
        %466 = vrot.lane.b32.xlu0 %v332, 127
        %v467 = vpop.permute.xlu0 %466
        %v469 = vrot.slane %v331, 2
        %470 = vrot.lane.b32.xlu0 %v469, 121
        %v471 = vpop.permute.xlu0 %470
        %v473 = vsel %vm363, %v389, %v389
        %v474 = vsel %vm365, %v473, %v462
        %v475 = vsel %vm353, %v474, %v462
        %v476 = vsel %vm355, %v475, %v464
        %v477 = vsel %vm357, %v476, %v464
        %v478 = vsel %vm359, %v477, %v464
        %v479 = vsel %vm363, %v467, %v395
        %v480 = vsel %vm365, %v479, %v395
        %v481 = vsel %vm353, %v480, %v395
        %v482 = vsel %vm355, %v481, %v429
        %v483 = vsel %vm357, %v482, %v429
        %v484 = vsel %vm359, %v483, %v471
        %v486 = vrot.slane %v331, 6
        %487 = vrot.lane.b32.xlu0 %v486, 127
        %v488 = vpop.permute.xlu0 %487
        %v490 = vsel %vm363, %v469, %v488
        %v491 = vsel %vm365, %v490, %v488
        %v492 = vsel %vm353, %v491, %v387
        %v493 = vsel %vm355, %v492, %v387
        %v494 = vsel %vm357, %v493, %v387
        %v495 = vsel %vm359, %v494, %v391
        %497 = vrot.lane.b32.xlu0 %v495, 121
        %v498 = vpop.permute.xlu0 %497
        %499 = vrot.lane.b32.xlu0 %v391, 121
        %v500 = vpop.permute.xlu0 %499
        %501 = vrot.lane.b32.xlu0 %v464, 127
        %v502 = vpop.permute.xlu0 %501
        %v504 = vsel %vm353, %v491, %v488
        %v505 = vsel %vm355, %v504, %v387
        %v506 = vsel %vm357, %v505, %v387
        %v507 = vsel %vm359, %v506, %v391
        %v508 = vsel %vm363, %v391, %v332
        %v509 = vsel %vm365, %v508, %v332
        %v510 = vsel %vm353, %v509, %v502
        %v511 = vsel %vm355, %v510, %v502
        %v512 = vsel %vm357, %v511, %v502
        %v513 = vsel %vm359, %v512, %v393
        %514 = vrot.lane.b32.xlu0 %v486, 121
        %v515 = vpop.permute.xlu0 %514
        %517 = vrot.lane.b32.xlu0 %v469, 120
        %v518 = vpop.permute.xlu0 %517
        %v520 = vsel %vm361, %v393, %v397
        %v521 = vsel %vm363, %v520, %v397
        %v522 = vsel %vm365, %v521, %v397
        %v523 = vsel %vm353, %v522, %v515
        %v524 = vsel %vm355, %v523, %v515
        %v525 = vsel %vm357, %v524, %v518
        %v526 = vsel %vm359, %v525, %v518
        %528 = vrot.lane.b32.xlu0 %v338, 127
        %v529 = vpop.permute.xlu0 %528
        %532 = vrot.lane.b32.xlu0 %v351, 127
        %v533 = vpop.permute.xlu0 %532
        %v535 = vsel %vm361, %v340, %v529
        %v536 = vsel %vm363, %v535, %v529
        %v537 = vsel %vm365, %v536, %v529
        %v538 = vsel %vm353, %v537, %v529
        %v539 = vsel %vm355, %v538, %v469
        %v540 = vsel %vm357, %v539, %v488
        %v541 = vsel %vm359, %v540, %v488
        %v542 = vsel %vm363, %v488, %v371
        %v543 = vsel %vm365, %v542, %v533
        %v544 = vsel %vm353, %v543, %v533
        %v545 = vsel %vm355, %v544, %v533
        %v546 = vsel %vm357, %v545, %v533
        %v547 = vsel %vm359, %v546, %v332
        %548 = vrot.lane.b32.xlu0 %v338, 122
        %v549 = vpop.permute.xlu0 %548
        %551 = vrot.lane.b32.xlu0 %v340, 121
        %v552 = vpop.permute.xlu0 %551
        %v554 = vsel %vm363, %v464, %v464
        %v555 = vsel %vm365, %v554, %v464
        %v556 = vsel %vm353, %v555, %v549
        %v557 = vsel %vm355, %v556, %v552
        %v558 = vsel %vm357, %v557, %v552
        %v559 = vsel %vm359, %v558, %v552
        %561 = vrot.lane.b32.xlu0 %v559, 127
        %v562 = vpop.permute.xlu0 %561
        %563 = vrot.lane.b32.xlu0 %v552, 127
        %v564 = vpop.permute.xlu0 %563
        %566 = vrot.lane.b32.xlu0 %v469, 127
        %v567 = vpop.permute.xlu0 %566
        %v569 = vsel %vm363, %v486, %v567
        %v570 = vsel %vm365, %v569, %v567
        %v571 = vsel %vm353, %v570, %v567
        %v572 = vsel %vm355, %v571, %v351
        %v573 = vsel %vm357, %v572, %v351
        %v574 = vsel %vm359, %v573, %v373
        %v575 = vsel %vm363, %v373, %v464
        %v576 = vsel %vm365, %v575, %v464
        %v577 = vsel %vm353, %v576, %v467
        %v578 = vsel %vm355, %v577, %v467
        %v579 = vsel %vm357, %v578, %v467
        %v580 = vsel %vm359, %v579, %v552
        %v581 = vsel %vm353, %v537, %v469
        %v582 = vsel %vm355, %v581, %v469
        %v583 = vsel %vm357, %v582, %v488
        %v584 = vsel %vm359, %v583, %v488
        %586 = vrot.lane.b32.xlu0 %v584, 121
        %v587 = vpop.permute.xlu0 %586
        %588 = vrot.lane.b32.xlu0 %v488, 121
        %v589 = vpop.permute.xlu0 %588
        %v590 = vsel %vm363, %v362, %v342
        %v591 = vsel %vm365, %v590, %v342
        %v592 = vsel %vm353, %v591, %v342
        %v593 = vsel %vm355, %v592, %v345
        %v594 = vsel %vm357, %v593, %v349
        %v595 = vsel %vm359, %v594, %v349
        %v596 = vsel %vm363, %v349, %v351
        %v597 = vsel %vm365, %v596, %v373
        %v598 = vsel %vm353, %v597, %v373
        %v599 = vsel %vm355, %v598, %v373
        %v600 = vsel %vm357, %v599, %v373
        %v601 = vsel %vm359, %v600, %v376
        %602 = vrot.lane.b32.xlu0 %v340, 1
        %v603 = vpop.permute.xlu0 %602
        %v605 = vsel %vm353, %v331, %v603
        %v606 = vsel %vm355, %v605, %v338
        %v607 = vsel %vm357, %v606, %v338
        %v608 = vsel %vm359, %v607, %v338
        %610 = vrot.lane.b32.xlu0 %v608, 120
        %v611 = vpop.permute.xlu0 %610
        %612 = vrot.lane.b32.xlu0 %v338, 120
        %v613 = vpop.permute.xlu0 %612
        %v614 = vsel %vm353, %v332, %v502
        %v615 = vsel %vm355, %v614, %v393
        %v616 = vsel %vm357, %v615, %v393
        %v617 = vsel %vm359, %v616, %v393
        %v618 = vsel %vm363, %v520, %v515
        %v619 = vsel %vm365, %v618, %v515
        %v620 = vsel %vm353, %v619, %v515
        %v621 = vsel %vm355, %v620, %v515
        %v622 = vsel %vm357, %v621, %v518
        %v623 = vsel %vm359, %v622, %v412
        %v624 = vsel %vm353, %v474, %v464
        %v625 = vsel %vm355, %v624, %v464
        %v626 = vsel %vm357, %v625, %v464
        %v627 = vsel %vm359, %v626, %v464
        %629 = vrot.lane.b32.xlu0 %v627, 121
        %v630 = vpop.permute.xlu0 %629
        %631 = vrot.lane.b32.xlu0 %v467, 121
        %v632 = vpop.permute.xlu0 %631
        %633 = vrot.lane.b32.xlu0 %v338, 121
        %v634 = vpop.permute.xlu0 %633
        %636 = vrot.lane.b32.xlu0 %v340, 120
        %v637 = vpop.permute.xlu0 %636
        %v639 = vsel %vm363, %v371, %v371
        %v640 = vsel %vm365, %v639, %v533
        %v641 = vsel %vm353, %v640, %v533
        %v642 = vsel %vm355, %v641, %v332
        %v643 = vsel %vm357, %v642, %v332
        %v644 = vsel %vm359, %v643, %v332
        %v645 = vsel %vm363, %v502, %v634
        %v646 = vsel %vm365, %v645, %v634
        %v647 = vsel %vm353, %v646, %v634
        %v648 = vsel %vm355, %v647, %v637
        %v649 = vsel %vm357, %v648, %v637
        %v650 = vsel %vm359, %v649, %v515
        %v651 = vsel %vm353, %v570, %v351
        %v652 = vsel %vm355, %v651, %v351
        %v653 = vsel %vm357, %v652, %v351
        %v654 = vsel %vm359, %v653, %v373
        %656 = vrot.lane.b32.xlu0 %v654, 121
        %v657 = vpop.permute.xlu0 %656
        %658 = vrot.lane.b32.xlu0 %v373, 121
        %v659 = vpop.permute.xlu0 %658
        %661 = vrot.lane.b32.xlu0 %v486, 120
        %v662 = vpop.permute.xlu0 %661
        %664 = vrot.lane.b32.xlu0 %v371, 121
        %v665 = vpop.permute.xlu0 %664
        %v667 = vsel %vm353, %v555, %v467
        %v668 = vsel %vm355, %v667, %v552
        %v669 = vsel %vm357, %v668, %v552
        %v670 = vsel %vm359, %v669, %v552
        %v671 = vsel %vm361, %v552, %v613
        %v672 = vsel %vm363, %v671, %v471
        %v673 = vsel %vm365, %v672, %v471
        %v674 = vsel %vm353, %v673, %v471
        %v675 = vsel %vm355, %v674, %v471
        %v676 = vsel %vm357, %v675, %v662
        %v677 = vsel %vm359, %v676, %v665
        %v678 = vsel %vm353, %v640, %v332
        %v679 = vsel %vm355, %v678, %v332
        %v680 = vsel %vm357, %v679, %v332
        %v681 = vsel %vm359, %v680, %v332
        %683 = vrot.lane.b32.xlu0 %v681, 121
        %v684 = vpop.permute.xlu0 %683
        %685 = vrot.lane.b32.xlu0 %v502, 121
        %v686 = vpop.permute.xlu0 %685
        %687 = vrot.lane.b32.xlu0 %v347, 121
        %v688 = vpop.permute.xlu0 %687
        %v690 = vsel %vm353, %v382, %v373
        %v691 = vsel %vm355, %v690, %v376
        %v692 = vsel %vm357, %v691, %v376
        %v693 = vsel %vm359, %v692, %v376
        %v694 = vsel %vm363, %v379, %v552
        %v695 = vsel %vm365, %v694, %v552
        %v696 = vsel %vm353, %v695, %v552
        %v697 = vsel %vm355, %v696, %v613
        %v698 = vsel %vm357, %v697, %v613
        %v699 = vsel %vm359, %v698, %v688
        %v700 = vsel %vm363, %v347, %v433
        %v701 = vsel %vm365, %v700, %v433
        %v702 = vsel %vm353, %v701, %v371
        %v703 = vsel %vm355, %v702, %v371
        %v704 = vsel %vm357, %v703, %v371
        %v705 = vsel %vm359, %v704, %v533
        %707 = vrot.lane.b32.xlu0 %v705, 121
        %v708 = vpop.permute.xlu0 %707
        %709 = vrot.lane.b32.xlu0 %v533, 121
        %v710 = vpop.permute.xlu0 %709
        %711 = vrot.lane.b32.xlu0 %v331, 121
        %v712 = vpop.permute.xlu0 %711
        %714 = vrot.lane.b32.xlu0 %v334, 120
        %v715 = vpop.permute.xlu0 %714
        %v717 = vsel %vm353, %v701, %v433
        %v718 = vsel %vm355, %v717, %v371
        %v719 = vsel %vm357, %v718, %v371
        %v720 = vsel %vm359, %v719, %v533
        %v721 = vsel %vm363, %v533, %v712
        %v722 = vsel %vm365, %v721, %v712
        %v723 = vsel %vm353, %v722, %v715
        %v724 = vsel %vm355, %v723, %v715
        %v725 = vsel %vm357, %v724, %v715
        %v726 = vsel %vm359, %v725, %v634
        %v727 = vsel %vm353, %v591, %v345
        %v728 = vsel %vm355, %v727, %v345
        %v729 = vsel %vm357, %v728, %v349
        %v730 = vsel %vm359, %v729, %v349
        %732 = vrot.lane.b32.xlu0 %v730, 121
        %v733 = vpop.permute.xlu0 %732
        %734 = vrot.lane.b32.xlu0 %v349, 121
        %v735 = vpop.permute.xlu0 %734
        %736 = vrot.lane.b32.xlu0 %v389, 120
        %v737 = vpop.permute.xlu0 %736
        %v739 = vsel %vm363, %v444, %v429
        %v740 = vsel %vm365, %v739, %v429
        %v741 = vsel %vm353, %v740, %v429
        %v742 = vsel %vm355, %v741, %v347
        %v743 = vsel %vm357, %v742, %v433
        %v744 = vsel %vm359, %v743, %v433
        %v745 = vsel %vm363, %v433, %v436
        %v746 = vsel %vm365, %v745, %v737
        %v747 = vsel %vm353, %v746, %v737
        %v748 = vsel %vm355, %v747, %v737
        %v749 = vsel %vm357, %v748, %v737
        %v750 = vsel %vm359, %v749, %v712
        %751 = vrot.lane.b32.xlu0 %v393, 1
        %v752 = vpop.permute.xlu0 %751
        %v754 = vsel %vm353, %v439, %v752
        %v755 = vsel %vm355, %v754, %v395
        %v756 = vsel %vm357, %v755, %v395
        %v757 = vsel %vm359, %v756, %v395
        %759 = vrot.lane.b32.xlu0 %v757, 120
        %v760 = vpop.permute.xlu0 %759
        %761 = vrot.lane.b32.xlu0 %v395, 120
        %v762 = vpop.permute.xlu0 %761
        %763 = vrot.lane.b32.xlu0 %v395, 121
        %v764 = vpop.permute.xlu0 %763
        %v766 = vsel %vm353, %v418, %v349
        %v767 = vsel %vm355, %v766, %v412
        %v768 = vsel %vm357, %v767, %v412
        %v769 = vsel %vm359, %v768, %v415
        %v770 = vsel %vm363, %v415, %v376
        %v771 = vsel %vm365, %v770, %v376
        %v772 = vsel %vm353, %v771, %v379
        %v773 = vsel %vm355, %v772, %v379
        %v774 = vsel %vm357, %v773, %v379
        %v775 = vsel %vm359, %v774, %v764
        %v776 = vsel %vm353, %v740, %v347
        %v777 = vsel %vm355, %v776, %v347
        %v778 = vsel %vm357, %v777, %v433
        %v779 = vsel %vm359, %v778, %v433
        %781 = vrot.lane.b32.xlu0 %v779, 121
        %v782 = vpop.permute.xlu0 %781
        %783 = vrot.lane.b32.xlu0 %v433, 121
        %v784 = vpop.permute.xlu0 %783
        %785 = vrot.lane.b32.xlu0 %v464, 121
        %v786 = vpop.permute.xlu0 %785
        %v788 = vsel %vm353, %v522, %v397
        %v789 = vsel %vm355, %v788, %v515
        %v790 = vsel %vm357, %v789, %v518
        %v791 = vsel %vm359, %v790, %v518
        %v792 = vsel %vm363, %v518, %v412
        %v793 = vsel %vm365, %v792, %v415
        %v794 = vsel %vm353, %v793, %v415
        %v795 = vsel %vm355, %v794, %v415
        %v796 = vsel %vm357, %v795, %v415
        %v797 = vsel %vm359, %v796, %v786
        %798 = vrot.lane.b32.xlu0 %v395, 1
        %v799 = vpop.permute.xlu0 %798
        %v801 = vsel %vm353, %v332, %v799
        %v802 = vsel %vm355, %v801, %v393
        %v803 = vsel %vm357, %v802, %v393
        %v804 = vsel %vm359, %v803, %v393
        %806 = vrot.lane.b32.xlu0 %v804, 120
        %v807 = vpop.permute.xlu0 %806
        %808 = vrot.lane.b32.xlu0 %v393, 120
        %v809 = vpop.permute.xlu0 %808
        %813 = vrot.lane.b32.xlu0 %v404, 41
        %v814 = vpop.permute.xlu0 %813
        %815 = vrot.lane.b32.xlu0 %v410, 41
        %v816 = vpop.permute.xlu0 %815
        %817 = vrot.lane.b32.xlu0 %v422, 41
        %v818 = vpop.permute.xlu0 %817
        %819 = vrot.lane.b32.xlu0 %v415, 41
        %v820 = vpop.permute.xlu0 %819
        %827 = vrot.lane.b32.xlu0 %v443, 82
        %v828 = vpop.permute.xlu0 %827
        %829 = vrot.lane.b32.xlu0 %v450, 82
        %v830 = vpop.permute.xlu0 %829
        %831 = vrot.lane.b32.xlu0 %v457, 82
        %v832 = vpop.permute.xlu0 %831
        %833 = vrot.lane.b32.xlu0 %v459, 82
        %v834 = vpop.permute.xlu0 %833
        %841 = vrot.lane.b32.xlu0 %v478, 123
        %v842 = vpop.permute.xlu0 %841
        %843 = vrot.lane.b32.xlu0 %v484, 123
        %v844 = vpop.permute.xlu0 %843
        %845 = vrot.lane.b32.xlu0 %v498, 123
        %v846 = vpop.permute.xlu0 %845
        %847 = vrot.lane.b32.xlu0 %v500, 123
        %v848 = vpop.permute.xlu0 %847
        %856 = vrot.lane.b32.xlu0 %v507, 36
        %v857 = vpop.permute.xlu0 %856
        %858 = vrot.lane.b32.xlu0 %v513, 36
        %v859 = vpop.permute.xlu0 %858
        %860 = vrot.lane.b32.xlu0 %v526, 36
        %v861 = vpop.permute.xlu0 %860
        %862 = vrot.lane.b32.xlu0 %v518, 36
        %v863 = vpop.permute.xlu0 %862
        %870 = vrot.lane.b32.xlu0 %v541, 77
        %v871 = vpop.permute.xlu0 %870
        %872 = vrot.lane.b32.xlu0 %v547, 77
        %v873 = vpop.permute.xlu0 %872
        %874 = vrot.lane.b32.xlu0 %v562, 77
        %v875 = vpop.permute.xlu0 %874
        %876 = vrot.lane.b32.xlu0 %v564, 77
        %v877 = vpop.permute.xlu0 %876
        %884 = vrot.lane.b32.xlu0 %v574, 118
        %v885 = vpop.permute.xlu0 %884
        %886 = vrot.lane.b32.xlu0 %v580, 118
        %v887 = vpop.permute.xlu0 %886
        %888 = vrot.lane.b32.xlu0 %v587, 118
        %v889 = vpop.permute.xlu0 %888
        %890 = vrot.lane.b32.xlu0 %v589, 118
        %v891 = vpop.permute.xlu0 %890
        %898 = vrot.lane.b32.xlu0 %v595, 31
        %v899 = vpop.permute.xlu0 %898
        %900 = vrot.lane.b32.xlu0 %v601, 31
        %v901 = vpop.permute.xlu0 %900
        %902 = vrot.lane.b32.xlu0 %v611, 31
        %v903 = vpop.permute.xlu0 %902
        %904 = vrot.lane.b32.xlu0 %v613, 31
        %v905 = vpop.permute.xlu0 %904
        %912 = vrot.lane.b32.xlu0 %v617, 72
        %v913 = vpop.permute.xlu0 %912
        %914 = vrot.lane.b32.xlu0 %v623, 72
        %v915 = vpop.permute.xlu0 %914
        %916 = vrot.lane.b32.xlu0 %v630, 72
        %v917 = vpop.permute.xlu0 %916
        %918 = vrot.lane.b32.xlu0 %v632, 72
        %v919 = vpop.permute.xlu0 %918
        %926 = vrot.lane.b32.xlu0 %v644, 113
        %v927 = vpop.permute.xlu0 %926
        %928 = vrot.lane.b32.xlu0 %v650, 113
        %v929 = vpop.permute.xlu0 %928
        %930 = vrot.lane.b32.xlu0 %v657, 113
        %v931 = vpop.permute.xlu0 %930
        %932 = vrot.lane.b32.xlu0 %v659, 113
        %v933 = vpop.permute.xlu0 %932
        %940 = vrot.lane.b32.xlu0 %v670, 26
        %v941 = vpop.permute.xlu0 %940
        %942 = vrot.lane.b32.xlu0 %v677, 26
        %v943 = vpop.permute.xlu0 %942
        %944 = vrot.lane.b32.xlu0 %v684, 26
        %v945 = vpop.permute.xlu0 %944
        %946 = vrot.lane.b32.xlu0 %v686, 26
        %v947 = vpop.permute.xlu0 %946
        %954 = vrot.lane.b32.xlu0 %v693, 67
        %v955 = vpop.permute.xlu0 %954
        %956 = vrot.lane.b32.xlu0 %v699, 67
        %v957 = vpop.permute.xlu0 %956
        %958 = vrot.lane.b32.xlu0 %v708, 67
        %v959 = vpop.permute.xlu0 %958
        %960 = vrot.lane.b32.xlu0 %v710, 67
        %v961 = vpop.permute.xlu0 %960
        %968 = vrot.lane.b32.xlu0 %v720, 108
        %v969 = vpop.permute.xlu0 %968
        %970 = vrot.lane.b32.xlu0 %v726, 108
        %v971 = vpop.permute.xlu0 %970
        %972 = vrot.lane.b32.xlu0 %v733, 108
        %v973 = vpop.permute.xlu0 %972
        %974 = vrot.lane.b32.xlu0 %v735, 108
        %v975 = vpop.permute.xlu0 %974
        %982 = vrot.lane.b32.xlu0 %v744, 21
        %v983 = vpop.permute.xlu0 %982
        %984 = vrot.lane.b32.xlu0 %v750, 21
        %v985 = vpop.permute.xlu0 %984
        %986 = vrot.lane.b32.xlu0 %v760, 21
        %v987 = vpop.permute.xlu0 %986
        %988 = vrot.lane.b32.xlu0 %v762, 21
        %v989 = vpop.permute.xlu0 %988
        %996 = vrot.lane.b32.xlu0 %v769, 62
        %v997 = vpop.permute.xlu0 %996
        %998 = vrot.lane.b32.xlu0 %v775, 62
        %v999 = vpop.permute.xlu0 %998
        %1000 = vrot.lane.b32.xlu0 %v782, 62
        %v1001 = vpop.permute.xlu0 %1000
        %1002 = vrot.lane.b32.xlu0 %v784, 62
        %v1003 = vpop.permute.xlu0 %1002
        %1010 = vrot.lane.b32.xlu0 %v791, 103
        %v1011 = vpop.permute.xlu0 %1010
        %1012 = vrot.lane.b32.xlu0 %v797, 103
        %v1013 = vpop.permute.xlu0 %1012
        %1014 = vrot.lane.b32.xlu0 %v807, 103
        %v1015 = vpop.permute.xlu0 %1014
        %1016 = vrot.lane.b32.xlu0 %v809, 103
        %v1017 = vpop.permute.xlu0 %1016
        %vm1022 = vcmask 334848
        %v1023 = vsel %vm1022, %v360, %v814
        %v1024 = vsel %vm1022, %v370, %v816
        %v1025 = vsel %vm1022, %v386, %v818
        %v1026 = vsel %vm1022, %v379, %v820
        %vm1027 = vcmask 670720
        %v1028 = vsel %vm1027, %v1023, %v828
        %v1029 = vsel %vm1027, %v1024, %v830
        %v1030 = vsel %vm1027, %v1025, %v832
        %v1031 = vsel %vm1027, %v1026, %v834
        %vm1032 = vcmask 1006592
        %v1033 = vsel %vm1032, %v1028, %v842
        %v1034 = vsel %vm1032, %v1029, %v844
        %v1035 = vsel %vm1032, %v1030, %v846
        %v1036 = vsel %vm1032, %v1031, %v848
        %vm1037 = vcmask 293888
        %v1038 = vsel %vm1037, %v842, %v857
        %v1039 = vsel %vm1037, %v844, %v859
        %v1040 = vsel %vm1037, %v846, %v861
        %v1041 = vsel %vm1037, %v848, %v863
        %vm1042 = vcmask 629760
        %v1043 = vsel %vm1042, %v1038, %v871
        %v1044 = vsel %vm1042, %v1039, %v873
        %v1045 = vsel %vm1042, %v1040, %v875
        %v1046 = vsel %vm1042, %v1041, %v877
        %vm1047 = vcmask 965632
        %v1048 = vsel %vm1047, %v1043, %v885
        %v1049 = vsel %vm1047, %v1044, %v887
        %v1050 = vsel %vm1047, %v1045, %v889
        %v1051 = vsel %vm1047, %v1046, %v891
        %vm1052 = vcmask 252928
        %v1053 = vsel %vm1052, %v885, %v899
        %v1054 = vsel %vm1052, %v887, %v901
        %v1055 = vsel %vm1052, %v889, %v903
        %v1056 = vsel %vm1052, %v891, %v905
        %vm1057 = vcmask 588800
        %v1058 = vsel %vm1057, %v1053, %v913
        %v1059 = vsel %vm1057, %v1054, %v915
        %v1060 = vsel %vm1057, %v1055, %v917
        %v1061 = vsel %vm1057, %v1056, %v919
        %vm1062 = vcmask 924672
        %v1063 = vsel %vm1062, %v1058, %v927
        %v1064 = vsel %vm1062, %v1059, %v929
        %v1065 = vsel %vm1062, %v1060, %v931
        %v1066 = vsel %vm1062, %v1061, %v933
        %vm1067 = vcmask 211968
        %v1068 = vsel %vm1067, %v927, %v941
        %v1069 = vsel %vm1067, %v929, %v943
        %v1070 = vsel %vm1067, %v931, %v945
        %v1071 = vsel %vm1067, %v933, %v947
        %vm1072 = vcmask 547840
        %v1073 = vsel %vm1072, %v1068, %v955
        %v1074 = vsel %vm1072, %v1069, %v957
        %v1075 = vsel %vm1072, %v1070, %v959
        %v1076 = vsel %vm1072, %v1071, %v961
        %vm1077 = vcmask 883712
        %v1078 = vsel %vm1077, %v1073, %v969
        %v1079 = vsel %vm1077, %v1074, %v971
        %v1080 = vsel %vm1077, %v1075, %v973
        %v1081 = vsel %vm1077, %v1076, %v975
        %vm1082 = vcmask 171008
        %v1083 = vsel %vm1082, %v969, %v983
        %v1084 = vsel %vm1082, %v971, %v985
        %v1085 = vsel %vm1082, %v973, %v987
        %v1086 = vsel %vm1082, %v975, %v989
        %vm1087 = vcmask 506880
        %v1088 = vsel %vm1087, %v1083, %v997
        %v1089 = vsel %vm1087, %v1084, %v999
        %v1090 = vsel %vm1087, %v1085, %v1001
        %v1091 = vsel %vm1087, %v1086, %v1003
        %vm1092 = vcmask 842752
        %v1093 = vsel %vm1092, %v1088, %v1011
        %v1094 = vsel %vm1092, %v1089, %v1013
        %v1095 = vsel %vm1092, %v1090, %v1015
        %v1096 = vsel %vm1092, %v1091, %v1017
        %v1097 = vpack.c.bf16 %v1034, %v1033
        %v1098 = vpack.c.bf16 %v1049, %v1048
        %v1099 = vpack.c.bf16 %v1064, %v1063
        %v1100 = vpack.c.bf16 %v1079, %v1078
        %v1101 = vpack.c.bf16 %v1094, %v1093
        %v1102 = vpack.c.bf16 %v1013, %v1011
        %v1103 = vpack.c.bf16 %v1036, %v1035
        %v1104 = vpack.c.bf16 %v1051, %v1050
        %v1105 = vpack.c.bf16 %v1066, %v1065
        %v1106 = vpack.c.bf16 %v1081, %v1080
        %v1107 = vpack.c.bf16 %v1096, %v1095
        %v1108 = vpack.c.bf16 %v1017, %v1015
        %v1109 = vld [vmem:[%s1] sm:$0xf]
        %vm1110 = vcmask 203776
        %v1112 = vsel %vm1110, %v1109, 0
        %v1114 = vsel %vm353, 4294967295, 65535
        %v1115 = vsel %vm355, %v1114, 0
        %v1117 = vand.u32 %v1103, %v1115
        %v1120 = vand.u32 %v1104, %v1115
        %v1123 = vand.u32 %v1105, %v1115
        %v1126 = vand.u32 %v1106, %v1115
        %v1129 = vand.u32 %v1107, %v1115
        %v1132 = vand.u32 %v1108, %v1115
        %1134 = vmatprep.subr.bf16.mxu0 %v1098
        %1135 = vmatpush1.bf16.msra.mxu0 %v1097
        %1136 = vmatprep.subr.bf16.mxu0 %v1120
        %1137 = vmatpush1.bf16.msra.mxu0 %v1117
        %1138 = vmatprep.subr.bf16.mxu0 0
        %1139 = vmatpush1.bf16.msra.mxu0 0
        %1140 = vmatprep.subr.bf16.mxu0 0
        %1141 = vmatpush1.bf16.msra.mxu0 0
        %1142 = vmatprep.subr.bf16.mxu0 0
        %1143 = vmatpush1.bf16.msra.mxu0 0
        %1144 = vmatprep.subr.bf16.mxu0 0
        %1145 = vmatpush1.bf16.msra.mxu0 0
        %1146 = vmatprep.subr.bf16.mxu0 0
        %1147 = vmatpush1.bf16.msra.mxu0 0
        %1148 = vmatprep.subr.bf16.mxu0 0
        %1149 = vmatpush1.bf16.msra.mxu0 0
        %1150 = vmatprep.subr.bf16.mxu0 0
        %1151 = vmatpush1.bf16.msra.mxu0 0
        %1152 = vmatprep.subr.bf16.mxu0 0
        %1153 = vmatpush1.bf16.msra.mxu0 0
        %1154 = vmatprep.subr.bf16.mxu0 0
        %1155 = vmatpush1.bf16.msra.mxu0 0
        %1156 = vmatprep.subr.bf16.mxu0 0
        %1157 = vmatpush1.bf16.msra.mxu0 0
        %1158 = vmatprep.subr.bf16.mxu0 0
        %1159 = vmatpush1.bf16.msra.mxu0 0
        %1160 = vmatprep.subr.bf16.mxu0 0
        %1161 = vmatpush1.bf16.msra.mxu0 0
        %1162 = vmatprep.subr.bf16.mxu0 0
        %1163 = vmatpush1.bf16.msra.mxu0 0
        %1164 = vmatprep.subr.bf16.mxu0 0
        %1165 = vmatpush1.bf16.msra.mxu0 0
        %1166 = vmatprep.mubr.bf16.mxu0 0
        %1167 = vmatmul.mubr.bf16.gmra.mrb[0].mxu0 %v1112
        %v1168 = vpop.f32.mrb[0].mxu0
        %v1169 = vadd.f32 0.0, %v1168
        %v1170 = vpop.f32.mrb[0].mxu0
        %v1171 = vadd.f32 0.0, %v1170
        %v1172 = vpop.f32.mrb[0].mxu0
        %v1173 = vpop.f32.mrb[0].mxu0
        %1174 = vdwg.mxu0
        %1175 = vmatprep.subr.bf16.mxu0 %v1100
        %1176 = vmatpush1.bf16.msra.mxu0 %v1099
        %1177 = vmatprep.subr.bf16.mxu0 %v1126
        %1178 = vmatpush1.bf16.msra.mxu0 %v1123
        %1179 = vmatprep.subr.bf16.mxu0 0
        %1180 = vmatpush1.bf16.msra.mxu0 0
        %1181 = vmatprep.subr.bf16.mxu0 0
        %1182 = vmatpush1.bf16.msra.mxu0 0
        %1183 = vmatprep.subr.bf16.mxu0 0
        %1184 = vmatpush1.bf16.msra.mxu0 0
        %1185 = vmatprep.subr.bf16.mxu0 0
        %1186 = vmatpush1.bf16.msra.mxu0 0
        %1187 = vmatprep.subr.bf16.mxu0 0
        %1188 = vmatpush1.bf16.msra.mxu0 0
        %1189 = vmatprep.subr.bf16.mxu0 0
        %1190 = vmatpush1.bf16.msra.mxu0 0
        %1191 = vmatprep.subr.bf16.mxu0 0
        %1192 = vmatpush1.bf16.msra.mxu0 0
        %1193 = vmatprep.subr.bf16.mxu0 0
        %1194 = vmatpush1.bf16.msra.mxu0 0
        %1195 = vmatprep.subr.bf16.mxu0 0
        %1196 = vmatpush1.bf16.msra.mxu0 0
        %1197 = vmatprep.subr.bf16.mxu0 0
        %1198 = vmatpush1.bf16.msra.mxu0 0
        %1199 = vmatprep.subr.bf16.mxu0 0
        %1200 = vmatpush1.bf16.msra.mxu0 0
        %1201 = vmatprep.subr.bf16.mxu0 0
        %1202 = vmatpush1.bf16.msra.mxu0 0
        %1203 = vmatprep.subr.bf16.mxu0 0
        %1204 = vmatpush1.bf16.msra.mxu0 0
        %1205 = vmatprep.subr.bf16.mxu0 0
        %1206 = vmatpush1.bf16.msra.mxu0 0
        %1207 = vmatprep.mubr.bf16.mxu0 0
        %1208 = vmatmul.mubr.bf16.gmra.mrb[0].mxu0 %v1112
        %v1209 = vpop.f32.mrb[0].mxu0
        %v1210 = vadd.f32 0.0, %v1209
        %v1211 = vpop.f32.mrb[0].mxu0
        %v1212 = vadd.f32 0.0, %v1211
        %v1213 = vpop.f32.mrb[0].mxu0
        %v1214 = vpop.f32.mrb[0].mxu0
        %1215 = vdwg.mxu0
        %1216 = vmatprep.subr.bf16.mxu0 %v1102
        %1217 = vmatpush1.bf16.msra.mxu0 %v1101
        %1218 = vmatprep.subr.bf16.mxu0 %v1132
        %1219 = vmatpush1.bf16.msra.mxu0 %v1129
        %1220 = vmatprep.subr.bf16.mxu0 0
        %1221 = vmatpush1.bf16.msra.mxu0 0
        %1222 = vmatprep.subr.bf16.mxu0 0
        %1223 = vmatpush1.bf16.msra.mxu0 0
        %1224 = vmatprep.subr.bf16.mxu0 0
        %1225 = vmatpush1.bf16.msra.mxu0 0
        %1226 = vmatprep.subr.bf16.mxu0 0
        %1227 = vmatpush1.bf16.msra.mxu0 0
        %1228 = vmatprep.subr.bf16.mxu0 0
        %1229 = vmatpush1.bf16.msra.mxu0 0
        %1230 = vmatprep.subr.bf16.mxu0 0
        %1231 = vmatpush1.bf16.msra.mxu0 0
        %1232 = vmatprep.subr.bf16.mxu0 0
        %1233 = vmatpush1.bf16.msra.mxu0 0
        %1234 = vmatprep.subr.bf16.mxu0 0
        %1235 = vmatpush1.bf16.msra.mxu0 0
        %1236 = vmatprep.subr.bf16.mxu0 0
        %1237 = vmatpush1.bf16.msra.mxu0 0
        %1238 = vmatprep.subr.bf16.mxu0 0
        %1239 = vmatpush1.bf16.msra.mxu0 0
        %1240 = vmatprep.subr.bf16.mxu0 0
        %1241 = vmatpush1.bf16.msra.mxu0 0
        %1242 = vmatprep.subr.bf16.mxu0 0
        %1243 = vmatpush1.bf16.msra.mxu0 0
        %1244 = vmatprep.subr.bf16.mxu0 0
        %1245 = vmatpush1.bf16.msra.mxu0 0
        %1246 = vmatprep.subr.bf16.mxu0 0
        %1247 = vmatpush1.bf16.msra.mxu0 0
        %1248 = vmatprep.mubr.bf16.mxu0 0
        %1249 = vmatmul.mubr.bf16.gmra.mrb[0].mxu0 %v1112
        %v1250 = vpop.f32.mrb[0].mxu0
        %v1251 = vadd.f32 0.0, %v1250
        %v1252 = vpop.f32.mrb[0].mxu0
        %v1253 = vadd.f32 0.0, %v1252
        %v1254 = vpop.f32.mrb[0].mxu0
        %v1255 = vpop.f32.mrb[0].mxu0
        %1256 = vdwg.mxu0
        %1258 = vrot.lane.b32.xlu0 %v1169, 87
        %v1259 = vpop.permute.xlu0 %1258
        %v1261 = vmax.f32 %v1169, %v1259
        %1263 = vrot.lane.b32.xlu0 %v1171, 87
        %v1264 = vpop.permute.xlu0 %1263
        %vm1265 = vcmask 711680
        %v1266 = vsel %vm1265, %v1259, %v1264
        %v1268 = vmax.f32 %v1169, %v1266
        %1270 = vrot.lane.b32.xlu0 %v1268, 46
        %v1271 = vpop.permute.xlu0 %1270
        %v1273 = vmax.f32 %v1261, %v1271
        %v1274 = vld [vmem:[%s2] sm:$0xff]
        %1276 = vset.pattern.permute.xlu0 0
        %1277 = vperm.xlu0 %1276, %v1274
        %v1278 = vpop.permute.xlu0 %1277
        %v1280 = vadd.f32 %v1273, %v1278
        %v1281 = vmax.f32 %v1280, 0.0
        %v1283 = vmax.f32 %v1171, %v1264
        %1285 = vrot.lane.b32.xlu0 %v1210, 87
        %v1286 = vpop.permute.xlu0 %1285
        %v1288 = vmax.f32 %v1171, %v1286
        %v1289 = vmax.f32 %v1210, %v1286
        %1292 = vrot.lane.b32.xlu0 %v1288, 46
        %v1293 = vpop.permute.xlu0 %1292
        %1294 = vrot.lane.b32.xlu0 %v1289, 46
        %v1295 = vpop.permute.xlu0 %1294
        %vm1296 = vcmask 375808
        %v1297 = vsel %vm1296, %v1293, %v1295
        %v1299 = vmax.f32 %v1283, %v1297
        %v1300 = vadd.f32 %v1299, %v1278
        %v1301 = vmax.f32 %v1300, 0.0
        %1303 = vrot.lane.b32.xlu0 %v1212, 87
        %v1304 = vpop.permute.xlu0 %1303
        %v1305 = vsel %vm1265, %v1286, %v1304
        %v1307 = vmax.f32 %v1210, %v1305
        %v1309 = vmax.f32 %v1212, %v1304
        %1311 = vrot.lane.b32.xlu0 %v1309, 46
        %v1312 = vpop.permute.xlu0 %1311
        %v1314 = vmax.f32 %v1307, %v1312
        %v1315 = vadd.f32 %v1314, %v1278
        %v1316 = vmax.f32 %v1315, 0.0
        %1318 = vrot.lane.b32.xlu0 %v1251, 87
        %v1319 = vpop.permute.xlu0 %1318
        %v1321 = vmax.f32 %v1212, %v1319
        %v1322 = vmax.f32 %v1251, %v1319
        %1324 = vrot.lane.b32.xlu0 %v1253, 87
        %v1325 = vpop.permute.xlu0 %1324
        %v1326 = vsel %vm1265, %v1319, %v1325
        %v1328 = vmax.f32 %v1251, %v1326
        %1330 = vrot.lane.b32.xlu0 %v1328, 46
        %v1331 = vpop.permute.xlu0 %1330
        %v1333 = vmax.f32 %v1321, %v1331
        %v1334 = vmax.f32 %v1322, %v1331
        %v1335 = vadd.f32 %v1333, %v1278
        %v1336 = vadd.f32 %v1334, %v1278
        %v1337 = vmax.f32 %v1335, 0.0
        %v1338 = vmax.f32 %v1336, 0.0
        %1340 = vrot.lane.b32.xlu0 %v1301, 92
        %v1341 = vpop.permute.xlu0 %1340
        %1344 = vrot.lane.b32.xlu0 %v1281, 127
        %v1345 = vpop.permute.xlu0 %1344
        %1347 = vrot.lane.b32.xlu0 %v1301, 91
        %v1348 = vpop.permute.xlu0 %1347
        %1350 = vrot.lane.b32.xlu0 %v1281, 126
        %v1351 = vpop.permute.xlu0 %1350
        %1354 = vrot.lane.b32.xlu0 %v1316, 56
        %v1355 = vpop.permute.xlu0 %1354
        %1359 = vrot.lane.b32.xlu0 %v1337, 20
        %v1360 = vpop.permute.xlu0 %1359
        %1361 = vrot.lane.b32.xlu0 %v1338, 20
        %v1362 = vpop.permute.xlu0 %1361
        %vm1363 = vcmask 162816
        %v1364 = vsel %vm1363, %v1360, %v1362
        %1366 = vrot.lane.b32.xlu0 %v1316, 55
        %v1367 = vpop.permute.xlu0 %1366
        %1369 = vrot.lane.b32.xlu0 %v1337, 19
        %v1370 = vpop.permute.xlu0 %1369
        %1371 = vrot.lane.b32.xlu0 %v1338, 19
        %v1372 = vpop.permute.xlu0 %1371
        %vm1373 = vcmask 154624
        %v1374 = vsel %vm1373, %v1370, %v1372
        %1376 = vrot.lane.b32.xlu0 %v1316, 54
        %v1377 = vpop.permute.xlu0 %1376
        %1379 = vrot.lane.b32.xlu0 %v1281, 121
        %v1380 = vpop.permute.xlu0 %1379
        %1382 = vrot.lane.b32.xlu0 %v1301, 85
        %v1383 = vpop.permute.xlu0 %1382
        %1385 = vrot.lane.b32.xlu0 %v1281, 120
        %v1386 = vpop.permute.xlu0 %1385
        %1388 = vrot.lane.b32.xlu0 %v1301, 84
        %v1389 = vpop.permute.xlu0 %1388
        %1391 = vrot.lane.b32.xlu0 %v1281, 119
        %v1392 = vpop.permute.xlu0 %1391
        %1394 = vrot.lane.b32.xlu0 %v1316, 49
        %v1395 = vpop.permute.xlu0 %1394
        %1397 = vrot.lane.b32.xlu0 %v1316, 35
        %v1398 = vpop.permute.xlu0 %1397
        %1399 = vrot.lane.b32.xlu0 %v1337, 127
        %v1400 = vpop.permute.xlu0 %1399
        %1401 = vrot.lane.b32.xlu0 %v1338, 127
        %v1402 = vpop.permute.xlu0 %1401
        %vm1403 = vcmask 1039360
        %v1404 = vsel %vm1403, %v1400, %v1402
        %1405 = vrot.lane.b32.xlu0 %v1316, 34
        %v1406 = vpop.permute.xlu0 %1405
        %1407 = vrot.lane.b32.xlu0 %v1281, 101
        %v1408 = vpop.permute.xlu0 %1407
        %1409 = vrot.lane.b32.xlu0 %v1301, 65
        %v1410 = vpop.permute.xlu0 %1409
        %1411 = vrot.lane.b32.xlu0 %v1281, 100
        %v1412 = vpop.permute.xlu0 %1411
        %1413 = vrot.lane.b32.xlu0 %v1301, 64
        %v1414 = vpop.permute.xlu0 %1413
        %1415 = vrot.lane.b32.xlu0 %v1281, 99
        %v1416 = vpop.permute.xlu0 %1415
        %1417 = vrot.lane.b32.xlu0 %v1337, 13
        %v1418 = vpop.permute.xlu0 %1417
        %1419 = vrot.lane.b32.xlu0 %v1338, 13
        %v1420 = vpop.permute.xlu0 %1419
        %1421 = vrot.lane.b32.xlu0 %v1398, 13
        %v1422 = vpop.permute.xlu0 %1421
        %1423 = vrot.lane.b32.xlu0 %v1404, 13
        %v1424 = vpop.permute.xlu0 %1423
        %1425 = vrot.lane.b32.xlu0 %v1402, 13
        %v1426 = vpop.permute.xlu0 %1425
        %1427 = vrot.lane.b32.xlu0 %v1406, 13
        %v1428 = vpop.permute.xlu0 %1427
        %1429 = vrot.lane.b32.xlu0 %v1408, 13
        %v1430 = vpop.permute.xlu0 %1429
        %1431 = vrot.lane.b32.xlu0 %v1410, 13
        %v1432 = vpop.permute.xlu0 %1431
        %1433 = vrot.lane.b32.xlu0 %v1412, 13
        %v1434 = vpop.permute.xlu0 %1433
        %1435 = vrot.lane.b32.xlu0 %v1414, 13
        %v1436 = vpop.permute.xlu0 %1435
        %1437 = vrot.lane.b32.xlu0 %v1416, 13
        %v1438 = vpop.permute.xlu0 %1437
        %vm1439 = vcmask 105472
        %v1440 = vsel %vm1439, %v1418, %v1420
        %v1441 = vsel %vm1439, %v1424, %v1426
        %1451 = vrot.lane.b32.xlu0 %v1281, 35
        %v1452 = vpop.permute.xlu0 %1451
        %1453 = vrot.lane.b32.xlu0 %v1301, 127
        %v1454 = vpop.permute.xlu0 %1453
        %1455 = vrot.lane.b32.xlu0 %v1281, 34
        %v1456 = vpop.permute.xlu0 %1455
        %1457 = vrot.lane.b32.xlu0 %v1301, 126
        %v1458 = vpop.permute.xlu0 %1457
        %1459 = vrot.lane.b32.xlu0 %v1337, 56
        %v1460 = vpop.permute.xlu0 %1459
        %1461 = vrot.lane.b32.xlu0 %v1338, 56
        %v1462 = vpop.permute.xlu0 %1461
        %vm1463 = vcmask 457728
        %v1464 = vsel %vm1463, %v1460, %v1462
        %1465 = vrot.lane.b32.xlu0 %v1316, 91
        %v1466 = vpop.permute.xlu0 %1465
        %1467 = vrot.lane.b32.xlu0 %v1337, 55
        %v1468 = vpop.permute.xlu0 %1467
        %1469 = vrot.lane.b32.xlu0 %v1338, 55
        %v1470 = vpop.permute.xlu0 %1469
        %vm1471 = vcmask 449536
        %v1472 = vsel %vm1471, %v1468, %v1470
        %1473 = vrot.lane.b32.xlu0 %v1316, 90
        %v1474 = vpop.permute.xlu0 %1473
        %1475 = vrot.lane.b32.xlu0 %v1337, 54
        %v1476 = vpop.permute.xlu0 %1475
        %1477 = vrot.lane.b32.xlu0 %v1338, 54
        %v1478 = vpop.permute.xlu0 %1477
        %vm1479 = vcmask 441344
        %v1480 = vsel %vm1479, %v1476, %v1478
        %1481 = vrot.lane.b32.xlu0 %v1301, 121
        %v1482 = vpop.permute.xlu0 %1481
        %1483 = vrot.lane.b32.xlu0 %v1281, 28
        %v1484 = vpop.permute.xlu0 %1483
        %1485 = vrot.lane.b32.xlu0 %v1301, 120
        %v1486 = vpop.permute.xlu0 %1485
        %1487 = vrot.lane.b32.xlu0 %v1281, 27
        %v1488 = vpop.permute.xlu0 %1487
        %1489 = vrot.lane.b32.xlu0 %v1301, 119
        %v1490 = vpop.permute.xlu0 %1489
        %1491 = vrot.lane.b32.xlu0 %v1337, 49
        %v1492 = vpop.permute.xlu0 %1491
        %1493 = vrot.lane.b32.xlu0 %v1338, 49
        %v1494 = vpop.permute.xlu0 %1493
        %vm1495 = vcmask 400384
        %v1496 = vsel %vm1495, %v1492, %v1494
        %1497 = vrot.lane.b32.xlu0 %v1337, 92
        %v1498 = vpop.permute.xlu0 %1497
        %1499 = vrot.lane.b32.xlu0 %v1338, 92
        %v1500 = vpop.permute.xlu0 %1499
        %vm1501 = vcmask 752640
        %v1502 = vsel %vm1501, %v1498, %v1500
        %1503 = vrot.lane.b32.xlu0 %v1316, 127
        %v1504 = vpop.permute.xlu0 %1503
        %1505 = vrot.lane.b32.xlu0 %v1337, 91
        %v1506 = vpop.permute.xlu0 %1505
        %1507 = vrot.lane.b32.xlu0 %v1338, 91
        %v1508 = vpop.permute.xlu0 %1507
        %vm1509 = vcmask 744448
        %v1510 = vsel %vm1509, %v1506, %v1508
        %1511 = vrot.lane.b32.xlu0 %v1301, 30
        %v1512 = vpop.permute.xlu0 %1511
        %1513 = vrot.lane.b32.xlu0 %v1281, 65
        %v1514 = vpop.permute.xlu0 %1513
        %1515 = vrot.lane.b32.xlu0 %v1301, 29
        %v1516 = vpop.permute.xlu0 %1515
        %1517 = vrot.lane.b32.xlu0 %v1281, 64
        %v1518 = vpop.permute.xlu0 %1517
        %1519 = vrot.lane.b32.xlu0 %v1301, 28
        %v1520 = vpop.permute.xlu0 %1519
        %1521 = vrot.lane.b32.xlu0 %v1316, 84
        %v1522 = vpop.permute.xlu0 %1521
        %1523 = vrot.lane.b32.xlu0 %v1502, 84
        %v1524 = vpop.permute.xlu0 %1523
        %1525 = vrot.lane.b32.xlu0 %v1504, 84
        %v1526 = vpop.permute.xlu0 %1525
        %1527 = vrot.lane.b32.xlu0 %v1510, 84
        %v1528 = vpop.permute.xlu0 %1527
        %1529 = vrot.lane.b32.xlu0 %v1512, 84
        %v1530 = vpop.permute.xlu0 %1529
        %1531 = vrot.lane.b32.xlu0 %v1514, 84
        %v1532 = vpop.permute.xlu0 %1531
        %1533 = vrot.lane.b32.xlu0 %v1516, 84
        %v1534 = vpop.permute.xlu0 %1533
        %1535 = vrot.lane.b32.xlu0 %v1518, 84
        %v1536 = vpop.permute.xlu0 %1535
        %1537 = vrot.lane.b32.xlu0 %v1520, 84
        %v1538 = vpop.permute.xlu0 %1537
        %1539 = vrot.lane.b32.xlu0 %v1316, 126
        %v1540 = vpop.permute.xlu0 %1539
        %1541 = vrot.lane.b32.xlu0 %v1281, 63
        %v1542 = vpop.permute.xlu0 %1541
        %1543 = vrot.lane.b32.xlu0 %v1316, 121
        %v1544 = vpop.permute.xlu0 %1543
        %1545 = vrot.lane.b32.xlu0 %v1337, 85
        %v1546 = vpop.permute.xlu0 %1545
        %1547 = vrot.lane.b32.xlu0 %v1338, 85
        %v1548 = vpop.permute.xlu0 %1547
        %vm1549 = vcmask 695296
        %v1550 = vsel %vm1549, %v1546, %v1548
        %1551 = vrot.lane.b32.xlu0 %v1316, 120
        %v1552 = vpop.permute.xlu0 %1551
        %1553 = vrot.lane.b32.xlu0 %v1337, 84
        %v1554 = vpop.permute.xlu0 %1553
        %1555 = vrot.lane.b32.xlu0 %v1338, 84
        %v1556 = vpop.permute.xlu0 %1555
        %vm1557 = vcmask 687104
        %v1558 = vsel %vm1557, %v1554, %v1556
        %1559 = vrot.lane.b32.xlu0 %v1316, 119
        %v1560 = vpop.permute.xlu0 %1559
        %1561 = vrot.lane.b32.xlu0 %v1281, 58
        %v1562 = vpop.permute.xlu0 %1561
        %1563 = vrot.lane.b32.xlu0 %v1316, 92
        %v1564 = vpop.permute.xlu0 %1563
        %1565 = vrot.lane.b32.xlu0 %v1301, 22
        %v1566 = vpop.permute.xlu0 %1565
        %1567 = vrot.lane.b32.xlu0 %v1452, 22
        %v1568 = vpop.permute.xlu0 %1567
        %1569 = vrot.lane.b32.xlu0 %v1454, 22
        %v1570 = vpop.permute.xlu0 %1569
        %1571 = vrot.lane.b32.xlu0 %v1456, 22
        %v1572 = vpop.permute.xlu0 %1571
        %1573 = vrot.lane.b32.xlu0 %v1564, 22
        %v1574 = vpop.permute.xlu0 %1573
        %1575 = vrot.lane.b32.xlu0 %v1464, 22
        %v1576 = vpop.permute.xlu0 %1575
        %1577 = vrot.lane.b32.xlu0 %v1466, 22
        %v1578 = vpop.permute.xlu0 %1577
        %1579 = vrot.lane.b32.xlu0 %v1472, 22
        %v1580 = vpop.permute.xlu0 %1579
        %1581 = vrot.lane.b32.xlu0 %v1474, 22
        %v1582 = vpop.permute.xlu0 %1581
        %1583 = vrot.lane.b32.xlu0 %v1337, 126
        %v1584 = vpop.permute.xlu0 %1583
        %1585 = vrot.lane.b32.xlu0 %v1338, 126
        %v1586 = vpop.permute.xlu0 %1585
        %vm1587 = vcmask 1031168
        %v1588 = vsel %vm1587, %v1584, %v1586
        %1589 = vrot.lane.b32.xlu0 %v1301, 63
        %v1590 = vpop.permute.xlu0 %1589
        %1591 = vrot.lane.b32.xlu0 %v1337, 121
        %v1592 = vpop.permute.xlu0 %1591
        %1593 = vrot.lane.b32.xlu0 %v1338, 121
        %v1594 = vpop.permute.xlu0 %1593
        %vm1595 = vcmask 990208
        %v1596 = vsel %vm1595, %v1592, %v1594
        %1597 = vrot.lane.b32.xlu0 %v1316, 28
        %v1598 = vpop.permute.xlu0 %1597
        %1599 = vrot.lane.b32.xlu0 %v1337, 120
        %v1600 = vpop.permute.xlu0 %1599
        %1601 = vrot.lane.b32.xlu0 %v1338, 120
        %v1602 = vpop.permute.xlu0 %1601
        %vm1603 = vcmask 982016
        %v1604 = vsel %vm1603, %v1600, %v1602
        %1605 = vrot.lane.b32.xlu0 %v1316, 27
        %v1606 = vpop.permute.xlu0 %1605
        %1607 = vrot.lane.b32.xlu0 %v1337, 119
        %v1608 = vpop.permute.xlu0 %1607
        %1609 = vrot.lane.b32.xlu0 %v1338, 119
        %v1610 = vpop.permute.xlu0 %1609
        %vm1611 = vcmask 973824
        %v1612 = vsel %vm1611, %v1608, %v1610
        %1613 = vrot.lane.b32.xlu0 %v1301, 58
        %v1614 = vpop.permute.xlu0 %1613
        %1615 = vrot.lane.b32.xlu0 %v1337, 21
        %v1616 = vpop.permute.xlu0 %1615
        %1617 = vrot.lane.b32.xlu0 %v1338, 21
        %v1618 = vpop.permute.xlu0 %1617
        %v1619 = vsel %vm1082, %v1616, %v1618
        %1620 = vrot.lane.b32.xlu0 %v1281, 93
        %v1621 = vpop.permute.xlu0 %1620
        %1622 = vrot.lane.b32.xlu0 %v1341, 93
        %v1623 = vpop.permute.xlu0 %1622
        %1624 = vrot.lane.b32.xlu0 %v1345, 93
        %v1625 = vpop.permute.xlu0 %1624
        %1626 = vrot.lane.b32.xlu0 %v1348, 93
        %v1627 = vpop.permute.xlu0 %1626
        %1628 = vrot.lane.b32.xlu0 %v1619, 93
        %v1629 = vpop.permute.xlu0 %1628
        %1630 = vrot.lane.b32.xlu0 %v1355, 93
        %v1631 = vpop.permute.xlu0 %1630
        %1632 = vrot.lane.b32.xlu0 %v1364, 93
        %v1633 = vpop.permute.xlu0 %1632
        %1634 = vrot.lane.b32.xlu0 %v1367, 93
        %v1635 = vpop.permute.xlu0 %1634
        %1636 = vrot.lane.b32.xlu0 %v1374, 93
        %v1637 = vpop.permute.xlu0 %1636
        %1638 = vrot.lane.b32.xlu0 %v1301, 117
        %v1639 = vpop.permute.xlu0 %1638
        %1640 = vrot.lane.b32.xlu0 %v1452, 117
        %v1641 = vpop.permute.xlu0 %1640
        %1642 = vrot.lane.b32.xlu0 %v1454, 117
        %v1643 = vpop.permute.xlu0 %1642
        %1644 = vrot.lane.b32.xlu0 %v1456, 117
        %v1645 = vpop.permute.xlu0 %1644
        %1646 = vrot.lane.b32.xlu0 %v1458, 117
        %v1647 = vpop.permute.xlu0 %1646
        %1648 = vrot.lane.b32.xlu0 %v1464, 117
        %v1649 = vpop.permute.xlu0 %1648
        %1650 = vrot.lane.b32.xlu0 %v1466, 117
        %v1651 = vpop.permute.xlu0 %1650
        %1652 = vrot.lane.b32.xlu0 %v1472, 117
        %v1653 = vpop.permute.xlu0 %1652
        %1654 = vrot.lane.b32.xlu0 %v1474, 117
        %v1655 = vpop.permute.xlu0 %1654
        %1656 = vrot.lane.b32.xlu0 %v1480, 117
        %v1657 = vpop.permute.xlu0 %1656
        %1658 = vrot.lane.b32.xlu0 %v1482, 117
        %v1659 = vpop.permute.xlu0 %1658
        %1660 = vrot.lane.b32.xlu0 %v1484, 117
        %v1661 = vpop.permute.xlu0 %1660
        %1662 = vrot.lane.b32.xlu0 %v1486, 117
        %v1663 = vpop.permute.xlu0 %1662
        %1664 = vrot.lane.b32.xlu0 %v1488, 117
        %v1665 = vpop.permute.xlu0 %1664
        %1666 = vrot.lane.b32.xlu0 %v1490, 117
        %v1667 = vpop.permute.xlu0 %1666
        %1668 = vrot.lane.b32.xlu0 %v1496, 117
        %v1669 = vpop.permute.xlu0 %1668
        %1670 = vrot.lane.b32.xlu0 %v1522, 117
        %v1671 = vpop.permute.xlu0 %1670
        %1672 = vrot.lane.b32.xlu0 %v1524, 117
        %v1673 = vpop.permute.xlu0 %1672
        %1674 = vrot.lane.b32.xlu0 %v1526, 117
        %v1675 = vpop.permute.xlu0 %1674
        %1676 = vrot.lane.b32.xlu0 %v1528, 117
        %v1677 = vpop.permute.xlu0 %1676
        %1678 = vrot.lane.b32.xlu0 %v1530, 117
        %v1679 = vpop.permute.xlu0 %1678
        %1680 = vrot.lane.b32.xlu0 %v1532, 117
        %v1681 = vpop.permute.xlu0 %1680
        %1682 = vrot.lane.b32.xlu0 %v1534, 117
        %v1683 = vpop.permute.xlu0 %1682
        %1684 = vrot.lane.b32.xlu0 %v1536, 117
        %v1685 = vpop.permute.xlu0 %1684
        %1686 = vrot.lane.b32.xlu0 %v1538, 117
        %v1687 = vpop.permute.xlu0 %1686
        %1713 = vrot.lane.b32.xlu0 %v1316, 106
        %v1714 = vpop.permute.xlu0 %1713
        %1715 = vrot.lane.b32.xlu0 %v1502, 106
        %v1716 = vpop.permute.xlu0 %1715
        %1717 = vrot.lane.b32.xlu0 %v1504, 106
        %v1718 = vpop.permute.xlu0 %1717
        %1719 = vrot.lane.b32.xlu0 %v1510, 106
        %v1720 = vpop.permute.xlu0 %1719
        %1721 = vrot.lane.b32.xlu0 %v1540, 106
        %v1722 = vpop.permute.xlu0 %1721
        %1723 = vrot.lane.b32.xlu0 %v1514, 106
        %v1724 = vpop.permute.xlu0 %1723
        %1725 = vrot.lane.b32.xlu0 %v1516, 106
        %v1726 = vpop.permute.xlu0 %1725
        %1727 = vrot.lane.b32.xlu0 %v1518, 106
        %v1728 = vpop.permute.xlu0 %1727
        %1729 = vrot.lane.b32.xlu0 %v1520, 106
        %v1730 = vpop.permute.xlu0 %1729
        %1731 = vrot.lane.b32.xlu0 %v1542, 106
        %v1732 = vpop.permute.xlu0 %1731
        %1733 = vrot.lane.b32.xlu0 %v1544, 106
        %v1734 = vpop.permute.xlu0 %1733
        %1735 = vrot.lane.b32.xlu0 %v1550, 106
        %v1736 = vpop.permute.xlu0 %1735
        %1737 = vrot.lane.b32.xlu0 %v1552, 106
        %v1738 = vpop.permute.xlu0 %1737
        %1739 = vrot.lane.b32.xlu0 %v1558, 106
        %v1740 = vpop.permute.xlu0 %1739
        %1741 = vrot.lane.b32.xlu0 %v1560, 106
        %v1742 = vpop.permute.xlu0 %1741
        %1743 = vrot.lane.b32.xlu0 %v1562, 106
        %v1744 = vpop.permute.xlu0 %1743
        %1745 = vrot.lane.b32.xlu0 %v1566, 106
        %v1746 = vpop.permute.xlu0 %1745
        %1747 = vrot.lane.b32.xlu0 %v1568, 106
        %v1748 = vpop.permute.xlu0 %1747
        %1749 = vrot.lane.b32.xlu0 %v1570, 106
        %v1750 = vpop.permute.xlu0 %1749
        %1751 = vrot.lane.b32.xlu0 %v1572, 106
        %v1752 = vpop.permute.xlu0 %1751
        %1753 = vrot.lane.b32.xlu0 %v1574, 106
        %v1754 = vpop.permute.xlu0 %1753
        %1755 = vrot.lane.b32.xlu0 %v1576, 106
        %v1756 = vpop.permute.xlu0 %1755
        %1757 = vrot.lane.b32.xlu0 %v1578, 106
        %v1758 = vpop.permute.xlu0 %1757
        %1759 = vrot.lane.b32.xlu0 %v1580, 106
        %v1760 = vpop.permute.xlu0 %1759
        %1761 = vrot.lane.b32.xlu0 %v1582, 106
        %v1762 = vpop.permute.xlu0 %1761
        %1788 = vrot.lane.b32.xlu0 %v1337, 95
        %v1789 = vpop.permute.xlu0 %1788
        %1790 = vrot.lane.b32.xlu0 %v1338, 95
        %v1791 = vpop.permute.xlu0 %1790
        %1792 = vrot.lane.b32.xlu0 %v1398, 95
        %v1793 = vpop.permute.xlu0 %1792
        %1794 = vrot.lane.b32.xlu0 %v1404, 95
        %v1795 = vpop.permute.xlu0 %1794
        %1796 = vrot.lane.b32.xlu0 %v1402, 95
        %v1797 = vpop.permute.xlu0 %1796
        %1798 = vrot.lane.b32.xlu0 %v1406, 95
        %v1799 = vpop.permute.xlu0 %1798
        %1800 = vrot.lane.b32.xlu0 %v1588, 95
        %v1801 = vpop.permute.xlu0 %1800
        %1802 = vrot.lane.b32.xlu0 %v1586, 95
        %v1803 = vpop.permute.xlu0 %1802
        %1804 = vrot.lane.b32.xlu0 %v1410, 95
        %v1805 = vpop.permute.xlu0 %1804
        %1806 = vrot.lane.b32.xlu0 %v1412, 95
        %v1807 = vpop.permute.xlu0 %1806
        %1808 = vrot.lane.b32.xlu0 %v1414, 95
        %v1809 = vpop.permute.xlu0 %1808
        %1810 = vrot.lane.b32.xlu0 %v1416, 95
        %v1811 = vpop.permute.xlu0 %1810
        %1812 = vrot.lane.b32.xlu0 %v1590, 95
        %v1813 = vpop.permute.xlu0 %1812
        %1814 = vrot.lane.b32.xlu0 %v1596, 95
        %v1815 = vpop.permute.xlu0 %1814
        %1816 = vrot.lane.b32.xlu0 %v1594, 95
        %v1817 = vpop.permute.xlu0 %1816
        %1818 = vrot.lane.b32.xlu0 %v1598, 95
        %v1819 = vpop.permute.xlu0 %1818
        %1820 = vrot.lane.b32.xlu0 %v1604, 95
        %v1821 = vpop.permute.xlu0 %1820
        %1822 = vrot.lane.b32.xlu0 %v1602, 95
        %v1823 = vpop.permute.xlu0 %1822
        %1824 = vrot.lane.b32.xlu0 %v1606, 95
        %v1825 = vpop.permute.xlu0 %1824
        %1826 = vrot.lane.b32.xlu0 %v1612, 95
        %v1827 = vpop.permute.xlu0 %1826
        %1828 = vrot.lane.b32.xlu0 %v1610, 95
        %v1829 = vpop.permute.xlu0 %1828
        %1830 = vrot.lane.b32.xlu0 %v1614, 95
        %v1831 = vpop.permute.xlu0 %1830
        %1832 = vrot.lane.b32.xlu0 %v1621, 95
        %v1833 = vpop.permute.xlu0 %1832
        %1834 = vrot.lane.b32.xlu0 %v1623, 95
        %v1835 = vpop.permute.xlu0 %1834
        %1836 = vrot.lane.b32.xlu0 %v1625, 95
        %v1837 = vpop.permute.xlu0 %1836
        %1838 = vrot.lane.b32.xlu0 %v1627, 95
        %v1839 = vpop.permute.xlu0 %1838
        %1840 = vrot.lane.b32.xlu0 %v1629, 95
        %v1841 = vpop.permute.xlu0 %1840
        %1842 = vrot.lane.b32.xlu0 %v1631, 95
        %v1843 = vpop.permute.xlu0 %1842
        %1844 = vrot.lane.b32.xlu0 %v1633, 95
        %v1845 = vpop.permute.xlu0 %1844
        %1846 = vrot.lane.b32.xlu0 %v1635, 95
        %v1847 = vpop.permute.xlu0 %1846
        %1848 = vrot.lane.b32.xlu0 %v1637, 95
        %v1849 = vpop.permute.xlu0 %1848
        %vm1850 = vcmask 777216
        %v1851 = vsel %vm1850, %v1789, %v1791
        %v1852 = vsel %vm1850, %v1795, %v1797
        %v1853 = vsel %vm1850, %v1801, %v1803
        %v1854 = vsel %vm1850, %v1815, %v1817
        %v1855 = vsel %vm1850, %v1821, %v1823
        %v1856 = vsel %vm1850, %v1827, %v1829
        %v1882 = vsel %vm1110, %v1281, %v1639
        %v1883 = vsel %vm1110, %v1341, %v1641
        %v1884 = vsel %vm1110, %v1345, %v1643
        %v1885 = vsel %vm1110, %v1348, %v1645
        %v1886 = vsel %vm1110, %v1351, %v1647
        %v1887 = vsel %vm1110, %v1355, %v1649
        %v1888 = vsel %vm1110, %v1364, %v1651
        %v1889 = vsel %vm1110, %v1367, %v1653
        %v1890 = vsel %vm1110, %v1374, %v1655
        %v1891 = vsel %vm1110, %v1377, %v1657
        %v1892 = vsel %vm1110, %v1380, %v1659
        %v1893 = vsel %vm1110, %v1383, %v1661
        %v1894 = vsel %vm1110, %v1386, %v1663
        %v1895 = vsel %vm1110, %v1389, %v1665
        %v1896 = vsel %vm1110, %v1392, %v1667
        %v1897 = vsel %vm1110, %v1395, %v1669
        %v1898 = vsel %vm1110, %v1440, %v1671
        %v1899 = vsel %vm1110, %v1422, %v1673
        %v1900 = vsel %vm1110, %v1441, %v1675
        %v1901 = vsel %vm1110, %v1428, %v1677
        %v1902 = vsel %vm1110, %v1430, %v1679
        %v1903 = vsel %vm1110, %v1432, %v1681
        %v1904 = vsel %vm1110, %v1434, %v1683
        %v1905 = vsel %vm1110, %v1436, %v1685
        %v1906 = vsel %vm1110, %v1438, %v1687
        %vm1907 = vcmask 408576
        %v1908 = vsel %vm1907, %v1882, %v1714
        %v1909 = vsel %vm1907, %v1883, %v1716
        %v1910 = vsel %vm1907, %v1884, %v1718
        %v1911 = vsel %vm1907, %v1885, %v1720
        %v1912 = vsel %vm1907, %v1886, %v1722
        %v1913 = vsel %vm1907, %v1887, %v1724
        %v1914 = vsel %vm1907, %v1888, %v1726
        %v1915 = vsel %vm1907, %v1889, %v1728
        %v1916 = vsel %vm1907, %v1890, %v1730
        %v1917 = vsel %vm1907, %v1891, %v1732
        %v1918 = vsel %vm1907, %v1892, %v1734
        %v1919 = vsel %vm1907, %v1893, %v1736
        %v1920 = vsel %vm1907, %v1894, %v1738
        %v1921 = vsel %vm1907, %v1895, %v1740
        %v1922 = vsel %vm1907, %v1896, %v1742
        %v1923 = vsel %vm1907, %v1897, %v1744
        %v1924 = vsel %vm1907, %v1898, %v1746
        %v1925 = vsel %vm1907, %v1899, %v1748
        %v1926 = vsel %vm1907, %v1900, %v1750
        %v1927 = vsel %vm1907, %v1901, %v1752
        %v1928 = vsel %vm1907, %v1902, %v1754
        %v1929 = vsel %vm1907, %v1903, %v1756
        %v1930 = vsel %vm1907, %v1904, %v1758
        %v1931 = vsel %vm1907, %v1905, %v1760
        %v1932 = vsel %vm1907, %v1906, %v1762
        %vm1933 = vcmask 613376
        %v1934 = vsel %vm1933, %v1908, %v1851
        %v1935 = vsel %vm1933, %v1909, %v1793
        %v1936 = vsel %vm1933, %v1910, %v1852
        %v1937 = vsel %vm1933, %v1911, %v1799
        %v1938 = vsel %vm1933, %v1912, %v1853
        %v1939 = vsel %vm1933, %v1913, %v1805
        %v1940 = vsel %vm1933, %v1914, %v1807
        %v1941 = vsel %vm1933, %v1915, %v1809
        %v1942 = vsel %vm1933, %v1916, %v1811
        %v1943 = vsel %vm1933, %v1917, %v1813
        %v1944 = vsel %vm1933, %v1918, %v1854
        %v1945 = vsel %vm1933, %v1919, %v1819
        %v1946 = vsel %vm1933, %v1920, %v1855
        %v1947 = vsel %vm1933, %v1921, %v1825
        %v1948 = vsel %vm1933, %v1922, %v1856
        %v1949 = vsel %vm1933, %v1923, %v1831
        %v1950 = vsel %vm1933, %v1924, %v1833
        %v1951 = vsel %vm1933, %v1925, %v1835
        %v1952 = vsel %vm1933, %v1926, %v1837
        %v1953 = vsel %vm1933, %v1927, %v1839
        %v1954 = vsel %vm1933, %v1928, %v1841
        %v1955 = vsel %vm1933, %v1929, %v1843
        %v1956 = vsel %vm1933, %v1930, %v1845
        %v1957 = vsel %vm1933, %v1931, %v1847
        %v1958 = vsel %vm1933, %v1932, %v1849
        %v1959 = vpack.c.bf16 %v1935, %v1934
        %v1960 = vpack.c.bf16 %v1937, %v1936
        %v1961 = vpack.c.bf16 %v1939, %v1938
        %v1962 = vpack.c.bf16 %v1941, %v1940
        %v1963 = vpack.c.bf16 %v1943, %v1942
        %v1964 = vpack.c.bf16 %v1945, %v1944
        %v1965 = vpack.c.bf16 %v1947, %v1946
        %v1966 = vpack.c.bf16 %v1949, %v1948
        %v1967 = vpack.c.bf16 %v1951, %v1950
        %v1968 = vpack.c.bf16 %v1953, %v1952
        %v1969 = vpack.c.bf16 %v1955, %v1954
        %v1970 = vpack.c.bf16 %v1957, %v1956
        %v1971 = vpack.c.bf16 %v1958, %v1958
        %v1972 = vld [vmem:[%s3] sm:$0xff]
        %v1973 = vld [vmem:[%s3 + $0x8] sm:$0xff]
        %v1976 = vunpack.c.l.b16 %v1972
        %v1977 = vunpack.c.h.b16 %v1972
        %v1978 = vunpack.c.l.b16 %v1973
        %v1979 = vunpack.c.h.b16 %v1973
        %v1980 = vpack.c.b16 %v1978, %v1976
        %v1981 = vpack.c.b16 %v1979, %v1977
        %v1984 = vsel %vm1057, %v1981, 0
        %v1987 = vsel %vm353, %v1971, 0
        %1989 = vmatprep.subr.bf16.mxu0 0
        %1990 = vmatpush1.bf16.msra.mxu0 %v1959
        %1991 = vmatprep.subr.bf16.mxu0 0
        %1992 = vmatpush1.bf16.msra.mxu0 %v1960
        %1993 = vmatprep.subr.bf16.mxu0 0
        %1994 = vmatpush1.bf16.msra.mxu0 %v1961
        %1995 = vmatprep.subr.bf16.mxu0 0
        %1996 = vmatpush1.bf16.msra.mxu0 %v1962
        %1997 = vmatprep.subr.bf16.mxu0 0
        %1998 = vmatpush1.bf16.msra.mxu0 %v1963
        %1999 = vmatprep.subr.bf16.mxu0 0
        %2000 = vmatpush1.bf16.msra.mxu0 %v1964
        %2001 = vmatprep.subr.bf16.mxu0 0
        %2002 = vmatpush1.bf16.msra.mxu0 %v1965
        %2003 = vmatprep.subr.bf16.mxu0 0
        %2004 = vmatpush1.bf16.msra.mxu0 %v1966
        %2005 = vmatprep.subr.bf16.mxu0 0
        %2006 = vmatpush1.bf16.msra.mxu0 %v1967
        %2007 = vmatprep.subr.bf16.mxu0 0
        %2008 = vmatpush1.bf16.msra.mxu0 %v1968
        %2009 = vmatprep.subr.bf16.mxu0 0
        %2010 = vmatpush1.bf16.msra.mxu0 %v1969
        %2011 = vmatprep.subr.bf16.mxu0 0
        %2012 = vmatpush1.bf16.msra.mxu0 %v1970
        %2013 = vmatprep.subr.bf16.mxu0 0
        %2014 = vmatpush1.bf16.msra.mxu0 %v1987
        %2015 = vmatprep.subr.bf16.mxu0 0
        %2016 = vmatpush1.bf16.msra.mxu0 0
        %2017 = vmatprep.subr.bf16.mxu0 0
        %2018 = vmatpush1.bf16.msra.mxu0 0
        %2019 = vmatprep.subr.bf16.mxu0 0
        %2020 = vmatpush1.bf16.msra.mxu0 0
        %2021 = vmatprep.mubr.bf16.mxu0 %v1984
        %2022 = vmatmul.mubr.bf16.gmra.mrb[0].mxu0 %v1980
        %v2023 = vpop.f32.mrb[0].mxu0
        %v2024 = vadd.f32 0.0, %v2023
        %v2025 = vpop.f32.mrb[0].mxu0
        %v2026 = vpop.f32.mrb[0].mxu0
        %v2027 = vadd.f32 0.0, %v2026
        %v2028 = vpop.f32.mrb[0].mxu0
        %2029 = vdwg.mxu0
        %2032 = vrot.lane.b32.xlu0 %v2024, 103
        %v2033 = vpop.permute.xlu0 %2032
        %2034 = vrot.lane.b32.xlu0 %v2027, 103
        %v2035 = vpop.permute.xlu0 %2034
        %v2038 = vmax.f32 %v2024, %v2033
        %v2039 = vmax.f32 %v2027, %v2035
        %2042 = vrot.lane.b32.xlu0 %v2038, 78
        %v2043 = vpop.permute.xlu0 %2042
        %2044 = vrot.lane.b32.xlu0 %v2039, 78
        %v2045 = vpop.permute.xlu0 %2044
        %v2048 = vmax.f32 %v2038, %v2043
        %v2049 = vmax.f32 %v2039, %v2045
        %v2050 = vld [vmem:[%s4] sm:$0xff]
        %v2051 = vld [vmem:[%s4 + $0x8] sm:$0xff]
        %2053 = vset.pattern.permute.xlu0 0
        %2054 = vperm.xlu0 %2053, %v2050
        %v2055 = vpop.permute.xlu0 %2054
        %2058 = vset.pattern.permute.xlu0 0
        %2059 = vperm.xlu0 %2058, %v2051
        %v2060 = vpop.permute.xlu0 %2059
        %v2062 = vadd.f32 %v2048, %v2055
        %v2063 = vadd.f32 %v2049, %v2060
        %v2064 = vmax.f32 %v2062, 0.0
        %v2065 = vmax.f32 %v2063, 0.0
        %v2067 = vrot.slane %v2064, 1
        %2068 = vrot.lane.b32.xlu0 %v2067, 25
        %v2069 = vpop.permute.xlu0 %2068
        %v2071 = vrot.slane %v2064, 2
        %2072 = vrot.lane.b32.xlu0 %v2071, 50
        %v2073 = vpop.permute.xlu0 %2072
        %v2075 = vrot.slane %v2064, 3
        %2076 = vrot.lane.b32.xlu0 %v2075, 75
        %v2077 = vpop.permute.xlu0 %2076
        %v2079 = vrot.slane %v2064, 4
        %2080 = vrot.lane.b32.xlu0 %v2079, 100
        %v2081 = vpop.permute.xlu0 %2080
        %v2083 = vrot.slane %v2064, 5
        %2084 = vrot.lane.b32.xlu0 %v2083, 125
        %v2085 = vpop.permute.xlu0 %2084
        %v2087 = vrot.slane %v2064, 6
        %2088 = vrot.lane.b32.xlu0 %v2087, 22
        %v2089 = vpop.permute.xlu0 %2088
        %v2091 = vrot.slane %v2064, 7
        %2092 = vrot.lane.b32.xlu0 %v2091, 47
        %v2093 = vpop.permute.xlu0 %2092
        %2096 = vrot.lane.b32.xlu0 %v2065, 72
        %v2097 = vpop.permute.xlu0 %2096
        %v2099 = vrot.slane %v2065, 1
        %2100 = vrot.lane.b32.xlu0 %v2099, 97
        %v2101 = vpop.permute.xlu0 %2100
        %v2103 = vrot.slane %v2065, 2
        %2104 = vrot.lane.b32.xlu0 %v2103, 122
        %v2105 = vpop.permute.xlu0 %2104
        %v2107 = vrot.slane %v2065, 3
        %2108 = vrot.lane.b32.xlu0 %v2107, 19
        %v2109 = vpop.permute.xlu0 %2108
        %v2111 = vrot.slane %v2065, 4
        %2112 = vrot.lane.b32.xlu0 %v2111, 44
        %v2113 = vpop.permute.xlu0 %2112
        %v2115 = vrot.slane %v2065, 5
        %2116 = vrot.lane.b32.xlu0 %v2115, 69
        %v2117 = vpop.permute.xlu0 %2116
        %v2119 = vrot.slane %v2065, 6
        %2120 = vrot.lane.b32.xlu0 %v2119, 94
        %v2121 = vpop.permute.xlu0 %2120
        %v2123 = vrot.slane %v2065, 7
        %2124 = vrot.lane.b32.xlu0 %v2123, 119
        %v2125 = vpop.permute.xlu0 %2124
        %v2127 = vsel %vm1110, %v2064, %v2069
        %v2128 = vsel %vm1907, %v2127, %v2073
        %v2129 = vsel %vm1933, %v2128, %v2077
        %vm2130 = vcmask 818176
        %v2131 = vsel %vm2130, %v2129, %v2081
        %vm2132 = vcmask 1022976
        %v2133 = vsel %vm2132, %v2131, %v2085
        %vm2134 = vcmask 179200
        %v2135 = vsel %vm2134, %v2085, %v2089
        %vm2136 = vcmask 384000
        %v2137 = vsel %vm2136, %v2135, %v2093
        %v2138 = vsel %vm1057, %v2137, %v2097
        %vm2139 = vcmask 793600
        %v2140 = vsel %vm2139, %v2138, %v2101
        %vm2141 = vcmask 998400
        %v2142 = vsel %vm2141, %v2140, %v2105
        %v2143 = vsel %vm1373, %v2105, %v2109
        %vm2144 = vcmask 359424
        %v2145 = vsel %vm2144, %v2143, %v2113
        %vm2146 = vcmask 564224
        %v2147 = vsel %vm2146, %v2145, %v2117
        %vm2148 = vcmask 769024
        %v2149 = vsel %vm2148, %v2147, %v2121
        %v2150 = vsel %vm1611, %v2149, %v2125
        %v2151 = vpack.c.bf16 %v2133, %v2133
        %v2152 = vpack.c.bf16 %v2142, %v2142
        %v2153 = vpack.c.bf16 %v2150, %v2150
        %v2154 = vpack.c.bf16 %v2125, %v2125
        %v2155 = vld [vmem:[%s5] sm:$0xf]
        %v2156 = vld [vmem:[%s5 + $0x4] sm:$0xf]
        %v2157 = vld [vmem:[%s5 + $0x8] sm:$0xf]
        %v2158 = vld [vmem:[%s5 + $0xc] sm:$0xf]
        %v2159 = vld [vmem:[%s5 + $0x10] sm:$0xf]
        %v2160 = vld [vmem:[%s5 + $0x14] sm:$0xf]
        %v2161 = vld [vmem:[%s5 + $0x18] sm:$0xf]
        %v2162 = vld [vmem:[%s5 + $0x1c] sm:$0xf]
        %v2163 = vld [vmem:[%s5 + $0x20] sm:$0xf]
        %v2164 = vld [vmem:[%s5 + $0x24] sm:$0xf]
        %v2165 = vld [vmem:[%s5 + $0x28] sm:$0xf]
        %v2166 = vld [vmem:[%s5 + $0x2c] sm:$0xf]
        %v2167 = vld [vmem:[%s5 + $0x30] sm:$0xf]
        %v2168 = vld [vmem:[%s5 + $0x34] sm:$0xf]
        %v2169 = vld [vmem:[%s5 + $0x38] sm:$0xf]
        %v2170 = vld [vmem:[%s5 + $0x3c] sm:$0xf]
        %v2171 = vld [vmem:[%s5 + $0x40] sm:$0xf]
        %v2172 = vld [vmem:[%s5 + $0x44] sm:$0xf]
        %v2173 = vld [vmem:[%s5 + $0x48] sm:$0xf]
        %v2174 = vld [vmem:[%s5 + $0x4c] sm:$0xf]
        %v2175 = vld [vmem:[%s5 + $0x50] sm:$0xf]
        %v2176 = vld [vmem:[%s5 + $0x54] sm:$0xf]
        %v2177 = vld [vmem:[%s5 + $0x58] sm:$0xf]
        %v2178 = vld [vmem:[%s5 + $0x5c] sm:$0xf]
        %v2179 = vld [vmem:[%s5 + $0x60] sm:$0xf]
        %v2180 = vld [vmem:[%s5 + $0x64] sm:$0xf]
        %v2181 = vld [vmem:[%s5 + $0x68] sm:$0xf]
        %v2182 = vld [vmem:[%s5 + $0x6c] sm:$0xf]
        %v2183 = vld [vmem:[%s5 + $0x70] sm:$0xf]
        %v2184 = vld [vmem:[%s5 + $0x74] sm:$0xf]
        %v2185 = vld [vmem:[%s5 + $0x78] sm:$0xf]
        %v2186 = vld [vmem:[%s5 + $0x7c] sm:$0xf]
        %v2187 = vld [vmem:[%s5 + $0x80] sm:$0xf]
        %v2188 = vld [vmem:[%s5 + $0x84] sm:$0xf]
        %v2189 = vld [vmem:[%s5 + $0x88] sm:$0xf]
        %v2190 = vld [vmem:[%s5 + $0x8c] sm:$0xf]
        %v2191 = vld [vmem:[%s5 + $0x90] sm:$0xf]
        %v2192 = vld [vmem:[%s5 + $0x94] sm:$0xf]
        %v2193 = vld [vmem:[%s5 + $0x98] sm:$0xf]
        %v2194 = vld [vmem:[%s5 + $0x9c] sm:$0xf]
        %v2195 = vld [vmem:[%s5 + $0xa0] sm:$0xf]
        %v2196 = vld [vmem:[%s5 + $0xa4] sm:$0xf]
        %v2197 = vld [vmem:[%s5 + $0xa8] sm:$0xf]
        %v2198 = vld [vmem:[%s5 + $0xac] sm:$0xf]
        %v2199 = vld [vmem:[%s5 + $0xb0] sm:$0xf]
        %v2200 = vld [vmem:[%s5 + $0xb4] sm:$0xf]
        %v2201 = vld [vmem:[%s5 + $0xb8] sm:$0xf]
        %v2202 = vld [vmem:[%s5 + $0xbc] sm:$0xf]
        %v2203 = vld [vmem:[%s5 + $0xc0] sm:$0xf]
        %v2204 = vld [vmem:[%s5 + $0xc4] sm:$0xf]
        %v2205 = vld [vmem:[%s6] sm:$0x1]
        %v2256 = vunpack.c.l.b16 %v2155
        %v2257 = vunpack.c.l.b16 %v2156
        %v2258 = vunpack.c.l.b16 %v2157
        %v2259 = vunpack.c.l.b16 %v2158
        %v2260 = vunpack.c.l.b16 %v2159
        %v2261 = vunpack.c.l.b16 %v2160
        %v2262 = vunpack.c.l.b16 %v2161
        %v2263 = vunpack.c.l.b16 %v2162
        %v2264 = vunpack.c.l.b16 %v2163
        %v2265 = vunpack.c.l.b16 %v2164
        %v2266 = vunpack.c.l.b16 %v2165
        %v2267 = vunpack.c.l.b16 %v2166
        %v2268 = vunpack.c.l.b16 %v2167
        %v2269 = vunpack.c.l.b16 %v2168
        %v2270 = vunpack.c.l.b16 %v2169
        %v2271 = vunpack.c.l.b16 %v2170
        %v2272 = vunpack.c.l.b16 %v2171
        %v2273 = vunpack.c.l.b16 %v2172
        %v2274 = vunpack.c.l.b16 %v2173
        %v2275 = vunpack.c.l.b16 %v2174
        %v2276 = vunpack.c.l.b16 %v2175
        %v2277 = vunpack.c.l.b16 %v2176
        %v2278 = vunpack.c.l.b16 %v2177
        %v2279 = vunpack.c.l.b16 %v2178
        %v2280 = vunpack.c.l.b16 %v2179
        %v2281 = vunpack.c.l.b16 %v2180
        %v2282 = vunpack.c.l.b16 %v2181
        %v2283 = vunpack.c.l.b16 %v2182
        %v2284 = vunpack.c.l.b16 %v2183
        %v2285 = vunpack.c.l.b16 %v2184
        %v2286 = vunpack.c.l.b16 %v2185
        %v2287 = vunpack.c.l.b16 %v2186
        %v2288 = vunpack.c.l.b16 %v2187
        %v2289 = vunpack.c.l.b16 %v2188
        %v2290 = vunpack.c.l.b16 %v2189
        %v2291 = vunpack.c.l.b16 %v2190
        %v2292 = vunpack.c.l.b16 %v2191
        %v2293 = vunpack.c.l.b16 %v2192
        %v2294 = vunpack.c.l.b16 %v2193
        %v2295 = vunpack.c.l.b16 %v2194
        %v2296 = vunpack.c.l.b16 %v2195
        %v2297 = vunpack.c.l.b16 %v2196
        %v2298 = vunpack.c.l.b16 %v2197
        %v2299 = vunpack.c.l.b16 %v2198
        %v2300 = vunpack.c.l.b16 %v2199
        %v2301 = vunpack.c.l.b16 %v2200
        %v2302 = vunpack.c.l.b16 %v2201
        %v2303 = vunpack.c.l.b16 %v2202
        %v2304 = vunpack.c.l.b16 %v2203
        %v2305 = vunpack.c.l.b16 %v2204
        %v2306 = vpack.c.b16 %v2257, %v2256
        %v2307 = vpack.c.b16 %v2259, %v2258
        %v2308 = vpack.c.b16 %v2261, %v2260
        %v2309 = vpack.c.b16 %v2263, %v2262
        %v2310 = vpack.c.b16 %v2265, %v2264
        %v2311 = vpack.c.b16 %v2267, %v2266
        %v2312 = vpack.c.b16 %v2269, %v2268
        %v2313 = vpack.c.b16 %v2271, %v2270
        %v2314 = vpack.c.b16 %v2273, %v2272
        %v2315 = vpack.c.b16 %v2275, %v2274
        %v2316 = vpack.c.b16 %v2277, %v2276
        %v2317 = vpack.c.b16 %v2279, %v2278
        %v2318 = vpack.c.b16 %v2281, %v2280
        %v2319 = vpack.c.b16 %v2283, %v2282
        %v2320 = vpack.c.b16 %v2285, %v2284
        %v2321 = vpack.c.b16 %v2287, %v2286
        %v2322 = vpack.c.b16 %v2289, %v2288
        %v2323 = vpack.c.b16 %v2291, %v2290
        %v2324 = vpack.c.b16 %v2293, %v2292
        %v2325 = vpack.c.b16 %v2295, %v2294
        %v2326 = vpack.c.b16 %v2297, %v2296
        %v2327 = vpack.c.b16 %v2299, %v2298
        %v2328 = vpack.c.b16 %v2301, %v2300
        %v2329 = vpack.c.b16 %v2303, %v2302
        %v2330 = vpack.c.b16 %v2305, %v2304
        %vm2356 = vcmask 130048
        %v2358 = vsel %vm2356, %v2154, 0
        %2360 = vmatprep.subr.bf16.mxu0 0
        %2361 = vmatpush1.bf16.msra.mxu0 %v2306
        %2362 = vmatprep.subr.bf16.mxu0 0
        %2363 = vmatpush1.bf16.msra.mxu0 %v2307
        %2364 = vmatprep.subr.bf16.mxu0 0
        %2365 = vmatpush1.bf16.msra.mxu0 %v2308
        %2366 = vmatprep.subr.bf16.mxu0 0
        %2367 = vmatpush1.bf16.msra.mxu0 %v2309
        %2368 = vmatprep.subr.bf16.mxu0 0
        %2369 = vmatpush1.bf16.msra.mxu0 %v2310
        %2370 = vmatprep.subr.bf16.mxu0 0
        %2371 = vmatpush1.bf16.msra.mxu0 %v2311
        %2372 = vmatprep.subr.bf16.mxu0 0
        %2373 = vmatpush1.bf16.msra.mxu0 %v2312
        %2374 = vmatprep.subr.bf16.mxu0 0
        %2375 = vmatpush1.bf16.msra.mxu0 %v2313
        %2376 = vmatprep.subr.bf16.mxu0 0
        %2377 = vmatpush1.bf16.msra.mxu0 %v2314
        %2378 = vmatprep.subr.bf16.mxu0 0
        %2379 = vmatpush1.bf16.msra.mxu0 %v2315
        %2380 = vmatprep.subr.bf16.mxu0 0
        %2381 = vmatpush1.bf16.msra.mxu0 %v2316
        %2382 = vmatprep.subr.bf16.mxu0 0
        %2383 = vmatpush1.bf16.msra.mxu0 %v2317
        %2384 = vmatprep.subr.bf16.mxu0 0
        %2385 = vmatpush1.bf16.msra.mxu0 %v2318
        %2386 = vmatprep.subr.bf16.mxu0 0
        %2387 = vmatpush1.bf16.msra.mxu0 %v2319
        %2388 = vmatprep.subr.bf16.mxu0 0
        %2389 = vmatpush1.bf16.msra.mxu0 %v2320
        %2390 = vmatprep.subr.bf16.mxu0 0
        %2391 = vmatpush1.bf16.msra.mxu0 %v2321
        %2392 = vmatprep.mubr.bf16.mxu0 %v2152
        %2393 = vmatmul.mubr.bf16.gmra.mrb[0].mxu0 %v2151
        %v2394 = vpop.f32.mrb[0].mxu0
        %v2395 = vadd.f32 %v2205, %v2394
        %v2396 = vpop.f32.mrb[0].mxu0
        %v2397 = vpop.f32.mrb[0].mxu0
        %v2398 = vpop.f32.mrb[0].mxu0
        %2399 = vdwg.mxu0
        %2400 = vmatprep.subr.bf16.mxu0 0
        %2401 = vmatpush1.bf16.msra.mxu0 %v2322
        %2402 = vmatprep.subr.bf16.mxu0 0
        %2403 = vmatpush1.bf16.msra.mxu0 %v2323
        %2404 = vmatprep.subr.bf16.mxu0 0
        %2405 = vmatpush1.bf16.msra.mxu0 %v2324
        %2406 = vmatprep.subr.bf16.mxu0 0
        %2407 = vmatpush1.bf16.msra.mxu0 %v2325
        %2408 = vmatprep.subr.bf16.mxu0 0
        %2409 = vmatpush1.bf16.msra.mxu0 %v2326
        %2410 = vmatprep.subr.bf16.mxu0 0
        %2411 = vmatpush1.bf16.msra.mxu0 %v2327
        %2412 = vmatprep.subr.bf16.mxu0 0
        %2413 = vmatpush1.bf16.msra.mxu0 %v2328
        %2414 = vmatprep.subr.bf16.mxu0 0
        %2415 = vmatpush1.bf16.msra.mxu0 %v2329
        %2416 = vmatprep.subr.bf16.mxu0 0
        %2417 = vmatpush1.bf16.msra.mxu0 %v2330
        %2418 = vmatprep.subr.bf16.mxu0 0
        %2419 = vmatpush1.bf16.msra.mxu0 0
        %2420 = vmatprep.subr.bf16.mxu0 0
        %2421 = vmatpush1.bf16.msra.mxu0 0
        %2422 = vmatprep.subr.bf16.mxu0 0
        %2423 = vmatpush1.bf16.msra.mxu0 0
        %2424 = vmatprep.subr.bf16.mxu0 0
        %2425 = vmatpush1.bf16.msra.mxu0 0
        %2426 = vmatprep.subr.bf16.mxu0 0
        %2427 = vmatpush1.bf16.msra.mxu0 0
        %2428 = vmatprep.subr.bf16.mxu0 0
        %2429 = vmatpush1.bf16.msra.mxu0 0
        %2430 = vmatprep.subr.bf16.mxu0 0
        %2431 = vmatpush1.bf16.msra.mxu0 0
        %2432 = vmatprep.mubr.bf16.mxu0 %v2358
        %2433 = vmatmul.mubr.bf16.gmra.mrb[0].mxu0 %v2153
        %v2434 = vpop.f32.mrb[0].mxu0
        %v2435 = vadd.f32 %v2395, %v2434
        %v2436 = vpop.f32.mrb[0].mxu0
        %v2437 = vpop.f32.mrb[0].mxu0
        %v2438 = vpop.f32.mrb[0].mxu0
        %2439 = vdwg.mxu0
        %v2440 = vmax.f32 %v2435, 0.0
        %v2441 = vpack.c.bf16 %v2440, %v2440
        %v2442 = vld [vmem:[%s7] sm:$0xf]
        %v2443 = vld [vmem:[%s7 + $0x4] sm:$0xf]
        %v2444 = vld [vmem:[%s7 + $0x8] sm:$0xf]
        %v2445 = vld [vmem:[%s7 + $0xc] sm:$0xf]
        %v2446 = vld [vmem:[%s7 + $0x10] sm:$0xf]
        %v2447 = vld [vmem:[%s7 + $0x14] sm:$0xf]
        %v2448 = vld [vmem:[%s7 + $0x18] sm:$0xf]
        %v2449 = vld [vmem:[%s7 + $0x1c] sm:$0xf]
        %v2450 = vld [vmem:[%s8] sm:$0x1]
        %v2459 = vunpack.c.l.b16 %v2442
        %v2460 = vunpack.c.l.b16 %v2443
        %v2461 = vunpack.c.l.b16 %v2444
        %v2462 = vunpack.c.l.b16 %v2445
        %v2463 = vunpack.c.l.b16 %v2446
        %v2464 = vunpack.c.l.b16 %v2447
        %v2465 = vunpack.c.l.b16 %v2448
        %v2466 = vunpack.c.l.b16 %v2449
        %v2467 = vpack.c.b16 %v2460, %v2459
        %v2468 = vpack.c.b16 %v2462, %v2461
        %v2469 = vpack.c.b16 %v2464, %v2463
        %v2470 = vpack.c.b16 %v2466, %v2465
        %vm2475 = vcmask 523264
        %v2477 = vsel %vm2475, %v2441, 0
        %2479 = vmatprep.subr.bf16.mxu0 0
        %2480 = vmatpush1.bf16.msra.mxu0 %v2467
        %2481 = vmatprep.subr.bf16.mxu0 0
        %2482 = vmatpush1.bf16.msra.mxu0 %v2468
        %2483 = vmatprep.subr.bf16.mxu0 0
        %2484 = vmatpush1.bf16.msra.mxu0 %v2469
        %2485 = vmatprep.subr.bf16.mxu0 0
        %2486 = vmatpush1.bf16.msra.mxu0 %v2470
        %2487 = vmatprep.subr.bf16.mxu0 0
        %2488 = vmatpush1.bf16.msra.mxu0 0
        %2489 = vmatprep.subr.bf16.mxu0 0
        %2490 = vmatpush1.bf16.msra.mxu0 0
        %2491 = vmatprep.subr.bf16.mxu0 0
        %2492 = vmatpush1.bf16.msra.mxu0 0
        %2493 = vmatprep.subr.bf16.mxu0 0
        %2494 = vmatpush1.bf16.msra.mxu0 0
        %2495 = vmatprep.subr.bf16.mxu0 0
        %2496 = vmatpush1.bf16.msra.mxu0 0
        %2497 = vmatprep.subr.bf16.mxu0 0
        %2498 = vmatpush1.bf16.msra.mxu0 0
        %2499 = vmatprep.subr.bf16.mxu0 0
        %2500 = vmatpush1.bf16.msra.mxu0 0
        %2501 = vmatprep.subr.bf16.mxu0 0
        %2502 = vmatpush1.bf16.msra.mxu0 0
        %2503 = vmatprep.subr.bf16.mxu0 0
        %2504 = vmatpush1.bf16.msra.mxu0 0
        %2505 = vmatprep.subr.bf16.mxu0 0
        %2506 = vmatpush1.bf16.msra.mxu0 0
        %2507 = vmatprep.subr.bf16.mxu0 0
        %2508 = vmatpush1.bf16.msra.mxu0 0
        %2509 = vmatprep.subr.bf16.mxu0 0
        %2510 = vmatpush1.bf16.msra.mxu0 0
        %2511 = vmatprep.mubr.bf16.mxu0 0
        %2512 = vmatmul.mubr.bf16.gmra.mrb[0].mxu0 %v2477
        %v2513 = vpop.f32.mrb[0].mxu0
        %v2514 = vadd.f32 %v2450, %v2513
        %v2515 = vpop.f32.mrb[0].mxu0
        %v2516 = vpop.f32.mrb[0].mxu0
        %v2517 = vpop.f32.mrb[0].mxu0
        %2518 = vdwg.mxu0
        %v2519 = vsel %vm361, %v2514, -inf
        %2520 = vmax.xlane.f32.xlu0 %v2519
        %v2521 = vpop.xlane.xlu0 %2520
        %v2522 = vsub.f32 %v2514, %v2521
        %v2523 = vmul.f32 %v2522, 1.442695
        %v2524 = vpow.pop %v2523
        %v2525 = vsel %vm361, %v2524, 0.0
        %2526 = vadd.xlane.f32.xlu0 %v2525
        %v2527 = vpop.xlane.xlu0 %2526
        %v2528 = vlog2.pop %v2527
        %v2529 = vmul.f32 %v2528, 0.6931472
        %v2530 = vsub.f32 %v2522, %v2529
        %2531 = vst [vmem:[%s324] sm:$0x1] %v2530
        %s2532 = sand.u32 %s225, 1
        %s2533 = scalar_lea.sflag [#allocation3], %s2532
        %s2534 = sand.u32 %s225, 1
        %s2535 = scalar_lea.vmem [#allocation2], %s2534
        // Predicated region
        $region57: #{convnet_forward.1} parent=55 // pred_check
          %p2536 = pneg %p235
        $region58: #{convnet_forward.1} parent=55 // pred_check_branch
          %2538 = sbr.rel (%p2536) target = $region60
        $region59: #{convnet_forward.1} parent=55 // pred_region
          %s2540 = ssub.s32 16, 16
          %2541 = vsyncadd %s2533, %s2540
          %s2542 = smul.addr %s23, 16
          %s2543 = scalar_lea.hbm %s9, %s2542
          %s2545 = sshll.u32 %s2535, 4
          %s2546 = int_to_ptr.vmem [resolvable:$true] %s2545
          %2548 = dma.vmem_to_hbm [thread:$0]  %s2546, 16, %s2543, %s2533
        $region60: #{convnet_forward.1} parent=55 // pred_fallthru
          _
      $region56: #{convnet_forward.1} parent=5 // pred_fallthru
        _
      %p2549 = scmp.le.s32.totalorder 2, %s18
      // Predicated region
      $region61: #{convnet_forward.1} parent=5 // pred_check
        %p2550 = pneg %p2549
      $region62: #{convnet_forward.1} parent=5 // pred_check_branch
        %2552 = sbr.rel (%p2550) target = $region64
      $region63: #{convnet_forward.1} parent=5 // pred_region
        %s2553 = ssub.s32 %s18, 2
        // Predicated region
        $region65: #{convnet_forward.1} parent=63 // pred_check
          %p2554 = pneg %p241
        $region66: #{convnet_forward.1} parent=63 // pred_check_branch
          %2556 = sbr.rel (%p2554) target = $region68
        $region67: #{convnet_forward.1} parent=63 // pred_region
          %s2557 = sand.u32 %s226, 1
          %s2558 = scalar_lea.sflag [#allocation3], %s2557
          %s2559 = sand.u32 %s226, 1
          %s2560 = scalar_lea.vmem [#allocation2], %s2559
          %2561 = dma.done %s2558, 16
        $region68: #{convnet_forward.1} parent=63 // pred_fallthru
          _
      $region64: #{convnet_forward.1} parent=5 // pred_fallthru
        _
    $region6: #{convnet_forward.1} parent=1 // loop_footer
      %s22 = sadd.s32 1, %s18
    $region7: #{convnet_forward.1} parent=1 // loop_footer_branch
      %17 = sbr.rel target = $region3
    $region8: #{convnet_forward.1} parent=1 // loop_exit
      _
    %2562 = vsyncpa [#allocation3], 1
    %s2563 = scalar_lea.sflag [#allocation3], 1
    %2564 = vsyncpa %s2563, 1

</llo_original>
